<compile_context>
chip_gen: v7x
topology: tpu7x:2x2x1
jax: 0.10.0
libtpu: 0.0.40
codegen_flags: <defaults>
</compile_context>

<pallas_src>
import jax
import jax.numpy as jnp
from jax.experimental import pallas as pl
from jax.experimental.pallas import tpu as pltpu


def _round_up(v, m):
    return ((v + m - 1) // m) * m


def _linear_kernel(x_ref, w_ref, b_ref, o_ref):
    # x_ref: (tm, K), w_ref: (K, tn), b_ref: (1, tn), o_ref: (tm, tn)
    x = x_ref[...].astype(w_ref.dtype)          # no-op in the f32 path
    acc = jnp.dot(x, w_ref[...], preferred_element_type=jnp.float32)
    o_ref[...] = (acc + b_ref[...].astype(jnp.float32)).astype(o_ref.dtype)


def _vmem_cap_bytes():
    """Per-generation scoped-VMEM cap, leaving headroom for Mosaic scratch."""
    try:
        cap = int(pltpu.get_tpu_info().vmem_capacity_bytes)
        return max(32 * 1024 * 1024, (cap * 3) // 4)   # ~25% headroom
    except Exception:
        return 48 * 1024 * 1024                        # safe even on v7x (64 MiB)


def pallas_linear(x2d, w_kn, bias, *, tm=2048, small_m_threshold=128):
    """x2d: [M, K], w_kn: [K, N], bias: [N] (f32) -> [M, N] in x2d.dtype."""
    M, K = x2d.shape
    K2, N = w_kn.shape
    assert K == K2, (K, K2)
    out_dtype = x2d.dtype

    # Small-M fast path: XLA's native dot beats pallas_call launch overhead.
    if M < small_m_threshold:
        acc = jnp.dot(x2d.astype(w_kn.dtype), w_kn,
                      preferred_element_type=jnp.float32)
        return (acc + bias.astype(jnp.float32)).astype(out_dtype)

    x_bytes = jnp.dtype(x2d.dtype).itemsize
    w_bytes = jnp.dtype(w_kn.dtype).itemsize
    o_bytes = jnp.dtype(out_dtype).itemsize
    vmem_cap = _vmem_cap_bytes()

    # Row tile: as large as possible (amortize ~0.35 us per grid step), shrunk
    # for small M, kept a multiple of 8.
    tm_eff = min(tm, max(8, _round_up(M, 8)))

    def plan(tm_e):
        g_m = pl.cdiv(M, tm_e)
        # Only one M block -> split N across two lane-dense blocks so both
        # v7x TensorCores get work (harmless elsewhere: one extra grid step).
        if g_m == 1 and N >= 256 and N % 256 == 0:
            tn_e = N // 2
        else:
            tn_e = N
        g_n = N // tn_e
        w_bufs = 1 if g_n == 1 else 2   # single-buffer only if block is constant
        need = (
            2 * tm_e * K * x_bytes        # double-buffered x tiles
            + w_bufs * K * tn_e * w_bytes  # resident weight tile(s)
            + w_bufs * tn_e * 4            # bias tile(s)
            + 2 * tm_e * tn_e * o_bytes    # double-buffered output tiles
            + tm_e * tn_e * 4              # f32 matmul / epilogue accumulator
            + (4 << 20)                    # Mosaic internal-scratch margin
        )
        return g_m, g_n, tn_e, w_bufs, need

    grid_m, grid_n, tn_eff, _, vmem_needed = plan(tm_eff)
    while vmem_needed > vmem_cap and tm_eff > 256:
        tm_eff = max(256, _round_up(tm_eff // 2, 8))
        grid_m, grid_n, tn_eff, _, vmem_needed = plan(tm_eff)

    vmem_limit = min(max(vmem_needed, 32 * 1024 * 1024), vmem_cap)
    bias2d = bias.reshape(1, N).astype(jnp.float32)

    cost = pl.CostEstimate(
        flops=2 * M * K * N,
        transcendentals=0,
        bytes_accessed=M * K * x_bytes + K * N * w_bytes + M * N * o_bytes + N * 4,
    )

    def _run(single_buffer_w):
        if single_buffer_w:
            w_spec = pl.BlockSpec((K, tn_eff), lambda i, j: (0, j),
                                  pipeline_mode=pl.Buffered(1))
            b_spec = pl.BlockSpec((1, tn_eff), lambda i, j: (0, j),
                                  pipeline_mode=pl.Buffered(1))
        else:
            w_spec = pl.BlockSpec((K, tn_eff), lambda i, j: (0, j))
            b_spec = pl.BlockSpec((1, tn_eff), lambda i, j: (0, j))
        return pl.pallas_call(
            _linear_kernel,
            out_shape=jax.ShapeDtypeStruct((M, N), out_dtype),
            grid_spec=pltpu.PrefetchScalarGridSpec(
                num_scalar_prefetch=0,
                grid=(grid_m, grid_n),
                in_specs=[
                    pl.BlockSpec((tm_eff, K), lambda i, j: (i, 0)),
                    w_spec,
                    b_spec,
                ],
                out_specs=pl.BlockSpec((tm_eff, tn_eff), lambda i, j: (i, j)),
            ),
            compiler_params=pltpu.CompilerParams(
                dimension_semantics=("parallel", "parallel"),
                vmem_limit_bytes=vmem_limit,
            ),
            cost_estimate=cost,
        )(x2d, w_kn, bias2d)

    if grid_n == 1:
        try:
            return _run(True)      # single-buffered constant weight / bias
        except Exception:
            pass                   # older jax: fall back to default buffering
    return _run(False)


class RegionEmbed:
    """JAX/Pallas port of get_model.model.modules.RegionEmbed.

    forward(x) = nn.Linear(num_features, embed_dim)(x)
    compute_dtype=jnp.bfloat16 optionally stores W in bf16 and runs the MXU
    with bf16 operands (f32 accumulation) for v5e/v6e throughput.
    """

    def __init__(self, num_features=800, embed_dim=768, key=None,
                 compute_dtype=None):
        self.num_features = num_features
        self.embed_dim = embed_dim

        if key is None:
            key = jax.random.PRNGKey(0)
        k_w, k_b = jax.random.split(key)
        # nn.Linear default init: U(-1/sqrt(in), 1/sqrt(in)) for weight & bias.
        bound = 1.0 / float(num_features) ** 0.5
        w = jax.random.uniform(
            k_w, (embed_dim, num_features), jnp.float32, -bound, bound
        )  # torch layout [out, in]
        b = jax.random.uniform(k_b, (embed_dim,), jnp.float32, -bound, bound)

        w_kn = jnp.asarray(w).T                      # [K, N] for the kernel
        if compute_dtype is not None:
            w_kn = w_kn.astype(compute_dtype)
        self.w_kn = w_kn
        self.bias = jnp.asarray(b)                   # f32 bias

    def __call__(self, x, **kwargs):
        lead_shape = x.shape[:-1]
        x2d = x.reshape(-1, self.num_features)
        out2d = pallas_linear(x2d, self.w_kn, self.bias)
        return out2d.reshape(*lead_shape, self.embed_dim)


if __name__ == "__main__":
    key = jax.random.PRNGKey(0)
    k_x1, k_x2, k_x3, k_param = jax.random.split(key, 4)

    num_features, embed_dim = 800, 768
    model = RegionEmbed(num_features=num_features, embed_dim=embed_dim,
                        key=k_param)

    def reference(x):
        x2d = x.reshape(-1, num_features)
        ref2d = jnp.dot(x2d, model.w_kn,
                        precision=jax.lax.Precision.HIGHEST) + model.bias
        return ref2d.reshape(*x.shape[:-1], embed_dim)

    # 1) Module-consistent demo shape (batch=2, seq=5): small-M fast path.
    x_small = jax.random.uniform(k_x1, (2, 5, num_features), jnp.float32)
    out_small = jax.block_until_ready(model(x_small))
    assert out_small.shape == (2, 5, embed_dim)
    assert jnp.allclose(out_small, reference(x_small), atol=1e-3, rtol=1e-3)

    # 2) M=256: single M block -> N split into two lane-dense blocks (v7x).
    x_mid = jax.random.uniform(k_x2, (4, 64, num_features), jnp.float32)
    out_mid = jax.block_until_ready(model(x_mid))
    assert out_mid.shape == (4, 64, embed_dim)
    assert jnp.allclose(out_mid, reference(x_mid), atol=1e-3, rtol=1e-3)

    # 3) M=2100: multi M-block grid with a ragged (masked) last block.
    x_big = jax.random.uniform(k_x3, (3, 700, num_features), jnp.float32)
    out_big = jax.block_until_ready(model(x_big))
    assert out_big.shape == (3, 700, embed_dim)
    assert jnp.allclose(out_big, reference(x_big), atol=1e-3, rtol=1e-3)

    # 4) Optional bf16-operand mode (same weights, looser tolerance).
    model_bf16 = RegionEmbed(num_features=num_features, embed_dim=embed_dim,
                             key=k_param, compute_dtype=jnp.bfloat16)
    out_bf16 = jax.block_until_ready(model_bf16(x_mid))
    assert jnp.allclose(out_bf16, reference(x_mid), atol=5e-2, rtol=5e-2)

    print("KERNEL_OK")
</pallas_src>

<mosaic_0001>
module attributes {stable_mosaic.version = 11 : i64} {
  func.func @_linear_kernel(%arg0: i32, %arg1: i32, %arg2: memref<256x800xf32, #tpu.memory_space<vmem>>, %arg3: memref<800x384xf32, #tpu.memory_space<vmem>>, %arg4: memref<1x384xf32, #tpu.memory_space<vmem>>, %arg5: memref<256x384xf32, #tpu.memory_space<vmem>>) attributes {dimension_semantics = [#tpu.dimension_semantics<parallel>, #tpu.dimension_semantics<parallel>], iteration_bounds = array<i64: 1, 2>, scalar_prefetch = 0 : i64, scratch_operands = 0 : i64, tpu.core_type = #tpu.core_type<tc>, window_params = [{transform_indices = @transform_0, window_bounds = array<i64: 256, 800>}, {transform_indices = @transform_1, window_bounds = array<i64: 800, 384>}, {transform_indices = @transform_2, window_bounds = array<i64: 1, 384>}, {transform_indices = @transform_3, window_bounds = array<i64: 256, 384>}]} {
    %c0 = arith.constant 0 : index
    %c0_0 = arith.constant 0 : index
    %0 = vector.load %arg2[%c0, %c0_0] : memref<256x800xf32, #tpu.memory_space<vmem>>, vector<256x800xf32>
    %c0_1 = arith.constant 0 : index
    %c0_2 = arith.constant 0 : index
    %1 = vector.load %arg3[%c0_1, %c0_2] : memref<800x384xf32, #tpu.memory_space<vmem>>, vector<800x384xf32>
    %cst = arith.constant dense<0.000000e+00> : vector<256x384xf32>
    %2 = tpu.matmul %0, %1, %cst {dimension_numbers = #tpu.dot_dimension_numbers<[1], [0], [0], [1], [0, 0, 1, 1], [], []>} : vector<256x800xf32>, vector<800x384xf32>, vector<256x384xf32> -> vector<256x384xf32>
    %c0_3 = arith.constant 0 : index
    %c0_4 = arith.constant 0 : index
    %3 = vector.load %arg4[%c0_3, %c0_4] : memref<1x384xf32, #tpu.memory_space<vmem>>, vector<1x384xf32>
    %4 = vector.broadcast %3 : vector<1x384xf32> to vector<256x384xf32>
    %5 = arith.addf %2, %4 : vector<256x384xf32>
    %c0_5 = arith.constant 0 : index
    %c0_6 = arith.constant 0 : index
    %6 = vector.load %arg5[%c0_5, %c0_6] : memref<256x384xf32, #tpu.memory_space<vmem>>, vector<256x384xf32>
    tpu.vector_store %arg5[%c0_5, %c0_6], %5 {strides = array<i32>} : memref<256x384xf32, #tpu.memory_space<vmem>>, vector<256x384xf32>,
    return
  }
  func.func @transform_0(%arg0: i32, %arg1: i32) -> (i32, i32) {
    %c0_i32 = arith.constant 0 : i32
    %c0_i32_0 = arith.constant 0 : i32
    return %arg0, %c0_i32 : i32, i32
  }
  func.func @transform_1(%arg0: i32, %arg1: i32) -> (i32, i32) {
    %c0_i32 = arith.constant 0 : i32
    %c0_i32_0 = arith.constant 0 : i32
    return %c0_i32, %arg1 : i32, i32
  }
  func.func @transform_2(%arg0: i32, %arg1: i32) -> (i32, i32) {
    %c0_i32 = arith.constant 0 : i32
    %c0_i32_0 = arith.constant 0 : i32
    return %c0_i32, %arg1 : i32, i32
  }
  func.func @transform_3(%arg0: i32, %arg1: i32) -> (i32, i32) {
    %c0_i32 = arith.constant 0 : i32
    return %arg0, %arg1 : i32, i32
  }
}

</mosaic_0001>

<llo_original>
// kernel: tpu_custom_call.1
$region0: #{tpu_custom_call.1}
  #allocation0 [shape = 'u32[]', space=smem, size = 0x4, offset = 0x4, fixed_abs, tag = 'smem constant byte address 0x4 - core index']
  #allocation1 [shape = 'u32[144,128]{1,0:T(1,128)}', space=vmem, size = 0x12000, scoped, tag = 'internal scratch']
  %s0 = inlined_call_operand.vmem [shape: f32[256,800], index: 0, kind: input, shape index: {}]
  %s1 = inlined_call_operand.hbm [shape: f32[800,768], index: 1, kind: input, shape index: {}]
  %s2 = inlined_call_operand.hbm [shape: f32[1,768], index: 2, kind: input, shape index: {}]
  %s3 = inlined_call_operand.hbm [shape: f32[256,768], index: 3, kind: output, shape index: {}]
  %s4 = sld [smem:[#allocation0]]
  $region53: #{tpu_custom_call.1} parent=0
    _
  %s6 = ssub.s32 1, %s4
  %s7 = scalar_select 0, %s6, %s4
  $region1: #{tpu_custom_call.1} parent=0
    #allocation2 [shape = 'u8[2457600]{0}', space=vmem, size = 0x258000, scoped, tag = 'input window, operand 1']
    #allocation3 [shape = 's32[2]{0}', space=sflag, size = 0x8, scoped, tag = 'scoped memory for tpu_custom_call.1']
    #allocation4 [shape = 's32[2]{0}', space=sflag, size = 0x8, scoped, tag = 'scoped memory for tpu_custom_call.1']
    #allocation5 [shape = 'u8[3072]{0}', space=vmem, size = 0xc00, scoped, tag = 'input window, operand 2']
    #allocation6 [shape = 's32[2]{0}', space=sflag, size = 0x8, scoped, tag = 'scoped memory for tpu_custom_call.1']
    #allocation7 [shape = 'u8[786432]{0}', space=vmem, size = 0xc0000, scoped, tag = 'output window, operand 0']
    %8 = vsyncpa [#allocation3], 0
    %s9 = scalar_lea.sflag [#allocation3], 1
    %10 = vsyncpa %s9, 0
    %11 = vsyncpa [#allocation6], 0
    %s12 = scalar_lea.sflag [#allocation6], 1
    %13 = vsyncpa %s12, 0
    %14 = vsyncpa [#allocation4], 0
    %s15 = scalar_lea.sflag [#allocation4], 1
    %16 = vsyncpa %s15, 0
    loop: start=0, step=1, limit=4
    $region2: #{tpu_custom_call.1} parent=1 // loop_pre_header
      _
    $region3: #{tpu_custom_call.1} parent=1 // loop_header
      %s18 = sphi 0, %s22
      %p19 = scmp.ge.s32.totalorder %s18, 4
      %s25 = sphi 0, %s37
      %s26 = sphi 0, %s33
      %s27 = sphi 0, %s25
      %s28 = sphi 0, %s26
      %s29 = sphi 0, %s27
      %s30 = sphi 0, %s28
      %s40 = sphi 0, %s42
      %s43 = sphi 0, %s40
      %s44 = sphi 0, %s43
      %s60 = sphi 0, %s44
      %s66 = sphi 0, %s68
      %s69 = sphi 0, %s66
      %s70 = sphi 0, %s69
      %s86 = sphi 0, %s70
      %s92 = sphi 0, %s94
      %s95 = sphi 0, %s92
      %s96 = sphi 0, %s95
      %s112 = sphi 0, %s96
      %s120 = sphi 0, %s122
      %s123 = sphi 0, %s120
      %s124 = sphi 0, %s123
      %s140 = sphi 0, %s124
    $region4: #{tpu_custom_call.1} parent=1 // loop_header_branch
      %21 = sbr.rel (%p19) target = $region8
    $region5: #{tpu_custom_call.1} parent=1 // loop_body
      %s23 = ssub.s32 %s18, 1
      %s24 = ssub.s32 %s18, 2
      %s31 = sadd.s32 1, %s26
      %p32 = scmp.ge.s32.totalorder %s31, 2
      %s33 = scalar_select %p32, 0, %s31
      %s34 = sadd.s32 1, %s25
      %s35 = scalar_select %p32, %s34, %s25
      %p36 = scmp.ge.s32.totalorder %s35, 1
      %s37 = scalar_select %p36, 0, %s35
      %s38 = ssub.s32 %s25, %s37
      %p39 = scmp.eq.s32.totalorder %s38, 0
      %s41 = sadd.s32 %s40, 1
      %s42 = scalar_select %p39, %s40, %s41
      %p45 = pneg %p39
      %p46 = scmp.eq.s32.totalorder %s18, 1
      %p47 = por %p45, %p46
      %p48 = scmp.ne.s32.totalorder %s40, %s43
      %p49 = scmp.eq.s32.totalorder %s18, 0
      %p50 = por %p48, %p49
      %p51 = scmp.ne.s32.totalorder %s40, %s43
      %p52 = scmp.eq.s32.totalorder %s23, 1
      %p53 = por %p51, %p52
      %p54 = scmp.ne.s32.totalorder %s43, %s44
      %p55 = scmp.eq.s32.totalorder %s23, 0
      %p56 = por %p54, %p55
      %p57 = scmp.ne.s32.totalorder %s43, %s44
      %p58 = scmp.eq.s32.totalorder %s24, 1
      %p59 = por %p57, %p58
      %p61 = scmp.ne.s32.totalorder %s44, %s60
      %p62 = scmp.eq.s32.totalorder %s24, 0
      %p63 = por %p61, %p62
      %s64 = ssub.s32 %s26, %s33
      %p65 = scmp.eq.s32.totalorder %s64, 0
      %s67 = sadd.s32 %s66, 1
      %s68 = scalar_select %p65, %s66, %s67
      %p71 = pneg %p65
      %p72 = scmp.eq.s32.totalorder %s18, 1
      %p73 = por %p71, %p72
      %p74 = scmp.ne.s32.totalorder %s66, %s69
      %p75 = scmp.eq.s32.totalorder %s18, 0
      %p76 = por %p74, %p75
      %p77 = scmp.ne.s32.totalorder %s66, %s69
      %p78 = scmp.eq.s32.totalorder %s23, 1
      %p79 = por %p77, %p78
      %p80 = scmp.ne.s32.totalorder %s69, %s70
      %p81 = scmp.eq.s32.totalorder %s23, 0
      %p82 = por %p80, %p81
      %p83 = scmp.ne.s32.totalorder %s69, %s70
      %p84 = scmp.eq.s32.totalorder %s24, 1
      %p85 = por %p83, %p84
      %p87 = scmp.ne.s32.totalorder %s70, %s86
      %p88 = scmp.eq.s32.totalorder %s24, 0
      %p89 = por %p87, %p88
      %s90 = ssub.s32 %s26, %s33
      %p91 = scmp.eq.s32.totalorder %s90, 0
      %s93 = sadd.s32 %s92, 1
      %s94 = scalar_select %p91, %s92, %s93
      %p97 = pneg %p91
      %p98 = scmp.eq.s32.totalorder %s18, 1
      %p99 = por %p97, %p98
      %p100 = scmp.ne.s32.totalorder %s92, %s95
      %p101 = scmp.eq.s32.totalorder %s18, 0
      %p102 = por %p100, %p101
      %p103 = scmp.ne.s32.totalorder %s92, %s95
      %p104 = scmp.eq.s32.totalorder %s23, 1
      %p105 = por %p103, %p104
      %p106 = scmp.ne.s32.totalorder %s95, %s96
      %p107 = scmp.eq.s32.totalorder %s23, 0
      %p108 = por %p106, %p107
      %p109 = scmp.ne.s32.totalorder %s95, %s96
      %p110 = scmp.eq.s32.totalorder %s24, 1
      %p111 = por %p109, %p110
      %p113 = scmp.ne.s32.totalorder %s96, %s112
      %p114 = scmp.eq.s32.totalorder %s24, 0
      %p115 = por %p113, %p114
      %s116 = ssub.s32 %s25, %s37
      %s117 = ssub.s32 %s26, %s33
      %s118 = sor.u32 %s116, %s117
      %p119 = scmp.eq.s32.totalorder %s118, 0
      %s121 = sadd.s32 %s120, 1
      %s122 = scalar_select %p119, %s120, %s121
      %p125 = pneg %p119
      %p126 = scmp.eq.s32.totalorder %s18, 1
      %p127 = por %p125, %p126
      %p128 = scmp.ne.s32.totalorder %s120, %s123
      %p129 = scmp.eq.s32.totalorder %s18, 0
      %p130 = por %p128, %p129
      %p131 = scmp.ne.s32.totalorder %s120, %s123
      %p132 = scmp.eq.s32.totalorder %s23, 1
      %p133 = por %p131, %p132
      %p134 = scmp.ne.s32.totalorder %s123, %s124
      %p135 = scmp.eq.s32.totalorder %s23, 0
      %p136 = por %p134, %p135
      %p137 = scmp.ne.s32.totalorder %s123, %s124
      %p138 = scmp.eq.s32.totalorder %s24, 1
      %p139 = por %p137, %p138
      %p141 = scmp.ne.s32.totalorder %s124, %s140
      %p142 = scmp.eq.s32.totalorder %s24, 0
      %p143 = por %p141, %p142
      %p144 = scmp.le.s32.totalorder 1, %s18
      %p145 = scmp.lt.s32.totalorder %s18, 3
      %p146 = pnand %p144, %p145
      %p147 = pneg %p146
      // Predicated region
      $region9: #{tpu_custom_call.1} parent=5 // pred_check
        _
      $region10: #{tpu_custom_call.1} parent=5 // pred_check_branch
        %149 = sbr.rel (%p146) target = $region12
      $region11: #{tpu_custom_call.1} parent=5 // pred_region
        %s150 = ssub.s32 %s18, 1
        // Predicated region
        $region13: #{tpu_custom_call.1} parent=11 // pred_check
          %p151 = pneg %p56
        $region14: #{tpu_custom_call.1} parent=11 // pred_check_branch
          %153 = sbr.rel (%p151) target = $region16
        $region15: #{tpu_custom_call.1} parent=11 // pred_region
          %s154 = smul.u32 32, %s27
          %p155 = scmp.lt.s32.totalorder %s154, 31
          %s156 = scalar_select %p155, %s154, 31
          %s157 = smul.addr %s156, 7
          %s158 = smul.addr %s157, 8
          %s159 = scalar_lea.vmem %s0, %s158
          %s160 = smul.u32 32, %s27
        $region16: #{tpu_custom_call.1} parent=11 // pred_fallthru
          _
      $region12: #{tpu_custom_call.1} parent=5 // pred_fallthru
        _
      %p161 = scmp.lt.s32.totalorder %s18, 2
      // Predicated region
      $region17: #{tpu_custom_call.1} parent=5 // pred_check
        %p162 = pneg %p161
      $region18: #{tpu_custom_call.1} parent=5 // pred_check_branch
        %164 = sbr.rel (%p162) target = $region20
      $region19: #{tpu_custom_call.1} parent=5 // pred_region
        // Predicated region
        $region21: #{tpu_custom_call.1} parent=19 // pred_check
          %p165 = pneg %p76
        $region22: #{tpu_custom_call.1} parent=19 // pred_check_branch
          %167 = sbr.rel (%p165) target = $region24
        $region23: #{tpu_custom_call.1} parent=19 // pred_region
          %s168 = sand.u32 %s66, 1
          %s169 = scalar_lea.sflag [#allocation3], %s168
          %s170 = sand.u32 %s66, 1
          %s171 = smul.addr %s170, 2400
          %s172 = scalar_lea.vmem [#allocation2], %s171
          %s173 = smul.u32 3, %s26
          %s175 = ssub.s32 38400, 38400
          %176 = vsyncadd %s169, %s175
          %s177 = smul.addr %s173, 128
          %s178 = scalar_lea.hbm %s1, %s177
          %s179 = sshll.u32 %s172, 4
          %s180 = int_to_ptr.vmem [resolvable:$true] %s179
          %185 = dma.hbm_to_vmem [thread:$0]  %s178, 38400, %s180, %s169, 768, 384, 24
        $region24: #{tpu_custom_call.1} parent=19 // pred_fallthru
          _
        // Predicated region
        $region25: #{tpu_custom_call.1} parent=19 // pred_check
          %p186 = pneg %p102
        $region26: #{tpu_custom_call.1} parent=19 // pred_check_branch
          %188 = sbr.rel (%p186) target = $region28
        $region27: #{tpu_custom_call.1} parent=19 // pred_region
          %s189 = sand.u32 %s92, 1
          %s190 = scalar_lea.sflag [#allocation6], %s189
          %s191 = sand.u32 %s92, 1
          %s192 = smul.addr %s191, 3
          %s193 = scalar_lea.vmem [#allocation5], %s192
          %s194 = smul.u32 3, %s26
          %s196 = ssub.s32 48, 48
          %197 = vsyncadd %s190, %s196
          %s198 = smul.addr %s194, 16
          %s199 = scalar_lea.hbm %s2, %s198
          %s201 = sshll.u32 %s193, 4
          %s202 = int_to_ptr.vmem [resolvable:$true] %s201
          %204 = dma.hbm_to_vmem [thread:$0]  %s199, 48, %s202, %s190
        $region28: #{tpu_custom_call.1} parent=19 // pred_fallthru
          _
      $region20: #{tpu_custom_call.1} parent=5 // pred_fallthru
        _
      %p205 = scmp.le.s32.totalorder 1, %s18
      %p206 = scmp.lt.s32.totalorder %s18, 3
      %p207 = pnand %p205, %p206
      %p208 = pneg %p207
      // Predicated region
      $region29: #{tpu_custom_call.1} parent=5 // pred_check
        _
      $region30: #{tpu_custom_call.1} parent=5 // pred_check_branch
        %210 = sbr.rel (%p207) target = $region32
      $region31: #{tpu_custom_call.1} parent=5 // pred_region
        %s211 = ssub.s32 %s18, 1
        %s212 = sand.u32 %s69, 1
        %s213 = scalar_lea.sflag [#allocation3], %s212
        %s214 = sand.u32 %s69, 1
        %s215 = smul.addr %s214, 2400
        %s216 = scalar_lea.vmem [#allocation2], %s215
        // Predicated region
        $region33: #{tpu_custom_call.1} parent=31 // pred_check
          %p217 = pneg %p82
        $region34: #{tpu_custom_call.1} parent=31 // pred_check_branch
          %219 = sbr.rel (%p217) target = $region36
        $region35: #{tpu_custom_call.1} parent=31 // pred_region
          %220 = dma.done %s213, 38400
        $region36: #{tpu_custom_call.1} parent=31 // pred_fallthru
          _
        %s221 = sand.u32 %s95, 1
        %s222 = scalar_lea.sflag [#allocation6], %s221
        %s223 = sand.u32 %s95, 1
        %s224 = smul.addr %s223, 3
        %s225 = scalar_lea.vmem [#allocation5], %s224
        // Predicated region
        $region37: #{tpu_custom_call.1} parent=31 // pred_check
          %p226 = pneg %p108
        $region38: #{tpu_custom_call.1} parent=31 // pred_check_branch
          %228 = sbr.rel (%p226) target = $region40
        $region39: #{tpu_custom_call.1} parent=31 // pred_region
          %229 = dma.done %s222, 48
        $region40: #{tpu_custom_call.1} parent=31 // pred_fallthru
          _
        %s230 = smul.u32 32, %s27
        %p231 = scmp.lt.s32.totalorder %s230, 31
        %s232 = scalar_select %p231, %s230, 31
        %s233 = smul.addr %s232, 7
        %s234 = smul.addr %s233, 8
        %s235 = scalar_lea.vmem %s0, %s234
        %p236 = pneg %p56
        %p237 = pneg %p53
        %s238 = sand.u32 %s69, 1
        %s239 = scalar_lea.sflag [#allocation3], %s238
        %s240 = sand.u32 %s69, 1
        %s241 = smul.addr %s240, 2400
        %s242 = scalar_lea.vmem [#allocation2], %s241
        %p243 = pneg %p82
        %p244 = pneg %p79
        %s245 = sand.u32 %s95, 1
        %s246 = scalar_lea.sflag [#allocation6], %s245
        %s247 = sand.u32 %s95, 1
        %s248 = smul.addr %s247, 3
        %s249 = scalar_lea.vmem [#allocation5], %s248
        %p250 = pneg %p108
        %p251 = pneg %p105
        %p252 = pneg %p136
        %p253 = pneg %p133
        %s254 = sand.u32 %s123, 1
        %s255 = scalar_lea.sflag [#allocation4], %s254
        %s256 = sand.u32 %s123, 1
        %s257 = smul.addr %s256, 768
        %s258 = scalar_lea.vmem [#allocation7], %s257
        %s259 = smul.u32 32, %s27
        %p260 = scmp.lt.s32.totalorder %s259, 31
        %s261 = scalar_select %p260, %s259, 31
        %s262 = smul.addr %s261, 7
        %s263 = smul.addr %s262, 8
        %s264 = scalar_lea.vmem %s0, %s263
        %s265 = smul.u32 32, %s27
        %s266 = smul.u32 3, %s28
        %s267 = smul.u32 3, %s28
        %s268 = smul.u32 32, %s27
        %s269 = smul.u32 3, %s28
        %v270 = vld [vmem:[%s264] sm:$0xff]
        %v271 = vld [vmem:[%s264 + $0x8] sm:$0xff]
        %v272 = vld [vmem:[%s264 + $0x10] sm:$0xff]
        %v273 = vld [vmem:[%s264 + $0x18] sm:$0xff]
        %v274 = vld [vmem:[%s264 + $0x20] sm:$0xff]
        %v275 = vld [vmem:[%s264 + $0x28] sm:$0xff]
        %v276 = vld [vmem:[%s264 + $0x30] sm:$0xff]
        %v277 = vld [vmem:[%s264 + $0x38] sm:$0xff]
        %v278 = vld [vmem:[%s264 + $0x40] sm:$0xff]
        %v279 = vld [vmem:[%s264 + $0x48] sm:$0xff]
        %v280 = vld [vmem:[%s264 + $0x50] sm:$0xff]
        %v281 = vld [vmem:[%s264 + $0x58] sm:$0xff]
        %v282 = vld [vmem:[%s264 + $0x60] sm:$0xff]
        %v283 = vld [vmem:[%s264 + $0x68] sm:$0xff]
        %v284 = vld [vmem:[%s264 + $0x70] sm:$0xff]
        %v285 = vld [vmem:[%s264 + $0x78] sm:$0xff]
        %v286 = vld [vmem:[%s264 + $0x80] sm:$0xff]
        %v287 = vld [vmem:[%s264 + $0x88] sm:$0xff]
        %v288 = vld [vmem:[%s264 + $0x90] sm:$0xff]
        %v289 = vld [vmem:[%s264 + $0x98] sm:$0xff]
        %v290 = vld [vmem:[%s264 + $0xa0] sm:$0xff]
        %v291 = vld [vmem:[%s264 + $0xa8] sm:$0xff]
        %v292 = vld [vmem:[%s264 + $0xb0] sm:$0xff]
        %v293 = vld [vmem:[%s264 + $0xb8] sm:$0xff]
        %v294 = vld [vmem:[%s264 + $0xc0] sm:$0xff]
        %v295 = vld [vmem:[%s264 + $0xc8] sm:$0xff]
        %v296 = vld [vmem:[%s264 + $0xd0] sm:$0xff]
        %v297 = vld [vmem:[%s264 + $0xd8] sm:$0xff]
        %v298 = vld [vmem:[%s264 + $0xe0] sm:$0xff]
        %v299 = vld [vmem:[%s264 + $0xe8] sm:$0xff]
        %v300 = vld [vmem:[%s264 + $0xf0] sm:$0xff]
        %v301 = vld [vmem:[%s264 + $0xf8] sm:$0xff]
        %v302 = vld [vmem:[%s264 + $0x100] sm:$0xff]
        %v303 = vld [vmem:[%s264 + $0x108] sm:$0xff]
        %v304 = vld [vmem:[%s264 + $0x110] sm:$0xff]
        %v305 = vld [vmem:[%s264 + $0x118] sm:$0xff]
        %v306 = vld [vmem:[%s264 + $0x120] sm:$0xff]
        %v307 = vld [vmem:[%s264 + $0x128] sm:$0xff]
        %v308 = vld [vmem:[%s264 + $0x130] sm:$0xff]
        %v309 = vld [vmem:[%s264 + $0x138] sm:$0xff]
        %v310 = vld [vmem:[%s264 + $0x140] sm:$0xff]
        %v311 = vld [vmem:[%s264 + $0x148] sm:$0xff]
        %v312 = vld [vmem:[%s264 + $0x150] sm:$0xff]
        %v313 = vld [vmem:[%s264 + $0x158] sm:$0xff]
        %v314 = vld [vmem:[%s264 + $0x160] sm:$0xff]
        %v315 = vld [vmem:[%s264 + $0x168] sm:$0xff]
        %v316 = vld [vmem:[%s264 + $0x170] sm:$0xff]
        %v317 = vld [vmem:[%s264 + $0x178] sm:$0xff]
        %v318 = vld [vmem:[%s264 + $0x180] sm:$0xff]
        %v319 = vld [vmem:[%s264 + $0x188] sm:$0xff]
        %v320 = vld [vmem:[%s264 + $0x190] sm:$0xff]
        %v321 = vld [vmem:[%s264 + $0x198] sm:$0xff]
        %v322 = vld [vmem:[%s264 + $0x1a0] sm:$0xff]
        %v323 = vld [vmem:[%s264 + $0x1a8] sm:$0xff]
        %v324 = vld [vmem:[%s264 + $0x1b0] sm:$0xff]
        %v325 = vld [vmem:[%s264 + $0x1b8] sm:$0xff]
        %v326 = vld [vmem:[%s264 + $0x1c0] sm:$0xff]
        %v327 = vld [vmem:[%s264 + $0x1c8] sm:$0xff]
        %v328 = vld [vmem:[%s264 + $0x1d0] sm:$0xff]
        %v329 = vld [vmem:[%s264 + $0x1d8] sm:$0xff]
        %v330 = vld [vmem:[%s264 + $0x1e0] sm:$0xff]
        %v331 = vld [vmem:[%s264 + $0x1e8] sm:$0xff]
        %v332 = vld [vmem:[%s264 + $0x1f0] sm:$0xff]
        %v333 = vld [vmem:[%s264 + $0x1f8] sm:$0xff]
        %v334 = vld [vmem:[%s264 + $0x200] sm:$0xff]
        %v335 = vld [vmem:[%s264 + $0x208] sm:$0xff]
        %v336 = vld [vmem:[%s264 + $0x210] sm:$0xff]
        %v337 = vld [vmem:[%s264 + $0x218] sm:$0xff]
        %v338 = vld [vmem:[%s264 + $0x220] sm:$0xff]
        %v339 = vld [vmem:[%s264 + $0x228] sm:$0xff]
        %v340 = vld [vmem:[%s264 + $0x230] sm:$0xff]
        %v341 = vld [vmem:[%s264 + $0x238] sm:$0xff]
        %v342 = vld [vmem:[%s264 + $0x240] sm:$0xff]
        %v343 = vld [vmem:[%s264 + $0x248] sm:$0xff]
        %v344 = vld [vmem:[%s264 + $0x250] sm:$0xff]
        %v345 = vld [vmem:[%s264 + $0x258] sm:$0xff]
        %v346 = vld [vmem:[%s264 + $0x260] sm:$0xff]
        %v347 = vld [vmem:[%s264 + $0x268] sm:$0xff]
        %v348 = vld [vmem:[%s264 + $0x270] sm:$0xff]
        %v349 = vld [vmem:[%s264 + $0x278] sm:$0xff]
        %v350 = vld [vmem:[%s264 + $0x280] sm:$0xff]
        %v351 = vld [vmem:[%s264 + $0x288] sm:$0xff]
        %v352 = vld [vmem:[%s264 + $0x290] sm:$0xff]
        %v353 = vld [vmem:[%s264 + $0x298] sm:$0xff]
        %v354 = vld [vmem:[%s264 + $0x2a0] sm:$0xff]
        %v355 = vld [vmem:[%s264 + $0x2a8] sm:$0xff]
        %v356 = vld [vmem:[%s264 + $0x2b0] sm:$0xff]
        %v357 = vld [vmem:[%s264 + $0x2b8] sm:$0xff]
        %v358 = vld [vmem:[%s264 + $0x2c0] sm:$0xff]
        %v359 = vld [vmem:[%s264 + $0x2c8] sm:$0xff]
        %v360 = vld [vmem:[%s264 + $0x2d0] sm:$0xff]
        %v361 = vld [vmem:[%s264 + $0x2d8] sm:$0xff]
        %v362 = vld [vmem:[%s264 + $0x2e0] sm:$0xff]
        %v363 = vld [vmem:[%s264 + $0x2e8] sm:$0xff]
        %v364 = vld [vmem:[%s264 + $0x2f0] sm:$0xff]
        %v365 = vld [vmem:[%s264 + $0x2f8] sm:$0xff]
        %v366 = vld [vmem:[%s264 + $0x300] sm:$0xff]
        %v367 = vld [vmem:[%s264 + $0x308] sm:$0xff]
        %v368 = vld [vmem:[%s264 + $0x310] sm:$0xff]
        %v369 = vld [vmem:[%s264 + $0x318] sm:$0xff]
        %v370 = vld [vmem:[%s264 + $0x320] sm:$0xff]
        %v371 = vld [vmem:[%s264 + $0x328] sm:$0xff]
        %v372 = vld [vmem:[%s264 + $0x330] sm:$0xff]
        %v373 = vld [vmem:[%s264 + $0x338] sm:$0xff]
        %v374 = vld [vmem:[%s264 + $0x340] sm:$0xff]
        %v375 = vld [vmem:[%s264 + $0x348] sm:$0xff]
        %v376 = vld [vmem:[%s264 + $0x350] sm:$0xff]
        %v377 = vld [vmem:[%s264 + $0x358] sm:$0xff]
        %v378 = vld [vmem:[%s264 + $0x360] sm:$0xff]
        %v379 = vld [vmem:[%s264 + $0x368] sm:$0xff]
        %v380 = vld [vmem:[%s264 + $0x370] sm:$0xff]
        %v381 = vld [vmem:[%s264 + $0x378] sm:$0xff]
        %v382 = vld [vmem:[%s264 + $0x380] sm:$0xff]
        %v383 = vld [vmem:[%s264 + $0x388] sm:$0xff]
        %v384 = vld [vmem:[%s264 + $0x390] sm:$0xff]
        %v385 = vld [vmem:[%s264 + $0x398] sm:$0xff]
        %v386 = vld [vmem:[%s264 + $0x3a0] sm:$0xff]
        %v387 = vld [vmem:[%s264 + $0x3a8] sm:$0xff]
        %v388 = vld [vmem:[%s264 + $0x3b0] sm:$0xff]
        %v389 = vld [vmem:[%s264 + $0x3b8] sm:$0xff]
        %v390 = vld [vmem:[%s264 + $0x3c0] sm:$0xff]
        %v391 = vld [vmem:[%s264 + $0x3c8] sm:$0xff]
        %v392 = vld [vmem:[%s264 + $0x3d0] sm:$0xff]
        %v393 = vld [vmem:[%s264 + $0x3d8] sm:$0xff]
        %v394 = vld [vmem:[%s264 + $0x3e0] sm:$0xff]
        %v395 = vld [vmem:[%s264 + $0x3e8] sm:$0xff]
        %v396 = vld [vmem:[%s264 + $0x3f0] sm:$0xff]
        %v397 = vld [vmem:[%s264 + $0x3f8] sm:$0xff]
        %v398 = vld [vmem:[%s264 + $0x400] sm:$0xff]
        %v399 = vld [vmem:[%s264 + $0x408] sm:$0xff]
        %v400 = vld [vmem:[%s264 + $0x410] sm:$0xff]
        %v401 = vld [vmem:[%s264 + $0x418] sm:$0xff]
        %v402 = vld [vmem:[%s264 + $0x420] sm:$0xff]
        %v403 = vld [vmem:[%s264 + $0x428] sm:$0xff]
        %v404 = vld [vmem:[%s264 + $0x430] sm:$0xff]
        %v405 = vld [vmem:[%s264 + $0x438] sm:$0xff]
        %v406 = vld [vmem:[%s264 + $0x440] sm:$0xff]
        %v407 = vld [vmem:[%s264 + $0x448] sm:$0xff]
        %v408 = vld [vmem:[%s264 + $0x450] sm:$0xff]
        %v409 = vld [vmem:[%s264 + $0x458] sm:$0xff]
        %v410 = vld [vmem:[%s264 + $0x460] sm:$0xff]
        %v411 = vld [vmem:[%s264 + $0x468] sm:$0xff]
        %v412 = vld [vmem:[%s264 + $0x470] sm:$0xff]
        %v413 = vld [vmem:[%s264 + $0x478] sm:$0xff]
        %v414 = vld [vmem:[%s264 + $0x480] sm:$0xff]
        %v415 = vld [vmem:[%s264 + $0x488] sm:$0xff]
        %v416 = vld [vmem:[%s264 + $0x490] sm:$0xff]
        %v417 = vld [vmem:[%s264 + $0x498] sm:$0xff]
        %v418 = vld [vmem:[%s264 + $0x4a0] sm:$0xff]
        %v419 = vld [vmem:[%s264 + $0x4a8] sm:$0xff]
        %v420 = vld [vmem:[%s264 + $0x4b0] sm:$0xff]
        %v421 = vld [vmem:[%s264 + $0x4b8] sm:$0xff]
        %v422 = vld [vmem:[%s264 + $0x4c0] sm:$0xff]
        %v423 = vld [vmem:[%s264 + $0x4c8] sm:$0xff]
        %v424 = vld [vmem:[%s264 + $0x4d0] sm:$0xff]
        %v425 = vld [vmem:[%s264 + $0x4d8] sm:$0xff]
        %v426 = vld [vmem:[%s264 + $0x4e0] sm:$0xff]
        %v427 = vld [vmem:[%s264 + $0x4e8] sm:$0xff]
        %v428 = vld [vmem:[%s264 + $0x4f0] sm:$0xff]
        %v429 = vld [vmem:[%s264 + $0x4f8] sm:$0xff]
        %v430 = vld [vmem:[%s264 + $0x500] sm:$0xff]
        %v431 = vld [vmem:[%s264 + $0x508] sm:$0xff]
        %v432 = vld [vmem:[%s264 + $0x510] sm:$0xff]
        %v433 = vld [vmem:[%s264 + $0x518] sm:$0xff]
        %v434 = vld [vmem:[%s264 + $0x520] sm:$0xff]
        %v435 = vld [vmem:[%s264 + $0x528] sm:$0xff]
        %v436 = vld [vmem:[%s264 + $0x530] sm:$0xff]
        %v437 = vld [vmem:[%s264 + $0x538] sm:$0xff]
        %v438 = vld [vmem:[%s264 + $0x540] sm:$0xff]
        %v439 = vld [vmem:[%s264 + $0x548] sm:$0xff]
        %v440 = vld [vmem:[%s264 + $0x550] sm:$0xff]
        %v441 = vld [vmem:[%s264 + $0x558] sm:$0xff]
        %v442 = vld [vmem:[%s264 + $0x560] sm:$0xff]
        %v443 = vld [vmem:[%s264 + $0x568] sm:$0xff]
        %v444 = vld [vmem:[%s264 + $0x570] sm:$0xff]
        %v445 = vld [vmem:[%s264 + $0x578] sm:$0xff]
        %v446 = vld [vmem:[%s264 + $0x580] sm:$0xff]
        %v447 = vld [vmem:[%s264 + $0x588] sm:$0xff]
        %v448 = vld [vmem:[%s264 + $0x590] sm:$0xff]
        %v449 = vld [vmem:[%s264 + $0x598] sm:$0xff]
        %v450 = vld [vmem:[%s264 + $0x5a0] sm:$0xff]
        %v451 = vld [vmem:[%s264 + $0x5a8] sm:$0xff]
        %v452 = vld [vmem:[%s264 + $0x5b0] sm:$0xff]
        %v453 = vld [vmem:[%s264 + $0x5b8] sm:$0xff]
        %v454 = vld [vmem:[%s264 + $0x5c0] sm:$0xff]
        %v455 = vld [vmem:[%s264 + $0x5c8] sm:$0xff]
        %v456 = vld [vmem:[%s264 + $0x5d0] sm:$0xff]
        %v457 = vld [vmem:[%s264 + $0x5d8] sm:$0xff]
        %v458 = vld [vmem:[%s264 + $0x5e0] sm:$0xff]
        %v459 = vld [vmem:[%s264 + $0x5e8] sm:$0xff]
        %v460 = vld [vmem:[%s264 + $0x5f0] sm:$0xff]
        %v461 = vld [vmem:[%s264 + $0x5f8] sm:$0xff]
        %v462 = vld [vmem:[%s264 + $0x600] sm:$0xff]
        %v463 = vld [vmem:[%s264 + $0x608] sm:$0xff]
        %v464 = vld [vmem:[%s264 + $0x610] sm:$0xff]
        %v465 = vld [vmem:[%s264 + $0x618] sm:$0xff]
        %v466 = vld [vmem:[%s264 + $0x620] sm:$0xff]
        %v467 = vld [vmem:[%s264 + $0x628] sm:$0xff]
        %v468 = vld [vmem:[%s264 + $0x630] sm:$0xff]
        %v469 = vld [vmem:[%s264 + $0x638] sm:$0xff]
        %v470 = vld [vmem:[%s264 + $0x640] sm:$0xff]
        %v471 = vld [vmem:[%s264 + $0x648] sm:$0xff]
        %v472 = vld [vmem:[%s264 + $0x650] sm:$0xff]
        %v473 = vld [vmem:[%s264 + $0x658] sm:$0xff]
        %v474 = vld [vmem:[%s264 + $0x660] sm:$0xff]
        %v475 = vld [vmem:[%s264 + $0x668] sm:$0xff]
        %v476 = vld [vmem:[%s264 + $0x670] sm:$0xff]
        %v477 = vld [vmem:[%s264 + $0x678] sm:$0xff]
        %v478 = vld [vmem:[%s264 + $0x680] sm:$0xff]
        %v479 = vld [vmem:[%s264 + $0x688] sm:$0xff]
        %v480 = vld [vmem:[%s264 + $0x690] sm:$0xff]
        %v481 = vld [vmem:[%s264 + $0x698] sm:$0xff]
        %v482 = vld [vmem:[%s264 + $0x6a0] sm:$0xff]
        %v483 = vld [vmem:[%s264 + $0x6a8] sm:$0xff]
        %v484 = vld [vmem:[%s264 + $0x6b0] sm:$0xff]
        %v485 = vld [vmem:[%s264 + $0x6b8] sm:$0xff]
        %v486 = vld [vmem:[%s264 + $0x6c0] sm:$0xff]
        %v487 = vld [vmem:[%s264 + $0x6c8] sm:$0xff]
        %v488 = vld [vmem:[%s264 + $0x6d0] sm:$0xff]
        %v489 = vld [vmem:[%s264 + $0x6d8] sm:$0xff]
        %v490 = vld [vmem:[%s264 + $0x6e0] sm:$0xff]
        %v491 = vld [vmem:[%s264 + $0x6e8] sm:$0xff]
        %v492 = vld [vmem:[%s264 + $0x6f0] sm:$0xff]
        %v493 = vld [vmem:[%s264 + $0x6f8] sm:$0xff]
        %v494 = vld [vmem:[%s216] sm:$0xff]
        %v495 = vld [vmem:[%s216 + $0x8] sm:$0xff]
        %v496 = vld [vmem:[%s216 + $0x10] sm:$0xff]
        %v497 = vld [vmem:[%s216 + $0x18] sm:$0xff]
        %v498 = vld [vmem:[%s216 + $0x20] sm:$0xff]
        %v499 = vld [vmem:[%s216 + $0x28] sm:$0xff]
        %v500 = vld [vmem:[%s216 + $0x30] sm:$0xff]
        %v501 = vld [vmem:[%s216 + $0x38] sm:$0xff]
        %v502 = vld [vmem:[%s216 + $0x40] sm:$0xff]
        %v503 = vld [vmem:[%s216 + $0x48] sm:$0xff]
        %v504 = vld [vmem:[%s216 + $0x50] sm:$0xff]
        %v505 = vld [vmem:[%s216 + $0x58] sm:$0xff]
        %v506 = vld [vmem:[%s216 + $0x60] sm:$0xff]
        %v507 = vld [vmem:[%s216 + $0x68] sm:$0xff]
        %v508 = vld [vmem:[%s216 + $0x70] sm:$0xff]
        %v509 = vld [vmem:[%s216 + $0x78] sm:$0xff]
        %v510 = vld [vmem:[%s216 + $0x80] sm:$0xff]
        %v511 = vld [vmem:[%s216 + $0x88] sm:$0xff]
        %v512 = vld [vmem:[%s216 + $0x90] sm:$0xff]
        %v513 = vld [vmem:[%s216 + $0x98] sm:$0xff]
        %v514 = vld [vmem:[%s216 + $0xa0] sm:$0xff]
        %v515 = vld [vmem:[%s216 + $0xa8] sm:$0xff]
        %v516 = vld [vmem:[%s216 + $0xb0] sm:$0xff]
        %v517 = vld [vmem:[%s216 + $0xb8] sm:$0xff]
        %v518 = vld [vmem:[%s216 + $0xc0] sm:$0xff]
        %v519 = vld [vmem:[%s216 + $0xc8] sm:$0xff]
        %v520 = vld [vmem:[%s216 + $0xd0] sm:$0xff]
        %v521 = vld [vmem:[%s216 + $0xd8] sm:$0xff]
        %v522 = vld [vmem:[%s216 + $0xe0] sm:$0xff]
        %v523 = vld [vmem:[%s216 + $0xe8] sm:$0xff]
        %v524 = vld [vmem:[%s216 + $0xf0] sm:$0xff]
        %v525 = vld [vmem:[%s216 + $0xf8] sm:$0xff]
        %v526 = vld [vmem:[%s216 + $0x100] sm:$0xff]
        %v527 = vld [vmem:[%s216 + $0x108] sm:$0xff]
        %v528 = vld [vmem:[%s216 + $0x110] sm:$0xff]
        %v529 = vld [vmem:[%s216 + $0x118] sm:$0xff]
        %v530 = vld [vmem:[%s216 + $0x120] sm:$0xff]
        %v531 = vld [vmem:[%s216 + $0x128] sm:$0xff]
        %v532 = vld [vmem:[%s216 + $0x130] sm:$0xff]
        %v533 = vld [vmem:[%s216 + $0x138] sm:$0xff]
        %v534 = vld [vmem:[%s216 + $0x140] sm:$0xff]
        %v535 = vld [vmem:[%s216 + $0x148] sm:$0xff]
        %v536 = vld [vmem:[%s216 + $0x150] sm:$0xff]
        %v537 = vld [vmem:[%s216 + $0x158] sm:$0xff]
        %v538 = vld [vmem:[%s216 + $0x160] sm:$0xff]
        %v539 = vld [vmem:[%s216 + $0x168] sm:$0xff]
        %v540 = vld [vmem:[%s216 + $0x170] sm:$0xff]
        %v541 = vld [vmem:[%s216 + $0x178] sm:$0xff]
        %v542 = vld [vmem:[%s216 + $0x180] sm:$0xff]
        %v543 = vld [vmem:[%s216 + $0x188] sm:$0xff]
        %v544 = vld [vmem:[%s216 + $0x190] sm:$0xff]
        %v545 = vld [vmem:[%s216 + $0x198] sm:$0xff]
        %v546 = vld [vmem:[%s216 + $0x1a0] sm:$0xff]
        %v547 = vld [vmem:[%s216 + $0x1a8] sm:$0xff]
        %v548 = vld [vmem:[%s216 + $0x1b0] sm:$0xff]
        %v549 = vld [vmem:[%s216 + $0x1b8] sm:$0xff]
        %v550 = vld [vmem:[%s216 + $0x1c0] sm:$0xff]
        %v551 = vld [vmem:[%s216 + $0x1c8] sm:$0xff]
        %v552 = vld [vmem:[%s216 + $0x1d0] sm:$0xff]
        %v553 = vld [vmem:[%s216 + $0x1d8] sm:$0xff]
        %v554 = vld [vmem:[%s216 + $0x1e0] sm:$0xff]
        %v555 = vld [vmem:[%s216 + $0x1e8] sm:$0xff]
        %v556 = vld [vmem:[%s216 + $0x1f0] sm:$0xff]
        %v557 = vld [vmem:[%s216 + $0x1f8] sm:$0xff]
        %v558 = vld [vmem:[%s216 + $0x200] sm:$0xff]
        %v559 = vld [vmem:[%s216 + $0x208] sm:$0xff]
        %v560 = vld [vmem:[%s216 + $0x210] sm:$0xff]
        %v561 = vld [vmem:[%s216 + $0x218] sm:$0xff]
        %v562 = vld [vmem:[%s216 + $0x220] sm:$0xff]
        %v563 = vld [vmem:[%s216 + $0x228] sm:$0xff]
        %v564 = vld [vmem:[%s216 + $0x230] sm:$0xff]
        %v565 = vld [vmem:[%s216 + $0x238] sm:$0xff]
        %v566 = vld [vmem:[%s216 + $0x240] sm:$0xff]
        %v567 = vld [vmem:[%s216 + $0x248] sm:$0xff]
        %v568 = vld [vmem:[%s216 + $0x250] sm:$0xff]
        %v569 = vld [vmem:[%s216 + $0x258] sm:$0xff]
        %v570 = vld [vmem:[%s216 + $0x260] sm:$0xff]
        %v571 = vld [vmem:[%s216 + $0x268] sm:$0xff]
        %v572 = vld [vmem:[%s216 + $0x270] sm:$0xff]
        %v573 = vld [vmem:[%s216 + $0x278] sm:$0xff]
        %v574 = vld [vmem:[%s216 + $0x280] sm:$0xff]
        %v575 = vld [vmem:[%s216 + $0x288] sm:$0xff]
        %v576 = vld [vmem:[%s216 + $0x290] sm:$0xff]
        %v577 = vld [vmem:[%s216 + $0x298] sm:$0xff]
        %v578 = vld [vmem:[%s216 + $0x2a0] sm:$0xff]
        %v579 = vld [vmem:[%s216 + $0x2a8] sm:$0xff]
        %v580 = vld [vmem:[%s216 + $0x2b0] sm:$0xff]
        %v581 = vld [vmem:[%s216 + $0x2b8] sm:$0xff]
        %v582 = vld [vmem:[%s216 + $0x2c0] sm:$0xff]
        %v583 = vld [vmem:[%s216 + $0x2c8] sm:$0xff]
        %v584 = vld [vmem:[%s216 + $0x2d0] sm:$0xff]
        %v585 = vld [vmem:[%s216 + $0x2d8] sm:$0xff]
        %v586 = vld [vmem:[%s216 + $0x2e0] sm:$0xff]
        %v587 = vld [vmem:[%s216 + $0x2e8] sm:$0xff]
        %v588 = vld [vmem:[%s216 + $0x2f0] sm:$0xff]
        %v589 = vld [vmem:[%s216 + $0x2f8] sm:$0xff]
        %v590 = vld [vmem:[%s216 + $0x300] sm:$0xff]
        %v591 = vld [vmem:[%s216 + $0x308] sm:$0xff]
        %v592 = vld [vmem:[%s216 + $0x310] sm:$0xff]
        %v593 = vld [vmem:[%s216 + $0x318] sm:$0xff]
        %v594 = vld [vmem:[%s216 + $0x320] sm:$0xff]
        %v595 = vld [vmem:[%s216 + $0x328] sm:$0xff]
        %v596 = vld [vmem:[%s216 + $0x330] sm:$0xff]
        %v597 = vld [vmem:[%s216 + $0x338] sm:$0xff]
        %v598 = vld [vmem:[%s216 + $0x340] sm:$0xff]
        %v599 = vld [vmem:[%s216 + $0x348] sm:$0xff]
        %v600 = vld [vmem:[%s216 + $0x350] sm:$0xff]
        %v601 = vld [vmem:[%s216 + $0x358] sm:$0xff]
        %v602 = vld [vmem:[%s216 + $0x360] sm:$0xff]
        %v603 = vld [vmem:[%s216 + $0x368] sm:$0xff]
        %v604 = vld [vmem:[%s216 + $0x370] sm:$0xff]
        %v605 = vld [vmem:[%s216 + $0x378] sm:$0xff]
        %v606 = vld [vmem:[%s216 + $0x380] sm:$0xff]
        %v607 = vld [vmem:[%s216 + $0x388] sm:$0xff]
        %v608 = vld [vmem:[%s216 + $0x390] sm:$0xff]
        %v609 = vld [vmem:[%s216 + $0x398] sm:$0xff]
        %v610 = vld [vmem:[%s216 + $0x3a0] sm:$0xff]
        %v611 = vld [vmem:[%s216 + $0x3a8] sm:$0xff]
        %v612 = vld [vmem:[%s216 + $0x3b0] sm:$0xff]
        %v613 = vld [vmem:[%s216 + $0x3b8] sm:$0xff]
        %v614 = vld [vmem:[%s216 + $0x3c0] sm:$0xff]
        %v615 = vld [vmem:[%s216 + $0x3c8] sm:$0xff]
        %v616 = vld [vmem:[%s216 + $0x3d0] sm:$0xff]
        %v617 = vld [vmem:[%s216 + $0x3d8] sm:$0xff]
        %v618 = vld [vmem:[%s216 + $0x3e0] sm:$0xff]
        %v619 = vld [vmem:[%s216 + $0x3e8] sm:$0xff]
        %v620 = vld [vmem:[%s216 + $0x3f0] sm:$0xff]
        %v621 = vld [vmem:[%s216 + $0x3f8] sm:$0xff]
        %v622 = vld [vmem:[%s216 + $0x400] sm:$0xff]
        %v623 = vld [vmem:[%s216 + $0x408] sm:$0xff]
        %v624 = vld [vmem:[%s216 + $0x410] sm:$0xff]
        %v625 = vld [vmem:[%s216 + $0x418] sm:$0xff]
        %v626 = vld [vmem:[%s216 + $0x420] sm:$0xff]
        %v627 = vld [vmem:[%s216 + $0x428] sm:$0xff]
        %v628 = vld [vmem:[%s216 + $0x430] sm:$0xff]
        %v629 = vld [vmem:[%s216 + $0x438] sm:$0xff]
        %v630 = vld [vmem:[%s216 + $0x440] sm:$0xff]
        %v631 = vld [vmem:[%s216 + $0x448] sm:$0xff]
        %v632 = vld [vmem:[%s216 + $0x450] sm:$0xff]
        %v633 = vld [vmem:[%s216 + $0x458] sm:$0xff]
        %v634 = vld [vmem:[%s216 + $0x460] sm:$0xff]
        %v635 = vld [vmem:[%s216 + $0x468] sm:$0xff]
        %v636 = vld [vmem:[%s216 + $0x470] sm:$0xff]
        %v637 = vld [vmem:[%s216 + $0x478] sm:$0xff]
        %v638 = vld [vmem:[%s216 + $0x480] sm:$0xff]
        %v639 = vld [vmem:[%s216 + $0x488] sm:$0xff]
        %v640 = vld [vmem:[%s216 + $0x490] sm:$0xff]
        %v641 = vld [vmem:[%s216 + $0x498] sm:$0xff]
        %v642 = vld [vmem:[%s216 + $0x4a0] sm:$0xff]
        %v643 = vld [vmem:[%s216 + $0x4a8] sm:$0xff]
        %v644 = vld [vmem:[%s216 + $0x4b0] sm:$0xff]
        %v645 = vld [vmem:[%s216 + $0x4b8] sm:$0xff]
        %v646 = vld [vmem:[%s216 + $0x4c0] sm:$0xff]
        %v647 = vld [vmem:[%s216 + $0x4c8] sm:$0xff]
        %v648 = vld [vmem:[%s216 + $0x4d0] sm:$0xff]
        %v649 = vld [vmem:[%s216 + $0x4d8] sm:$0xff]
        %v650 = vld [vmem:[%s216 + $0x4e0] sm:$0xff]
        %v651 = vld [vmem:[%s216 + $0x4e8] sm:$0xff]
        %v652 = vld [vmem:[%s216 + $0x4f0] sm:$0xff]
        %v653 = vld [vmem:[%s216 + $0x4f8] sm:$0xff]
        %v654 = vld [vmem:[%s216 + $0x500] sm:$0xff]
        %v655 = vld [vmem:[%s216 + $0x508] sm:$0xff]
        %v656 = vld [vmem:[%s216 + $0x510] sm:$0xff]
        %v657 = vld [vmem:[%s216 + $0x518] sm:$0xff]
        %v658 = vld [vmem:[%s216 + $0x520] sm:$0xff]
        %v659 = vld [vmem:[%s216 + $0x528] sm:$0xff]
        %v660 = vld [vmem:[%s216 + $0x530] sm:$0xff]
        %v661 = vld [vmem:[%s216 + $0x538] sm:$0xff]
        %v662 = vld [vmem:[%s216 + $0x540] sm:$0xff]
        %v663 = vld [vmem:[%s216 + $0x548] sm:$0xff]
        %v664 = vld [vmem:[%s216 + $0x550] sm:$0xff]
        %v665 = vld [vmem:[%s216 + $0x558] sm:$0xff]
        %v666 = vld [vmem:[%s216 + $0x560] sm:$0xff]
        %v667 = vld [vmem:[%s216 + $0x568] sm:$0xff]
        %v668 = vld [vmem:[%s216 + $0x570] sm:$0xff]
        %v669 = vld [vmem:[%s216 + $0x578] sm:$0xff]
        %v670 = vld [vmem:[%s216 + $0x580] sm:$0xff]
        %v671 = vld [vmem:[%s216 + $0x588] sm:$0xff]
        %v672 = vld [vmem:[%s216 + $0x590] sm:$0xff]
        %v673 = vld [vmem:[%s216 + $0x598] sm:$0xff]
        %v674 = vld [vmem:[%s216 + $0x5a0] sm:$0xff]
        %v675 = vld [vmem:[%s216 + $0x5a8] sm:$0xff]
        %v676 = vld [vmem:[%s216 + $0x5b0] sm:$0xff]
        %v677 = vld [vmem:[%s216 + $0x5b8] sm:$0xff]
        %v678 = vld [vmem:[%s216 + $0x5c0] sm:$0xff]
        %v679 = vld [vmem:[%s216 + $0x5c8] sm:$0xff]
        %v680 = vld [vmem:[%s216 + $0x5d0] sm:$0xff]
        %v681 = vld [vmem:[%s216 + $0x5d8] sm:$0xff]
        %v682 = vld [vmem:[%s216 + $0x5e0] sm:$0xff]
        %v683 = vld [vmem:[%s216 + $0x5e8] sm:$0xff]
        %v684 = vld [vmem:[%s216 + $0x5f0] sm:$0xff]
        %v685 = vld [vmem:[%s216 + $0x5f8] sm:$0xff]
        %v686 = vld [vmem:[%s216 + $0x600] sm:$0xff]
        %v687 = vld [vmem:[%s216 + $0x608] sm:$0xff]
        %v688 = vld [vmem:[%s216 + $0x610] sm:$0xff]
        %v689 = vld [vmem:[%s216 + $0x618] sm:$0xff]
        %v690 = vld [vmem:[%s216 + $0x620] sm:$0xff]
        %v691 = vld [vmem:[%s216 + $0x628] sm:$0xff]
        %v692 = vld [vmem:[%s216 + $0x630] sm:$0xff]
        %v693 = vld [vmem:[%s216 + $0x638] sm:$0xff]
        %v694 = vld [vmem:[%s216 + $0x640] sm:$0xff]
        %v695 = vld [vmem:[%s216 + $0x648] sm:$0xff]
        %v696 = vld [vmem:[%s216 + $0x650] sm:$0xff]
        %v697 = vld [vmem:[%s216 + $0x658] sm:$0xff]
        %v698 = vld [vmem:[%s216 + $0x660] sm:$0xff]
        %v699 = vld [vmem:[%s216 + $0x668] sm:$0xff]
        %v700 = vld [vmem:[%s216 + $0x670] sm:$0xff]
        %v701 = vld [vmem:[%s216 + $0x678] sm:$0xff]
        %v702 = vld [vmem:[%s216 + $0x680] sm:$0xff]
        %v703 = vld [vmem:[%s216 + $0x688] sm:$0xff]
        %v704 = vld [vmem:[%s216 + $0x690] sm:$0xff]
        %v705 = vld [vmem:[%s216 + $0x698] sm:$0xff]
        %v706 = vld [vmem:[%s216 + $0x6a0] sm:$0xff]
        %v707 = vld [vmem:[%s216 + $0x6a8] sm:$0xff]
        %v708 = vld [vmem:[%s216 + $0x6b0] sm:$0xff]
        %v709 = vld [vmem:[%s216 + $0x6b8] sm:$0xff]
        %v710 = vld [vmem:[%s216 + $0x6c0] sm:$0xff]
        %v711 = vld [vmem:[%s216 + $0x6c8] sm:$0xff]
        %v712 = vld [vmem:[%s216 + $0x6d0] sm:$0xff]
        %v713 = vld [vmem:[%s216 + $0x6d8] sm:$0xff]
        %v714 = vld [vmem:[%s216 + $0x6e0] sm:$0xff]
        %v715 = vld [vmem:[%s216 + $0x6e8] sm:$0xff]
        %v716 = vld [vmem:[%s216 + $0x6f0] sm:$0xff]
        %v717 = vld [vmem:[%s216 + $0x6f8] sm:$0xff]
        %v718 = vld [vmem:[%s216 + $0x700] sm:$0xff]
        %v719 = vld [vmem:[%s216 + $0x708] sm:$0xff]
        %v720 = vld [vmem:[%s216 + $0x710] sm:$0xff]
        %v721 = vld [vmem:[%s216 + $0x718] sm:$0xff]
        %v722 = vld [vmem:[%s216 + $0x720] sm:$0xff]
        %v723 = vld [vmem:[%s216 + $0x728] sm:$0xff]
        %v724 = vld [vmem:[%s216 + $0x730] sm:$0xff]
        %v725 = vld [vmem:[%s216 + $0x738] sm:$0xff]
        %v726 = vld [vmem:[%s216 + $0x740] sm:$0xff]
        %v727 = vld [vmem:[%s216 + $0x748] sm:$0xff]
        %v728 = vld [vmem:[%s216 + $0x750] sm:$0xff]
        %v729 = vld [vmem:[%s216 + $0x758] sm:$0xff]
        %v730 = vld [vmem:[%s216 + $0x760] sm:$0xff]
        %v731 = vld [vmem:[%s216 + $0x768] sm:$0xff]
        %v732 = vld [vmem:[%s216 + $0x770] sm:$0xff]
        %v733 = vld [vmem:[%s216 + $0x778] sm:$0xff]
        %v734 = vld [vmem:[%s216 + $0x780] sm:$0xff]
        %v735 = vld [vmem:[%s216 + $0x788] sm:$0xff]
        %v736 = vld [vmem:[%s216 + $0x790] sm:$0xff]
        %v737 = vld [vmem:[%s216 + $0x798] sm:$0xff]
        %v738 = vld [vmem:[%s216 + $0x7a0] sm:$0xff]
        %v739 = vld [vmem:[%s216 + $0x7a8] sm:$0xff]
        %v740 = vld [vmem:[%s216 + $0x7b0] sm:$0xff]
        %v741 = vld [vmem:[%s216 + $0x7b8] sm:$0xff]
        %v742 = vld [vmem:[%s216 + $0x7c0] sm:$0xff]
        %v743 = vld [vmem:[%s216 + $0x7c8] sm:$0xff]
        %v744 = vld [vmem:[%s216 + $0x7d0] sm:$0xff]
        %v745 = vld [vmem:[%s216 + $0x7d8] sm:$0xff]
        %v746 = vld [vmem:[%s216 + $0x7e0] sm:$0xff]
        %v747 = vld [vmem:[%s216 + $0x7e8] sm:$0xff]
        %v748 = vld [vmem:[%s216 + $0x7f0] sm:$0xff]
        %v749 = vld [vmem:[%s216 + $0x7f8] sm:$0xff]
        %v750 = vld [vmem:[%s216 + $0x800] sm:$0xff]
        %v751 = vld [vmem:[%s216 + $0x808] sm:$0xff]
        %v752 = vld [vmem:[%s216 + $0x810] sm:$0xff]
        %v753 = vld [vmem:[%s216 + $0x818] sm:$0xff]
        %v754 = vld [vmem:[%s216 + $0x820] sm:$0xff]
        %v755 = vld [vmem:[%s216 + $0x828] sm:$0xff]
        %v756 = vld [vmem:[%s216 + $0x830] sm:$0xff]
        %v757 = vld [vmem:[%s216 + $0x838] sm:$0xff]
        %v758 = vld [vmem:[%s216 + $0x840] sm:$0xff]
        %v759 = vld [vmem:[%s216 + $0x848] sm:$0xff]
        %v760 = vld [vmem:[%s216 + $0x850] sm:$0xff]
        %v761 = vld [vmem:[%s216 + $0x858] sm:$0xff]
        %v762 = vld [vmem:[%s216 + $0x860] sm:$0xff]
        %v763 = vld [vmem:[%s216 + $0x868] sm:$0xff]
        %v764 = vld [vmem:[%s216 + $0x870] sm:$0xff]
        %v765 = vld [vmem:[%s216 + $0x878] sm:$0xff]
        %v766 = vld [vmem:[%s216 + $0x880] sm:$0xff]
        %v767 = vld [vmem:[%s216 + $0x888] sm:$0xff]
        %v768 = vld [vmem:[%s216 + $0x890] sm:$0xff]
        %v769 = vld [vmem:[%s216 + $0x898] sm:$0xff]
        %v770 = vld [vmem:[%s216 + $0x8a0] sm:$0xff]
        %v771 = vld [vmem:[%s216 + $0x8a8] sm:$0xff]
        %v772 = vld [vmem:[%s216 + $0x8b0] sm:$0xff]
        %v773 = vld [vmem:[%s216 + $0x8b8] sm:$0xff]
        %v774 = vld [vmem:[%s216 + $0x8c0] sm:$0xff]
        %v775 = vld [vmem:[%s216 + $0x8c8] sm:$0xff]
        %v776 = vld [vmem:[%s216 + $0x8d0] sm:$0xff]
        %v777 = vld [vmem:[%s216 + $0x8d8] sm:$0xff]
        %v778 = vld [vmem:[%s216 + $0x8e0] sm:$0xff]
        %v779 = vld [vmem:[%s216 + $0x8e8] sm:$0xff]
        %v780 = vld [vmem:[%s216 + $0x8f0] sm:$0xff]
        %v781 = vld [vmem:[%s216 + $0x8f8] sm:$0xff]
        %v782 = vld [vmem:[%s216 + $0x900] sm:$0xff]
        %v783 = vld [vmem:[%s216 + $0x908] sm:$0xff]
        %v784 = vld [vmem:[%s216 + $0x910] sm:$0xff]
        %v785 = vld [vmem:[%s216 + $0x918] sm:$0xff]
        %v786 = vld [vmem:[%s216 + $0x920] sm:$0xff]
        %v787 = vld [vmem:[%s216 + $0x928] sm:$0xff]
        %v788 = vld [vmem:[%s216 + $0x930] sm:$0xff]
        %v789 = vld [vmem:[%s216 + $0x938] sm:$0xff]
        %v790 = vld [vmem:[%s216 + $0x940] sm:$0xff]
        %v791 = vld [vmem:[%s216 + $0x948] sm:$0xff]
        %v792 = vld [vmem:[%s216 + $0x950] sm:$0xff]
        %v793 = vld [vmem:[%s216 + $0x958] sm:$0xff]
        %v794 = vld [vmem:[%s225] sm:$0x7]
        %v796 = vlaneseq
        %v797 = vshrl.u32 %v796, 7
        %v798 = vsub.s32 0, %v797
        %v799 = vrot.slane %v794, %v798
        %v800 = vlaneseq
        %v801 = vshrl.u32 %v800, 7
        %v802 = vsub.s32 1, %v801
        %v803 = vrot.slane %v794, %v802
        %v804 = vlaneseq
        %v805 = vshrl.u32 %v804, 7
        %v806 = vsub.s32 2, %v805
        %v807 = vrot.slane %v794, %v806
        %vm811 = vcmask 261120
        %v813 = vsel %vm811, %v276, 0
        %v816 = vsel %vm811, %v283, 0
        %v819 = vsel %vm811, %v290, 0
        %v822 = vsel %vm811, %v297, 0
        %v825 = vsel %vm811, %v304, 0
        %v828 = vsel %vm811, %v311, 0
        %v831 = vsel %vm811, %v318, 0
        %v834 = vsel %vm811, %v325, 0
        %v837 = vsel %vm811, %v332, 0
        %v840 = vsel %vm811, %v339, 0
        %v843 = vsel %vm811, %v346, 0
        %v846 = vsel %vm811, %v353, 0
        %v849 = vsel %vm811, %v360, 0
        %v852 = vsel %vm811, %v367, 0
        %v855 = vsel %vm811, %v374, 0
        %v858 = vsel %vm811, %v381, 0
        %v861 = vsel %vm811, %v388, 0
        %v864 = vsel %vm811, %v395, 0
        %v867 = vsel %vm811, %v402, 0
        %v870 = vsel %vm811, %v409, 0
        %v873 = vsel %vm811, %v416, 0
        %v876 = vsel %vm811, %v423, 0
        %v879 = vsel %vm811, %v430, 0
        %v882 = vsel %vm811, %v437, 0
        %v885 = vsel %vm811, %v444, 0
        %v888 = vsel %vm811, %v451, 0
        %v891 = vsel %vm811, %v458, 0
        %v894 = vsel %vm811, %v465, 0
        %v897 = vsel %vm811, %v472, 0
        %v900 = vsel %vm811, %v479, 0
        %v903 = vsel %vm811, %v486, 0
        %v906 = vsel %vm811, %v493, 0
        %908 = vmatprep.subr.mxu0 %v495
        %909 = vmatpush1.msra.mxu0 %v494
        %910 = vmatprep.subr.mxu0 %v498
        %911 = vmatpush1.msra.mxu0 %v497
        %912 = vmatprep.subr.mxu0 %v501
        %913 = vmatpush1.msra.mxu0 %v500
        %914 = vmatprep.subr.mxu0 %v504
        %915 = vmatpush1.msra.mxu0 %v503
        %916 = vmatprep.subr.mxu0 %v507
        %917 = vmatpush1.msra.mxu0 %v506
        %918 = vmatprep.subr.mxu0 %v510
        %919 = vmatpush1.msra.mxu0 %v509
        %920 = vmatprep.subr.mxu0 %v513
        %921 = vmatpush1.msra.mxu0 %v512
        %922 = vmatprep.subr.mxu0 %v516
        %923 = vmatpush1.msra.mxu0 %v515
        %924 = vmatprep.subr.mxu0 %v519
        %925 = vmatpush1.msra.mxu0 %v518
        %926 = vmatprep.subr.mxu0 %v522
        %927 = vmatpush1.msra.mxu0 %v521
        %928 = vmatprep.subr.mxu0 %v525
        %929 = vmatpush1.msra.mxu0 %v524
        %930 = vmatprep.subr.mxu0 %v528
        %931 = vmatpush1.msra.mxu0 %v527
        %932 = vmatprep.subr.mxu0 %v531
        %933 = vmatpush1.msra.mxu0 %v530
        %934 = vmatprep.subr.mxu0 %v534
        %935 = vmatpush1.msra.mxu0 %v533
        %936 = vmatprep.subr.mxu0 %v537
        %937 = vmatpush1.msra.mxu0 %v536
        %938 = vmatprep.subr.mxu0 %v540
        %939 = vmatpush1.msra.mxu0 %v539
        %940 = vmatprep.subr.mxu0 %v543
        %941 = vmatpush1.msra.mxu0 %v542
        %942 = vmatprep.subr.mxu0 %v546
        %943 = vmatpush1.msra.mxu0 %v545
        %944 = vmatprep.subr.mxu0 %v549
        %945 = vmatpush1.msra.mxu0 %v548
        %946 = vmatprep.subr.mxu0 %v552
        %947 = vmatpush1.msra.mxu0 %v551
        %948 = vmatprep.subr.mxu0 %v555
        %949 = vmatpush1.msra.mxu0 %v554
        %950 = vmatprep.subr.mxu0 %v558
        %951 = vmatpush1.msra.mxu0 %v557
        %952 = vmatprep.subr.mxu0 %v561
        %953 = vmatpush1.msra.mxu0 %v560
        %954 = vmatprep.subr.mxu0 %v564
        %955 = vmatpush1.msra.mxu0 %v563
        %956 = vmatprep.subr.mxu0 %v567
        %957 = vmatpush1.msra.mxu0 %v566
        %958 = vmatprep.subr.mxu0 %v570
        %959 = vmatpush1.msra.mxu0 %v569
        %960 = vmatprep.subr.mxu0 %v573
        %961 = vmatpush1.msra.mxu0 %v572
        %962 = vmatprep.subr.mxu0 %v576
        %963 = vmatpush1.msra.mxu0 %v575
        %964 = vmatprep.subr.mxu0 %v579
        %965 = vmatpush1.msra.mxu0 %v578
        %966 = vmatprep.subr.mxu0 %v582
        %967 = vmatpush1.msra.mxu0 %v581
        %968 = vmatprep.subr.mxu0 %v585
        %969 = vmatpush1.msra.mxu0 %v584
        %970 = vmatprep.subr.mxu0 %v588
        %971 = vmatpush1.msra.mxu0 %v587
        %972 = vmatprep.mubr.f32.mxu0 %v271
        %973 = vmatmul.mubr.f32.gmra.mrb[0].mxu0 %v270
        %v974 = vpop.f32.mrb[0].mxu0
        %v975 = vadd.f32 %v799, %v974
        %v976 = vpop.f32.mrb[0].mxu0
        %v977 = vadd.f32 %v803, %v976
        %978 = vmatprep.mubr.f32.mxu0 %v278
        %979 = vmatmul.mubr.f32.gmra.mrb[0].mxu0 %v277
        %v980 = vpop.f32.mrb[0].mxu0
        %v981 = vadd.f32 %v799, %v980
        %v982 = vpop.f32.mrb[0].mxu0
        %v983 = vadd.f32 %v803, %v982
        %984 = vmatprep.mubr.f32.mxu0 %v285
        %985 = vmatmul.mubr.f32.gmra.mrb[0].mxu0 %v284
        %v986 = vpop.f32.mrb[0].mxu0
        %v987 = vadd.f32 %v799, %v986
        %v988 = vpop.f32.mrb[0].mxu0
        %v989 = vadd.f32 %v803, %v988
        %990 = vmatprep.mubr.f32.mxu0 %v292
        %991 = vmatmul.mubr.f32.gmra.mrb[0].mxu0 %v291
        %v992 = vpop.f32.mrb[0].mxu0
        %v993 = vadd.f32 %v799, %v992
        %v994 = vpop.f32.mrb[0].mxu0
        %v995 = vadd.f32 %v803, %v994
        %996 = vmatprep.mubr.f32.mxu0 %v299
        %997 = vmatmul.mubr.f32.gmra.mrb[0].mxu0 %v298
        %v998 = vpop.f32.mrb[0].mxu0
        %v999 = vadd.f32 %v799, %v998
        %v1000 = vpop.f32.mrb[0].mxu0
        %v1001 = vadd.f32 %v803, %v1000
        %1002 = vmatprep.mubr.f32.mxu0 %v306
        %1003 = vmatmul.mubr.f32.gmra.mrb[0].mxu0 %v305
        %v1004 = vpop.f32.mrb[0].mxu0
        %v1005 = vadd.f32 %v799, %v1004
        %v1006 = vpop.f32.mrb[0].mxu0
        %v1007 = vadd.f32 %v803, %v1006
        %1008 = vmatprep.mubr.f32.mxu0 %v313
        %1009 = vmatmul.mubr.f32.gmra.mrb[0].mxu0 %v312
        %v1010 = vpop.f32.mrb[0].mxu0
        %v1011 = vadd.f32 %v799, %v1010
        %v1012 = vpop.f32.mrb[0].mxu0
        %v1013 = vadd.f32 %v803, %v1012
        %1014 = vmatprep.mubr.f32.mxu0 %v320
        %1015 = vmatmul.mubr.f32.gmra.mrb[0].mxu0 %v319
        %v1016 = vpop.f32.mrb[0].mxu0
        %v1017 = vadd.f32 %v799, %v1016
        %v1018 = vpop.f32.mrb[0].mxu0
        %v1019 = vadd.f32 %v803, %v1018
        %1020 = vmatprep.mubr.f32.mxu0 %v327
        %1021 = vmatmul.mubr.f32.gmra.mrb[0].mxu0 %v326
        %v1022 = vpop.f32.mrb[0].mxu0
        %v1023 = vadd.f32 %v799, %v1022
        %v1024 = vpop.f32.mrb[0].mxu0
        %v1025 = vadd.f32 %v803, %v1024
        %1026 = vmatprep.mubr.f32.mxu0 %v334
        %1027 = vmatmul.mubr.f32.gmra.mrb[0].mxu0 %v333
        %v1028 = vpop.f32.mrb[0].mxu0
        %v1029 = vadd.f32 %v799, %v1028
        %v1030 = vpop.f32.mrb[0].mxu0
        %v1031 = vadd.f32 %v803, %v1030
        %1032 = vmatprep.mubr.f32.mxu0 %v341
        %1033 = vmatmul.mubr.f32.gmra.mrb[0].mxu0 %v340
        %v1034 = vpop.f32.mrb[0].mxu0
        %v1035 = vadd.f32 %v799, %v1034
        %v1036 = vpop.f32.mrb[0].mxu0
        %v1037 = vadd.f32 %v803, %v1036
        %1038 = vmatprep.mubr.f32.mxu0 %v348
        %1039 = vmatmul.mubr.f32.gmra.mrb[0].mxu0 %v347
        %v1040 = vpop.f32.mrb[0].mxu0
        %v1041 = vadd.f32 %v799, %v1040
        %v1042 = vpop.f32.mrb[0].mxu0
        %v1043 = vadd.f32 %v803, %v1042
        %1044 = vmatprep.mubr.f32.mxu0 %v355
        %1045 = vmatmul.mubr.f32.gmra.mrb[0].mxu0 %v354
        %v1046 = vpop.f32.mrb[0].mxu0
        %v1047 = vadd.f32 %v799, %v1046
        %v1048 = vpop.f32.mrb[0].mxu0
        %v1049 = vadd.f32 %v803, %v1048
        %1050 = vmatprep.mubr.f32.mxu0 %v362
        %1051 = vmatmul.mubr.f32.gmra.mrb[0].mxu0 %v361
        %v1052 = vpop.f32.mrb[0].mxu0
        %v1053 = vadd.f32 %v799, %v1052
        %v1054 = vpop.f32.mrb[0].mxu0
        %v1055 = vadd.f32 %v803, %v1054
        %1056 = vmatprep.mubr.f32.mxu0 %v369
        %1057 = vmatmul.mubr.f32.gmra.mrb[0].mxu0 %v368
        %v1058 = vpop.f32.mrb[0].mxu0
        %v1059 = vadd.f32 %v799, %v1058
        %v1060 = vpop.f32.mrb[0].mxu0
        %v1061 = vadd.f32 %v803, %v1060
        %1062 = vmatprep.mubr.f32.mxu0 %v376
        %1063 = vmatmul.mubr.f32.gmra.mrb[0].mxu0 %v375
        %v1064 = vpop.f32.mrb[0].mxu0
        %v1065 = vadd.f32 %v799, %v1064
        %v1066 = vpop.f32.mrb[0].mxu0
        %v1067 = vadd.f32 %v803, %v1066
        %1068 = vmatprep.mubr.f32.mxu0 %v383
        %1069 = vmatmul.mubr.f32.gmra.mrb[0].mxu0 %v382
        %v1070 = vpop.f32.mrb[0].mxu0
        %v1071 = vadd.f32 %v799, %v1070
        %v1072 = vpop.f32.mrb[0].mxu0
        %v1073 = vadd.f32 %v803, %v1072
        %1074 = vmatprep.mubr.f32.mxu0 %v390
        %1075 = vmatmul.mubr.f32.gmra.mrb[0].mxu0 %v389
        %v1076 = vpop.f32.mrb[0].mxu0
        %v1077 = vadd.f32 %v799, %v1076
        %v1078 = vpop.f32.mrb[0].mxu0
        %v1079 = vadd.f32 %v803, %v1078
        %1080 = vmatprep.mubr.f32.mxu0 %v397
        %1081 = vmatmul.mubr.f32.gmra.mrb[0].mxu0 %v396
        %v1082 = vpop.f32.mrb[0].mxu0
        %v1083 = vadd.f32 %v799, %v1082
        %v1084 = vpop.f32.mrb[0].mxu0
        %v1085 = vadd.f32 %v803, %v1084
        %1086 = vmatprep.mubr.f32.mxu0 %v404
        %1087 = vmatmul.mubr.f32.gmra.mrb[0].mxu0 %v403
        %v1088 = vpop.f32.mrb[0].mxu0
        %v1089 = vadd.f32 %v799, %v1088
        %v1090 = vpop.f32.mrb[0].mxu0
        %v1091 = vadd.f32 %v803, %v1090
        %1092 = vmatprep.mubr.f32.mxu0 %v411
        %1093 = vmatmul.mubr.f32.gmra.mrb[0].mxu0 %v410
        %v1094 = vpop.f32.mrb[0].mxu0
        %v1095 = vadd.f32 %v799, %v1094
        %v1096 = vpop.f32.mrb[0].mxu0
        %v1097 = vadd.f32 %v803, %v1096
        %1098 = vmatprep.mubr.f32.mxu0 %v418
        %1099 = vmatmul.mubr.f32.gmra.mrb[0].mxu0 %v417
        %v1100 = vpop.f32.mrb[0].mxu0
        %v1101 = vadd.f32 %v799, %v1100
        %v1102 = vpop.f32.mrb[0].mxu0
        %v1103 = vadd.f32 %v803, %v1102
        %1104 = vmatprep.mubr.f32.mxu0 %v425
        %1105 = vmatmul.mubr.f32.gmra.mrb[0].mxu0 %v424
        %v1106 = vpop.f32.mrb[0].mxu0
        %v1107 = vadd.f32 %v799, %v1106
        %v1108 = vpop.f32.mrb[0].mxu0
        %v1109 = vadd.f32 %v803, %v1108
        %1110 = vmatprep.mubr.f32.mxu0 %v432
        %1111 = vmatmul.mubr.f32.gmra.mrb[0].mxu0 %v431
        %v1112 = vpop.f32.mrb[0].mxu0
        %v1113 = vadd.f32 %v799, %v1112
        %v1114 = vpop.f32.mrb[0].mxu0
        %v1115 = vadd.f32 %v803, %v1114
        %1116 = vmatprep.mubr.f32.mxu0 %v439
        %1117 = vmatmul.mubr.f32.gmra.mrb[0].mxu0 %v438
        %v1118 = vpop.f32.mrb[0].mxu0
        %v1119 = vadd.f32 %v799, %v1118
        %v1120 = vpop.f32.mrb[0].mxu0
        %v1121 = vadd.f32 %v803, %v1120
        %1122 = vmatprep.mubr.f32.mxu0 %v446
        %1123 = vmatmul.mubr.f32.gmra.mrb[0].mxu0 %v445
        %v1124 = vpop.f32.mrb[0].mxu0
        %v1125 = vadd.f32 %v799, %v1124
        %v1126 = vpop.f32.mrb[0].mxu0
        %v1127 = vadd.f32 %v803, %v1126
        %1128 = vmatprep.mubr.f32.mxu0 %v453
        %1129 = vmatmul.mubr.f32.gmra.mrb[0].mxu0 %v452
        %v1130 = vpop.f32.mrb[0].mxu0
        %v1131 = vadd.f32 %v799, %v1130
        %v1132 = vpop.f32.mrb[0].mxu0
        %v1133 = vadd.f32 %v803, %v1132
        %1134 = vmatprep.mubr.f32.mxu0 %v460
        %1135 = vmatmul.mubr.f32.gmra.mrb[0].mxu0 %v459
        %v1136 = vpop.f32.mrb[0].mxu0
        %v1137 = vadd.f32 %v799, %v1136
        %v1138 = vpop.f32.mrb[0].mxu0
        %v1139 = vadd.f32 %v803, %v1138
        %1140 = vmatprep.mubr.f32.mxu0 %v467
        %1141 = vmatmul.mubr.f32.gmra.mrb[0].mxu0 %v466
        %v1142 = vpop.f32.mrb[0].mxu0
        %v1143 = vadd.f32 %v799, %v1142
        %v1144 = vpop.f32.mrb[0].mxu0
        %v1145 = vadd.f32 %v803, %v1144
        %1146 = vmatprep.mubr.f32.mxu0 %v474
        %1147 = vmatmul.mubr.f32.gmra.mrb[0].mxu0 %v473
        %v1148 = vpop.f32.mrb[0].mxu0
        %v1149 = vadd.f32 %v799, %v1148
        %v1150 = vpop.f32.mrb[0].mxu0
        %v1151 = vadd.f32 %v803, %v1150
        %1152 = vmatprep.mubr.f32.mxu0 %v481
        %1153 = vmatmul.mubr.f32.gmra.mrb[0].mxu0 %v480
        %v1154 = vpop.f32.mrb[0].mxu0
        %v1155 = vadd.f32 %v799, %v1154
        %v1156 = vpop.f32.mrb[0].mxu0
        %v1157 = vadd.f32 %v803, %v1156
        %1158 = vmatprep.mubr.f32.mxu0 %v488
        %1159 = vmatmul.mubr.f32.gmra.mrb[0].mxu0 %v487
        %v1160 = vpop.f32.mrb[0].mxu0
        %v1161 = vadd.f32 %v799, %v1160
        %v1162 = vpop.f32.mrb[0].mxu0
        %v1163 = vadd.f32 %v803, %v1162
        %1164 = vdwg.mxu0
        %1165 = vmatprep.subr.mxu0 %v591
        %1166 = vmatpush1.msra.mxu0 %v590
        %1167 = vmatprep.subr.mxu0 %v594
        %1168 = vmatpush1.msra.mxu0 %v593
        %1169 = vmatprep.subr.mxu0 %v597
        %1170 = vmatpush1.msra.mxu0 %v596
        %1171 = vmatprep.subr.mxu0 %v600
        %1172 = vmatpush1.msra.mxu0 %v599
        %1173 = vmatprep.subr.mxu0 %v603
        %1174 = vmatpush1.msra.mxu0 %v602
        %1175 = vmatprep.subr.mxu0 %v606
        %1176 = vmatpush1.msra.mxu0 %v605
        %1177 = vmatprep.subr.mxu0 %v609
        %1178 = vmatpush1.msra.mxu0 %v608
        %1179 = vmatprep.subr.mxu0 %v612
        %1180 = vmatpush1.msra.mxu0 %v611
        %1181 = vmatprep.subr.mxu0 %v615
        %1182 = vmatpush1.msra.mxu0 %v614
        %1183 = vmatprep.subr.mxu0 %v618
        %1184 = vmatpush1.msra.mxu0 %v617
        %1185 = vmatprep.subr.mxu0 %v621
        %1186 = vmatpush1.msra.mxu0 %v620
        %1187 = vmatprep.subr.mxu0 %v624
        %1188 = vmatpush1.msra.mxu0 %v623
        %1189 = vmatprep.subr.mxu0 %v627
        %1190 = vmatpush1.msra.mxu0 %v626
        %1191 = vmatprep.subr.mxu0 %v630
        %1192 = vmatpush1.msra.mxu0 %v629
        %1193 = vmatprep.subr.mxu0 %v633
        %1194 = vmatpush1.msra.mxu0 %v632
        %1195 = vmatprep.subr.mxu0 %v636
        %1196 = vmatpush1.msra.mxu0 %v635
        %1197 = vmatprep.subr.mxu0 %v639
        %1198 = vmatpush1.msra.mxu0 %v638
        %1199 = vmatprep.subr.mxu0 %v642
        %1200 = vmatpush1.msra.mxu0 %v641
        %1201 = vmatprep.subr.mxu0 %v645
        %1202 = vmatpush1.msra.mxu0 %v644
        %1203 = vmatprep.subr.mxu0 %v648
        %1204 = vmatpush1.msra.mxu0 %v647
        %1205 = vmatprep.subr.mxu0 %v651
        %1206 = vmatpush1.msra.mxu0 %v650
        %1207 = vmatprep.subr.mxu0 %v654
        %1208 = vmatpush1.msra.mxu0 %v653
        %1209 = vmatprep.subr.mxu0 %v657
        %1210 = vmatpush1.msra.mxu0 %v656
        %1211 = vmatprep.subr.mxu0 %v660
        %1212 = vmatpush1.msra.mxu0 %v659
        %1213 = vmatprep.subr.mxu0 %v663
        %1214 = vmatpush1.msra.mxu0 %v662
        %1215 = vmatprep.subr.mxu0 %v666
        %1216 = vmatpush1.msra.mxu0 %v665
        %1217 = vmatprep.subr.mxu0 %v669
        %1218 = vmatpush1.msra.mxu0 %v668
        %1219 = vmatprep.subr.mxu0 %v672
        %1220 = vmatpush1.msra.mxu0 %v671
        %1221 = vmatprep.subr.mxu0 %v675
        %1222 = vmatpush1.msra.mxu0 %v674
        %1223 = vmatprep.subr.mxu0 %v678
        %1224 = vmatpush1.msra.mxu0 %v677
        %1225 = vmatprep.subr.mxu0 %v681
        %1226 = vmatpush1.msra.mxu0 %v680
        %1227 = vmatprep.subr.mxu0 %v684
        %1228 = vmatpush1.msra.mxu0 %v683
        %1229 = vmatprep.mubr.f32.mxu0 %v273
        %1230 = vmatmul.mubr.f32.gmra.mrb[0].mxu0 %v272
        %v1231 = vpop.f32.mrb[0].mxu0
        %v1232 = vadd.f32 %v975, %v1231
        %v1233 = vpop.f32.mrb[0].mxu0
        %v1234 = vadd.f32 %v977, %v1233
        %1235 = vmatprep.mubr.f32.mxu0 %v280
        %1236 = vmatmul.mubr.f32.gmra.mrb[0].mxu0 %v279
        %v1237 = vpop.f32.mrb[0].mxu0
        %v1238 = vadd.f32 %v981, %v1237
        %v1239 = vpop.f32.mrb[0].mxu0
        %v1240 = vadd.f32 %v983, %v1239
        %1241 = vmatprep.mubr.f32.mxu0 %v287
        %1242 = vmatmul.mubr.f32.gmra.mrb[0].mxu0 %v286
        %v1243 = vpop.f32.mrb[0].mxu0
        %v1244 = vadd.f32 %v987, %v1243
        %v1245 = vpop.f32.mrb[0].mxu0
        %v1246 = vadd.f32 %v989, %v1245
        %1247 = vmatprep.mubr.f32.mxu0 %v294
        %1248 = vmatmul.mubr.f32.gmra.mrb[0].mxu0 %v293
        %v1249 = vpop.f32.mrb[0].mxu0
        %v1250 = vadd.f32 %v993, %v1249
        %v1251 = vpop.f32.mrb[0].mxu0
        %v1252 = vadd.f32 %v995, %v1251
        %1253 = vmatprep.mubr.f32.mxu0 %v301
        %1254 = vmatmul.mubr.f32.gmra.mrb[0].mxu0 %v300
        %v1255 = vpop.f32.mrb[0].mxu0
        %v1256 = vadd.f32 %v999, %v1255
        %v1257 = vpop.f32.mrb[0].mxu0
        %v1258 = vadd.f32 %v1001, %v1257
        %1259 = vmatprep.mubr.f32.mxu0 %v308
        %1260 = vmatmul.mubr.f32.gmra.mrb[0].mxu0 %v307
        %v1261 = vpop.f32.mrb[0].mxu0
        %v1262 = vadd.f32 %v1005, %v1261
        %v1263 = vpop.f32.mrb[0].mxu0
        %v1264 = vadd.f32 %v1007, %v1263
        %1265 = vmatprep.mubr.f32.mxu0 %v315
        %1266 = vmatmul.mubr.f32.gmra.mrb[0].mxu0 %v314
        %v1267 = vpop.f32.mrb[0].mxu0
        %v1268 = vadd.f32 %v1011, %v1267
        %v1269 = vpop.f32.mrb[0].mxu0
        %v1270 = vadd.f32 %v1013, %v1269
        %1271 = vmatprep.mubr.f32.mxu0 %v322
        %1272 = vmatmul.mubr.f32.gmra.mrb[0].mxu0 %v321
        %v1273 = vpop.f32.mrb[0].mxu0
        %v1274 = vadd.f32 %v1017, %v1273
        %v1275 = vpop.f32.mrb[0].mxu0
        %v1276 = vadd.f32 %v1019, %v1275
        %1277 = vmatprep.mubr.f32.mxu0 %v329
        %1278 = vmatmul.mubr.f32.gmra.mrb[0].mxu0 %v328
        %v1279 = vpop.f32.mrb[0].mxu0
        %v1280 = vadd.f32 %v1023, %v1279
        %v1281 = vpop.f32.mrb[0].mxu0
        %v1282 = vadd.f32 %v1025, %v1281
        %1283 = vmatprep.mubr.f32.mxu0 %v336
        %1284 = vmatmul.mubr.f32.gmra.mrb[0].mxu0 %v335
        %v1285 = vpop.f32.mrb[0].mxu0
        %v1286 = vadd.f32 %v1029, %v1285
        %v1287 = vpop.f32.mrb[0].mxu0
        %v1288 = vadd.f32 %v1031, %v1287
        %1289 = vmatprep.mubr.f32.mxu0 %v343
        %1290 = vmatmul.mubr.f32.gmra.mrb[0].mxu0 %v342
        %v1291 = vpop.f32.mrb[0].mxu0
        %v1292 = vadd.f32 %v1035, %v1291
        %v1293 = vpop.f32.mrb[0].mxu0
        %v1294 = vadd.f32 %v1037, %v1293
        %1295 = vmatprep.mubr.f32.mxu0 %v350
        %1296 = vmatmul.mubr.f32.gmra.mrb[0].mxu0 %v349
        %v1297 = vpop.f32.mrb[0].mxu0
        %v1298 = vadd.f32 %v1041, %v1297
        %v1299 = vpop.f32.mrb[0].mxu0
        %v1300 = vadd.f32 %v1043, %v1299
        %1301 = vmatprep.mubr.f32.mxu0 %v357
        %1302 = vmatmul.mubr.f32.gmra.mrb[0].mxu0 %v356
        %v1303 = vpop.f32.mrb[0].mxu0
        %v1304 = vadd.f32 %v1047, %v1303
        %v1305 = vpop.f32.mrb[0].mxu0
        %v1306 = vadd.f32 %v1049, %v1305
        %1307 = vmatprep.mubr.f32.mxu0 %v364
        %1308 = vmatmul.mubr.f32.gmra.mrb[0].mxu0 %v363
        %v1309 = vpop.f32.mrb[0].mxu0
        %v1310 = vadd.f32 %v1053, %v1309
        %v1311 = vpop.f32.mrb[0].mxu0
        %v1312 = vadd.f32 %v1055, %v1311
        %1313 = vmatprep.mubr.f32.mxu0 %v371
        %1314 = vmatmul.mubr.f32.gmra.mrb[0].mxu0 %v370
        %v1315 = vpop.f32.mrb[0].mxu0
        %v1316 = vadd.f32 %v1059, %v1315
        %v1317 = vpop.f32.mrb[0].mxu0
        %v1318 = vadd.f32 %v1061, %v1317
        %1319 = vmatprep.mubr.f32.mxu0 %v378
        %1320 = vmatmul.mubr.f32.gmra.mrb[0].mxu0 %v377
        %v1321 = vpop.f32.mrb[0].mxu0
        %v1322 = vadd.f32 %v1065, %v1321
        %v1323 = vpop.f32.mrb[0].mxu0
        %v1324 = vadd.f32 %v1067, %v1323
        %1325 = vmatprep.mubr.f32.mxu0 %v385
        %1326 = vmatmul.mubr.f32.gmra.mrb[0].mxu0 %v384
        %v1327 = vpop.f32.mrb[0].mxu0
        %v1328 = vadd.f32 %v1071, %v1327
        %v1329 = vpop.f32.mrb[0].mxu0
        %v1330 = vadd.f32 %v1073, %v1329
        %1331 = vmatprep.mubr.f32.mxu0 %v392
        %1332 = vmatmul.mubr.f32.gmra.mrb[0].mxu0 %v391
        %v1333 = vpop.f32.mrb[0].mxu0
        %v1334 = vadd.f32 %v1077, %v1333
        %v1335 = vpop.f32.mrb[0].mxu0
        %v1336 = vadd.f32 %v1079, %v1335
        %1337 = vmatprep.mubr.f32.mxu0 %v399
        %1338 = vmatmul.mubr.f32.gmra.mrb[0].mxu0 %v398
        %v1339 = vpop.f32.mrb[0].mxu0
        %v1340 = vadd.f32 %v1083, %v1339
        %v1341 = vpop.f32.mrb[0].mxu0
        %v1342 = vadd.f32 %v1085, %v1341
        %1343 = vmatprep.mubr.f32.mxu0 %v406
        %1344 = vmatmul.mubr.f32.gmra.mrb[0].mxu0 %v405
        %v1345 = vpop.f32.mrb[0].mxu0
        %v1346 = vadd.f32 %v1089, %v1345
        %v1347 = vpop.f32.mrb[0].mxu0
        %v1348 = vadd.f32 %v1091, %v1347
        %1349 = vmatprep.mubr.f32.mxu0 %v413
        %1350 = vmatmul.mubr.f32.gmra.mrb[0].mxu0 %v412
        %v1351 = vpop.f32.mrb[0].mxu0
        %v1352 = vadd.f32 %v1095, %v1351
        %v1353 = vpop.f32.mrb[0].mxu0
        %v1354 = vadd.f32 %v1097, %v1353
        %1355 = vmatprep.mubr.f32.mxu0 %v420
        %1356 = vmatmul.mubr.f32.gmra.mrb[0].mxu0 %v419
        %v1357 = vpop.f32.mrb[0].mxu0
        %v1358 = vadd.f32 %v1101, %v1357
        %v1359 = vpop.f32.mrb[0].mxu0
        %v1360 = vadd.f32 %v1103, %v1359
        %1361 = vmatprep.mubr.f32.mxu0 %v427
        %1362 = vmatmul.mubr.f32.gmra.mrb[0].mxu0 %v426
        %v1363 = vpop.f32.mrb[0].mxu0
        %v1364 = vadd.f32 %v1107, %v1363
        %v1365 = vpop.f32.mrb[0].mxu0
        %v1366 = vadd.f32 %v1109, %v1365
        %1367 = vmatprep.mubr.f32.mxu0 %v434
        %1368 = vmatmul.mubr.f32.gmra.mrb[0].mxu0 %v433
        %v1369 = vpop.f32.mrb[0].mxu0
        %v1370 = vadd.f32 %v1113, %v1369
        %v1371 = vpop.f32.mrb[0].mxu0
        %v1372 = vadd.f32 %v1115, %v1371
        %1373 = vmatprep.mubr.f32.mxu0 %v441
        %1374 = vmatmul.mubr.f32.gmra.mrb[0].mxu0 %v440
        %v1375 = vpop.f32.mrb[0].mxu0
        %v1376 = vadd.f32 %v1119, %v1375
        %v1377 = vpop.f32.mrb[0].mxu0
        %v1378 = vadd.f32 %v1121, %v1377
        %1379 = vmatprep.mubr.f32.mxu0 %v448
        %1380 = vmatmul.mubr.f32.gmra.mrb[0].mxu0 %v447
        %v1381 = vpop.f32.mrb[0].mxu0
        %v1382 = vadd.f32 %v1125, %v1381
        %v1383 = vpop.f32.mrb[0].mxu0
        %v1384 = vadd.f32 %v1127, %v1383
        %1385 = vmatprep.mubr.f32.mxu0 %v455
        %1386 = vmatmul.mubr.f32.gmra.mrb[0].mxu0 %v454
        %v1387 = vpop.f32.mrb[0].mxu0
        %v1388 = vadd.f32 %v1131, %v1387
        %v1389 = vpop.f32.mrb[0].mxu0
        %v1390 = vadd.f32 %v1133, %v1389
        %1391 = vmatprep.mubr.f32.mxu0 %v462
        %1392 = vmatmul.mubr.f32.gmra.mrb[0].mxu0 %v461
        %v1393 = vpop.f32.mrb[0].mxu0
        %v1394 = vadd.f32 %v1137, %v1393
        %v1395 = vpop.f32.mrb[0].mxu0
        %v1396 = vadd.f32 %v1139, %v1395
        %1397 = vmatprep.mubr.f32.mxu0 %v469
        %1398 = vmatmul.mubr.f32.gmra.mrb[0].mxu0 %v468
        %v1399 = vpop.f32.mrb[0].mxu0
        %v1400 = vadd.f32 %v1143, %v1399
        %v1401 = vpop.f32.mrb[0].mxu0
        %v1402 = vadd.f32 %v1145, %v1401
        %1403 = vmatprep.mubr.f32.mxu0 %v476
        %1404 = vmatmul.mubr.f32.gmra.mrb[0].mxu0 %v475
        %v1405 = vpop.f32.mrb[0].mxu0
        %v1406 = vadd.f32 %v1149, %v1405
        %v1407 = vpop.f32.mrb[0].mxu0
        %v1408 = vadd.f32 %v1151, %v1407
        %1409 = vmatprep.mubr.f32.mxu0 %v483
        %1410 = vmatmul.mubr.f32.gmra.mrb[0].mxu0 %v482
        %v1411 = vpop.f32.mrb[0].mxu0
        %v1412 = vadd.f32 %v1155, %v1411
        %v1413 = vpop.f32.mrb[0].mxu0
        %v1414 = vadd.f32 %v1157, %v1413
        %1415 = vmatprep.mubr.f32.mxu0 %v490
        %1416 = vmatmul.mubr.f32.gmra.mrb[0].mxu0 %v489
        %v1417 = vpop.f32.mrb[0].mxu0
        %v1418 = vadd.f32 %v1161, %v1417
        %v1419 = vpop.f32.mrb[0].mxu0
        %v1420 = vadd.f32 %v1163, %v1419
        %1421 = vdwg.mxu0
        %1422 = vmatprep.subr.mxu0 %v687
        %1423 = vmatpush1.msra.mxu0 %v686
        %1424 = vmatprep.subr.mxu0 %v690
        %1425 = vmatpush1.msra.mxu0 %v689
        %1426 = vmatprep.subr.mxu0 %v693
        %1427 = vmatpush1.msra.mxu0 %v692
        %1428 = vmatprep.subr.mxu0 %v696
        %1429 = vmatpush1.msra.mxu0 %v695
        %1430 = vmatprep.subr.mxu0 %v699
        %1431 = vmatpush1.msra.mxu0 %v698
        %1432 = vmatprep.subr.mxu0 %v702
        %1433 = vmatpush1.msra.mxu0 %v701
        %1434 = vmatprep.subr.mxu0 %v705
        %1435 = vmatpush1.msra.mxu0 %v704
        %1436 = vmatprep.subr.mxu0 %v708
        %1437 = vmatpush1.msra.mxu0 %v707
        %1438 = vmatprep.subr.mxu0 %v711
        %1439 = vmatpush1.msra.mxu0 %v710
        %1440 = vmatprep.subr.mxu0 %v714
        %1441 = vmatpush1.msra.mxu0 %v713
        %1442 = vmatprep.subr.mxu0 %v717
        %1443 = vmatpush1.msra.mxu0 %v716
        %1444 = vmatprep.subr.mxu0 %v720
        %1445 = vmatpush1.msra.mxu0 %v719
        %1446 = vmatprep.subr.mxu0 %v723
        %1447 = vmatpush1.msra.mxu0 %v722
        %1448 = vmatprep.subr.mxu0 %v726
        %1449 = vmatpush1.msra.mxu0 %v725
        %1450 = vmatprep.subr.mxu0 %v729
        %1451 = vmatpush1.msra.mxu0 %v728
        %1452 = vmatprep.subr.mxu0 %v732
        %1453 = vmatpush1.msra.mxu0 %v731
        %1454 = vmatprep.subr.mxu0 %v735
        %1455 = vmatpush1.msra.mxu0 %v734
        %1456 = vmatprep.subr.mxu0 %v738
        %1457 = vmatpush1.msra.mxu0 %v737
        %1458 = vmatprep.subr.mxu0 %v741
        %1459 = vmatpush1.msra.mxu0 %v740
        %1460 = vmatprep.subr.mxu0 %v744
        %1461 = vmatpush1.msra.mxu0 %v743
        %1462 = vmatprep.subr.mxu0 %v747
        %1463 = vmatpush1.msra.mxu0 %v746
        %1464 = vmatprep.subr.mxu0 %v750
        %1465 = vmatpush1.msra.mxu0 %v749
        %1466 = vmatprep.subr.mxu0 %v753
        %1467 = vmatpush1.msra.mxu0 %v752
        %1468 = vmatprep.subr.mxu0 %v756
        %1469 = vmatpush1.msra.mxu0 %v755
        %1470 = vmatprep.subr.mxu0 %v759
        %1471 = vmatpush1.msra.mxu0 %v758
        %1472 = vmatprep.subr.mxu0 %v762
        %1473 = vmatpush1.msra.mxu0 %v761
        %1474 = vmatprep.subr.mxu0 %v765
        %1475 = vmatpush1.msra.mxu0 %v764
        %1476 = vmatprep.subr.mxu0 %v768
        %1477 = vmatpush1.msra.mxu0 %v767
        %1478 = vmatprep.subr.mxu0 %v771
        %1479 = vmatpush1.msra.mxu0 %v770
        %1480 = vmatprep.subr.mxu0 %v774
        %1481 = vmatpush1.msra.mxu0 %v773
        %1482 = vmatprep.subr.mxu0 %v777
        %1483 = vmatpush1.msra.mxu0 %v776
        %1484 = vmatprep.subr.mxu0 %v780
        %1485 = vmatpush1.msra.mxu0 %v779
        %1486 = vmatprep.mubr.f32.mxu0 %v275
        %1487 = vmatmul.mubr.f32.gmra.mrb[0].mxu0 %v274
        %v1488 = vpop.f32.mrb[0].mxu0
        %v1489 = vadd.f32 %v1232, %v1488
        %v1490 = vpop.f32.mrb[0].mxu0
        %v1491 = vadd.f32 %v1234, %v1490
        %1492 = vmatprep.mubr.f32.mxu0 %v282
        %1493 = vmatmul.mubr.f32.gmra.mrb[0].mxu0 %v281
        %v1494 = vpop.f32.mrb[0].mxu0
        %v1495 = vadd.f32 %v1238, %v1494
        %v1496 = vpop.f32.mrb[0].mxu0
        %v1497 = vadd.f32 %v1240, %v1496
        %1498 = vmatprep.mubr.f32.mxu0 %v289
        %1499 = vmatmul.mubr.f32.gmra.mrb[0].mxu0 %v288
        %v1500 = vpop.f32.mrb[0].mxu0
        %v1501 = vadd.f32 %v1244, %v1500
        %v1502 = vpop.f32.mrb[0].mxu0
        %v1503 = vadd.f32 %v1246, %v1502
        %1504 = vmatprep.mubr.f32.mxu0 %v296
        %1505 = vmatmul.mubr.f32.gmra.mrb[0].mxu0 %v295
        %v1506 = vpop.f32.mrb[0].mxu0
        %v1507 = vadd.f32 %v1250, %v1506
        %v1508 = vpop.f32.mrb[0].mxu0
        %v1509 = vadd.f32 %v1252, %v1508
        %1510 = vmatprep.mubr.f32.mxu0 %v303
        %1511 = vmatmul.mubr.f32.gmra.mrb[0].mxu0 %v302
        %v1512 = vpop.f32.mrb[0].mxu0
        %v1513 = vadd.f32 %v1256, %v1512
        %v1514 = vpop.f32.mrb[0].mxu0
        %v1515 = vadd.f32 %v1258, %v1514
        %1516 = vmatprep.mubr.f32.mxu0 %v310
        %1517 = vmatmul.mubr.f32.gmra.mrb[0].mxu0 %v309
        %v1518 = vpop.f32.mrb[0].mxu0
        %v1519 = vadd.f32 %v1262, %v1518
        %v1520 = vpop.f32.mrb[0].mxu0
        %v1521 = vadd.f32 %v1264, %v1520
        %1522 = vmatprep.mubr.f32.mxu0 %v317
        %1523 = vmatmul.mubr.f32.gmra.mrb[0].mxu0 %v316
        %v1524 = vpop.f32.mrb[0].mxu0
        %v1525 = vadd.f32 %v1268, %v1524
        %v1526 = vpop.f32.mrb[0].mxu0
        %v1527 = vadd.f32 %v1270, %v1526
        %1528 = vmatprep.mubr.f32.mxu0 %v324
        %1529 = vmatmul.mubr.f32.gmra.mrb[0].mxu0 %v323
        %v1530 = vpop.f32.mrb[0].mxu0
        %v1531 = vadd.f32 %v1274, %v1530
        %v1532 = vpop.f32.mrb[0].mxu0
        %v1533 = vadd.f32 %v1276, %v1532
        %1534 = vmatprep.mubr.f32.mxu0 %v331
        %1535 = vmatmul.mubr.f32.gmra.mrb[0].mxu0 %v330
        %v1536 = vpop.f32.mrb[0].mxu0
        %v1537 = vadd.f32 %v1280, %v1536
        %v1538 = vpop.f32.mrb[0].mxu0
        %v1539 = vadd.f32 %v1282, %v1538
        %1540 = vmatprep.mubr.f32.mxu0 %v338
        %1541 = vmatmul.mubr.f32.gmra.mrb[0].mxu0 %v337
        %v1542 = vpop.f32.mrb[0].mxu0
        %v1543 = vadd.f32 %v1286, %v1542
        %v1544 = vpop.f32.mrb[0].mxu0
        %v1545 = vadd.f32 %v1288, %v1544
        %1546 = vmatprep.mubr.f32.mxu0 %v345
        %1547 = vmatmul.mubr.f32.gmra.mrb[0].mxu0 %v344
        %v1548 = vpop.f32.mrb[0].mxu0
        %v1549 = vadd.f32 %v1292, %v1548
        %v1550 = vpop.f32.mrb[0].mxu0
        %v1551 = vadd.f32 %v1294, %v1550
        %1552 = vmatprep.mubr.f32.mxu0 %v352
        %1553 = vmatmul.mubr.f32.gmra.mrb[0].mxu0 %v351
        %v1554 = vpop.f32.mrb[0].mxu0
        %v1555 = vadd.f32 %v1298, %v1554
        %v1556 = vpop.f32.mrb[0].mxu0
        %v1557 = vadd.f32 %v1300, %v1556
        %1558 = vmatprep.mubr.f32.mxu0 %v359
        %1559 = vmatmul.mubr.f32.gmra.mrb[0].mxu0 %v358
        %v1560 = vpop.f32.mrb[0].mxu0
        %v1561 = vadd.f32 %v1304, %v1560
        %v1562 = vpop.f32.mrb[0].mxu0
        %v1563 = vadd.f32 %v1306, %v1562
        %1564 = vmatprep.mubr.f32.mxu0 %v366
        %1565 = vmatmul.mubr.f32.gmra.mrb[0].mxu0 %v365
        %v1566 = vpop.f32.mrb[0].mxu0
        %v1567 = vadd.f32 %v1310, %v1566
        %v1568 = vpop.f32.mrb[0].mxu0
        %v1569 = vadd.f32 %v1312, %v1568
        %1570 = vmatprep.mubr.f32.mxu0 %v373
        %1571 = vmatmul.mubr.f32.gmra.mrb[0].mxu0 %v372
        %v1572 = vpop.f32.mrb[0].mxu0
        %v1573 = vadd.f32 %v1316, %v1572
        %v1574 = vpop.f32.mrb[0].mxu0
        %v1575 = vadd.f32 %v1318, %v1574
        %1576 = vmatprep.mubr.f32.mxu0 %v380
        %1577 = vmatmul.mubr.f32.gmra.mrb[0].mxu0 %v379
        %v1578 = vpop.f32.mrb[0].mxu0
        %v1579 = vadd.f32 %v1322, %v1578
        %v1580 = vpop.f32.mrb[0].mxu0
        %v1581 = vadd.f32 %v1324, %v1580
        %1582 = vmatprep.mubr.f32.mxu0 %v387
        %1583 = vmatmul.mubr.f32.gmra.mrb[0].mxu0 %v386
        %v1584 = vpop.f32.mrb[0].mxu0
        %v1585 = vadd.f32 %v1328, %v1584
        %v1586 = vpop.f32.mrb[0].mxu0
        %v1587 = vadd.f32 %v1330, %v1586
        %1588 = vmatprep.mubr.f32.mxu0 %v394
        %1589 = vmatmul.mubr.f32.gmra.mrb[0].mxu0 %v393
        %v1590 = vpop.f32.mrb[0].mxu0
        %v1591 = vadd.f32 %v1334, %v1590
        %v1592 = vpop.f32.mrb[0].mxu0
        %v1593 = vadd.f32 %v1336, %v1592
        %1594 = vmatprep.mubr.f32.mxu0 %v401
        %1595 = vmatmul.mubr.f32.gmra.mrb[0].mxu0 %v400
        %v1596 = vpop.f32.mrb[0].mxu0
        %v1597 = vadd.f32 %v1340, %v1596
        %v1598 = vpop.f32.mrb[0].mxu0
        %v1599 = vadd.f32 %v1342, %v1598
        %1600 = vmatprep.mubr.f32.mxu0 %v408
        %1601 = vmatmul.mubr.f32.gmra.mrb[0].mxu0 %v407
        %v1602 = vpop.f32.mrb[0].mxu0
        %v1603 = vadd.f32 %v1346, %v1602
        %v1604 = vpop.f32.mrb[0].mxu0
        %v1605 = vadd.f32 %v1348, %v1604
        %1606 = vmatprep.mubr.f32.mxu0 %v415
        %1607 = vmatmul.mubr.f32.gmra.mrb[0].mxu0 %v414
        %v1608 = vpop.f32.mrb[0].mxu0
        %v1609 = vadd.f32 %v1352, %v1608
        %v1610 = vpop.f32.mrb[0].mxu0
        %v1611 = vadd.f32 %v1354, %v1610
        %1612 = vmatprep.mubr.f32.mxu0 %v422
        %1613 = vmatmul.mubr.f32.gmra.mrb[0].mxu0 %v421
        %v1614 = vpop.f32.mrb[0].mxu0
        %v1615 = vadd.f32 %v1358, %v1614
        %v1616 = vpop.f32.mrb[0].mxu0
        %v1617 = vadd.f32 %v1360, %v1616
        %1618 = vmatprep.mubr.f32.mxu0 %v429
        %1619 = vmatmul.mubr.f32.gmra.mrb[0].mxu0 %v428
        %v1620 = vpop.f32.mrb[0].mxu0
        %v1621 = vadd.f32 %v1364, %v1620
        %v1622 = vpop.f32.mrb[0].mxu0
        %v1623 = vadd.f32 %v1366, %v1622
        %1624 = vmatprep.mubr.f32.mxu0 %v436
        %1625 = vmatmul.mubr.f32.gmra.mrb[0].mxu0 %v435
        %v1626 = vpop.f32.mrb[0].mxu0
        %v1627 = vadd.f32 %v1370, %v1626
        %v1628 = vpop.f32.mrb[0].mxu0
        %v1629 = vadd.f32 %v1372, %v1628
        %1630 = vmatprep.mubr.f32.mxu0 %v443
        %1631 = vmatmul.mubr.f32.gmra.mrb[0].mxu0 %v442
        %v1632 = vpop.f32.mrb[0].mxu0
        %v1633 = vadd.f32 %v1376, %v1632
        %v1634 = vpop.f32.mrb[0].mxu0
        %v1635 = vadd.f32 %v1378, %v1634
        %1636 = vmatprep.mubr.f32.mxu0 %v450
        %1637 = vmatmul.mubr.f32.gmra.mrb[0].mxu0 %v449
        %v1638 = vpop.f32.mrb[0].mxu0
        %v1639 = vadd.f32 %v1382, %v1638
        %v1640 = vpop.f32.mrb[0].mxu0
        %v1641 = vadd.f32 %v1384, %v1640
        %1642 = vmatprep.mubr.f32.mxu0 %v457
        %1643 = vmatmul.mubr.f32.gmra.mrb[0].mxu0 %v456
        %v1644 = vpop.f32.mrb[0].mxu0
        %v1645 = vadd.f32 %v1388, %v1644
        %v1646 = vpop.f32.mrb[0].mxu0
        %v1647 = vadd.f32 %v1390, %v1646
        %1648 = vmatprep.mubr.f32.mxu0 %v464
        %1649 = vmatmul.mubr.f32.gmra.mrb[0].mxu0 %v463
        %v1650 = vpop.f32.mrb[0].mxu0
        %v1651 = vadd.f32 %v1394, %v1650
        %v1652 = vpop.f32.mrb[0].mxu0
        %v1653 = vadd.f32 %v1396, %v1652
        %1654 = vmatprep.mubr.f32.mxu0 %v471
        %1655 = vmatmul.mubr.f32.gmra.mrb[0].mxu0 %v470
        %v1656 = vpop.f32.mrb[0].mxu0
        %v1657 = vadd.f32 %v1400, %v1656
        %v1658 = vpop.f32.mrb[0].mxu0
        %v1659 = vadd.f32 %v1402, %v1658
        %1660 = vmatprep.mubr.f32.mxu0 %v478
        %1661 = vmatmul.mubr.f32.gmra.mrb[0].mxu0 %v477
        %v1662 = vpop.f32.mrb[0].mxu0
        %v1663 = vadd.f32 %v1406, %v1662
        %v1664 = vpop.f32.mrb[0].mxu0
        %v1665 = vadd.f32 %v1408, %v1664
        %1666 = vmatprep.mubr.f32.mxu0 %v485
        %1667 = vmatmul.mubr.f32.gmra.mrb[0].mxu0 %v484
        %v1668 = vpop.f32.mrb[0].mxu0
        %v1669 = vadd.f32 %v1412, %v1668
        %v1670 = vpop.f32.mrb[0].mxu0
        %v1671 = vadd.f32 %v1414, %v1670
        %1672 = vmatprep.mubr.f32.mxu0 %v492
        %1673 = vmatmul.mubr.f32.gmra.mrb[0].mxu0 %v491
        %v1674 = vpop.f32.mrb[0].mxu0
        %v1675 = vadd.f32 %v1418, %v1674
        %v1676 = vpop.f32.mrb[0].mxu0
        %v1677 = vadd.f32 %v1420, %v1676
        %1678 = vdwg.mxu0
        %1679 = vmatprep.subr.mxu0 %v783
        %1680 = vmatpush1.msra.mxu0 %v782
        %1681 = vmatprep.subr.mxu0 %v786
        %1682 = vmatpush1.msra.mxu0 %v785
        %1683 = vmatprep.subr.mxu0 %v789
        %1684 = vmatpush1.msra.mxu0 %v788
        %1685 = vmatprep.subr.mxu0 %v792
        %1686 = vmatpush1.msra.mxu0 %v791
        %1687 = vmatprep.subr.mxu0 0.0
        %1688 = vmatpush1.msra.mxu0 0.0
        %1689 = vmatprep.subr.mxu0 0.0
        %1690 = vmatpush1.msra.mxu0 0.0
        %1691 = vmatprep.subr.mxu0 0.0
        %1692 = vmatpush1.msra.mxu0 0.0
        %1693 = vmatprep.subr.mxu0 0.0
        %1694 = vmatpush1.msra.mxu0 0.0
        %1695 = vmatprep.subr.mxu0 0.0
        %1696 = vmatpush1.msra.mxu0 0.0
        %1697 = vmatprep.subr.mxu0 0.0
        %1698 = vmatpush1.msra.mxu0 0.0
        %1699 = vmatprep.subr.mxu0 0.0
        %1700 = vmatpush1.msra.mxu0 0.0
        %1701 = vmatprep.subr.mxu0 0.0
        %1702 = vmatpush1.msra.mxu0 0.0
        %1703 = vmatprep.subr.mxu0 0.0
        %1704 = vmatpush1.msra.mxu0 0.0
        %1705 = vmatprep.subr.mxu0 0.0
        %1706 = vmatpush1.msra.mxu0 0.0
        %1707 = vmatprep.subr.mxu0 0.0
        %1708 = vmatpush1.msra.mxu0 0.0
        %1709 = vmatprep.subr.mxu0 0.0
        %1710 = vmatpush1.msra.mxu0 0.0
        %1711 = vmatprep.subr.mxu0 0.0
        %1712 = vmatpush1.msra.mxu0 0.0
        %1713 = vmatprep.subr.mxu0 0.0
        %1714 = vmatpush1.msra.mxu0 0.0
        %1715 = vmatprep.subr.mxu0 0.0
        %1716 = vmatpush1.msra.mxu0 0.0
        %1717 = vmatprep.subr.mxu0 0.0
        %1718 = vmatpush1.msra.mxu0 0.0
        %1719 = vmatprep.subr.mxu0 0.0
        %1720 = vmatpush1.msra.mxu0 0.0
        %1721 = vmatprep.subr.mxu0 0.0
        %1722 = vmatpush1.msra.mxu0 0.0
        %1723 = vmatprep.subr.mxu0 0.0
        %1724 = vmatpush1.msra.mxu0 0.0
        %1725 = vmatprep.subr.mxu0 0.0
        %1726 = vmatpush1.msra.mxu0 0.0
        %1727 = vmatprep.subr.mxu0 0.0
        %1728 = vmatpush1.msra.mxu0 0.0
        %1729 = vmatprep.subr.mxu0 0.0
        %1730 = vmatpush1.msra.mxu0 0.0
        %1731 = vmatprep.subr.mxu0 0.0
        %1732 = vmatpush1.msra.mxu0 0.0
        %1733 = vmatprep.subr.mxu0 0.0
        %1734 = vmatpush1.msra.mxu0 0.0
        %1735 = vmatprep.subr.mxu0 0.0
        %1736 = vmatpush1.msra.mxu0 0.0
        %1737 = vmatprep.subr.mxu0 0.0
        %1738 = vmatpush1.msra.mxu0 0.0
        %1739 = vmatprep.subr.mxu0 0.0
        %1740 = vmatpush1.msra.mxu0 0.0
        %1741 = vmatprep.subr.mxu0 0.0
        %1742 = vmatpush1.msra.mxu0 0.0
        %1743 = vmatprep.mubr.f32.mxu0 0.0
        %1744 = vmatmul.mubr.f32.gmra.mrb[0].mxu0 %v813
        %v1745 = vpop.f32.mrb[0].mxu0
        %v1746 = vadd.f32 %v1489, %v1745
        %v1747 = vpop.f32.mrb[0].mxu0
        %v1748 = vadd.f32 %v1491, %v1747
        %1749 = vmatprep.mubr.f32.mxu0 0.0
        %1750 = vmatmul.mubr.f32.gmra.mrb[0].mxu0 %v816
        %v1751 = vpop.f32.mrb[0].mxu0
        %v1752 = vadd.f32 %v1495, %v1751
        %v1753 = vpop.f32.mrb[0].mxu0
        %v1754 = vadd.f32 %v1497, %v1753
        %1755 = vmatprep.mubr.f32.mxu0 0.0
        %1756 = vmatmul.mubr.f32.gmra.mrb[0].mxu0 %v819
        %v1757 = vpop.f32.mrb[0].mxu0
        %v1758 = vadd.f32 %v1501, %v1757
        %v1759 = vpop.f32.mrb[0].mxu0
        %v1760 = vadd.f32 %v1503, %v1759
        %1761 = vmatprep.mubr.f32.mxu0 0.0
        %1762 = vmatmul.mubr.f32.gmra.mrb[0].mxu0 %v822
        %v1763 = vpop.f32.mrb[0].mxu0
        %v1764 = vadd.f32 %v1507, %v1763
        %v1765 = vpop.f32.mrb[0].mxu0
        %v1766 = vadd.f32 %v1509, %v1765
        %1767 = vmatprep.mubr.f32.mxu0 0.0
        %1768 = vmatmul.mubr.f32.gmra.mrb[0].mxu0 %v825
        %v1769 = vpop.f32.mrb[0].mxu0
        %v1770 = vadd.f32 %v1513, %v1769
        %v1771 = vpop.f32.mrb[0].mxu0
        %v1772 = vadd.f32 %v1515, %v1771
        %1773 = vmatprep.mubr.f32.mxu0 0.0
        %1774 = vmatmul.mubr.f32.gmra.mrb[0].mxu0 %v828
        %v1775 = vpop.f32.mrb[0].mxu0
        %v1776 = vadd.f32 %v1519, %v1775
        %v1777 = vpop.f32.mrb[0].mxu0
        %v1778 = vadd.f32 %v1521, %v1777
        %1779 = vmatprep.mubr.f32.mxu0 0.0
        %1780 = vmatmul.mubr.f32.gmra.mrb[0].mxu0 %v831
        %v1781 = vpop.f32.mrb[0].mxu0
        %v1782 = vadd.f32 %v1525, %v1781
        %v1783 = vpop.f32.mrb[0].mxu0
        %v1784 = vadd.f32 %v1527, %v1783
        %1785 = vmatprep.mubr.f32.mxu0 0.0
        %1786 = vmatmul.mubr.f32.gmra.mrb[0].mxu0 %v834
        %v1787 = vpop.f32.mrb[0].mxu0
        %v1788 = vadd.f32 %v1531, %v1787
        %v1789 = vpop.f32.mrb[0].mxu0
        %v1790 = vadd.f32 %v1533, %v1789
        %1791 = vmatprep.mubr.f32.mxu0 0.0
        %1792 = vmatmul.mubr.f32.gmra.mrb[0].mxu0 %v837
        %v1793 = vpop.f32.mrb[0].mxu0
        %v1794 = vadd.f32 %v1537, %v1793
        %v1795 = vpop.f32.mrb[0].mxu0
        %v1796 = vadd.f32 %v1539, %v1795
        %1797 = vmatprep.mubr.f32.mxu0 0.0
        %1798 = vmatmul.mubr.f32.gmra.mrb[0].mxu0 %v840
        %v1799 = vpop.f32.mrb[0].mxu0
        %v1800 = vadd.f32 %v1543, %v1799
        %v1801 = vpop.f32.mrb[0].mxu0
        %v1802 = vadd.f32 %v1545, %v1801
        %1803 = vmatprep.mubr.f32.mxu0 0.0
        %1804 = vmatmul.mubr.f32.gmra.mrb[0].mxu0 %v843
        %v1805 = vpop.f32.mrb[0].mxu0
        %v1806 = vadd.f32 %v1549, %v1805
        %v1807 = vpop.f32.mrb[0].mxu0
        %v1808 = vadd.f32 %v1551, %v1807
        %1809 = vmatprep.mubr.f32.mxu0 0.0
        %1810 = vmatmul.mubr.f32.gmra.mrb[0].mxu0 %v846
        %v1811 = vpop.f32.mrb[0].mxu0
        %v1812 = vadd.f32 %v1555, %v1811
        %v1813 = vpop.f32.mrb[0].mxu0
        %v1814 = vadd.f32 %v1557, %v1813
        %1815 = vmatprep.mubr.f32.mxu0 0.0
        %1816 = vmatmul.mubr.f32.gmra.mrb[0].mxu0 %v849
        %v1817 = vpop.f32.mrb[0].mxu0
        %v1818 = vadd.f32 %v1561, %v1817
        %v1819 = vpop.f32.mrb[0].mxu0
        %v1820 = vadd.f32 %v1563, %v1819
        %1821 = vmatprep.mubr.f32.mxu0 0.0
        %1822 = vmatmul.mubr.f32.gmra.mrb[0].mxu0 %v852
        %v1823 = vpop.f32.mrb[0].mxu0
        %v1824 = vadd.f32 %v1567, %v1823
        %v1825 = vpop.f32.mrb[0].mxu0
        %v1826 = vadd.f32 %v1569, %v1825
        %1827 = vmatprep.mubr.f32.mxu0 0.0
        %1828 = vmatmul.mubr.f32.gmra.mrb[0].mxu0 %v855
        %v1829 = vpop.f32.mrb[0].mxu0
        %v1830 = vadd.f32 %v1573, %v1829
        %v1831 = vpop.f32.mrb[0].mxu0
        %v1832 = vadd.f32 %v1575, %v1831
        %1833 = vmatprep.mubr.f32.mxu0 0.0
        %1834 = vmatmul.mubr.f32.gmra.mrb[0].mxu0 %v858
        %v1835 = vpop.f32.mrb[0].mxu0
        %v1836 = vadd.f32 %v1579, %v1835
        %v1837 = vpop.f32.mrb[0].mxu0
        %v1838 = vadd.f32 %v1581, %v1837
        %1839 = vmatprep.mubr.f32.mxu0 0.0
        %1840 = vmatmul.mubr.f32.gmra.mrb[0].mxu0 %v861
        %v1841 = vpop.f32.mrb[0].mxu0
        %v1842 = vadd.f32 %v1585, %v1841
        %v1843 = vpop.f32.mrb[0].mxu0
        %v1844 = vadd.f32 %v1587, %v1843
        %1845 = vmatprep.mubr.f32.mxu0 0.0
        %1846 = vmatmul.mubr.f32.gmra.mrb[0].mxu0 %v864
        %v1847 = vpop.f32.mrb[0].mxu0
        %v1848 = vadd.f32 %v1591, %v1847
        %v1849 = vpop.f32.mrb[0].mxu0
        %v1850 = vadd.f32 %v1593, %v1849
        %1851 = vmatprep.mubr.f32.mxu0 0.0
        %1852 = vmatmul.mubr.f32.gmra.mrb[0].mxu0 %v867
        %v1853 = vpop.f32.mrb[0].mxu0
        %v1854 = vadd.f32 %v1597, %v1853
        %v1855 = vpop.f32.mrb[0].mxu0
        %v1856 = vadd.f32 %v1599, %v1855
        %1857 = vmatprep.mubr.f32.mxu0 0.0
        %1858 = vmatmul.mubr.f32.gmra.mrb[0].mxu0 %v870
        %v1859 = vpop.f32.mrb[0].mxu0
        %v1860 = vadd.f32 %v1603, %v1859
        %v1861 = vpop.f32.mrb[0].mxu0
        %v1862 = vadd.f32 %v1605, %v1861
        %1863 = vmatprep.mubr.f32.mxu0 0.0
        %1864 = vmatmul.mubr.f32.gmra.mrb[0].mxu0 %v873
        %v1865 = vpop.f32.mrb[0].mxu0
        %v1866 = vadd.f32 %v1609, %v1865
        %v1867 = vpop.f32.mrb[0].mxu0
        %v1868 = vadd.f32 %v1611, %v1867
        %1869 = vmatprep.mubr.f32.mxu0 0.0
        %1870 = vmatmul.mubr.f32.gmra.mrb[0].mxu0 %v876
        %v1871 = vpop.f32.mrb[0].mxu0
        %v1872 = vadd.f32 %v1615, %v1871
        %v1873 = vpop.f32.mrb[0].mxu0
        %v1874 = vadd.f32 %v1617, %v1873
        %1875 = vmatprep.mubr.f32.mxu0 0.0
        %1876 = vmatmul.mubr.f32.gmra.mrb[0].mxu0 %v879
        %v1877 = vpop.f32.mrb[0].mxu0
        %v1878 = vadd.f32 %v1621, %v1877
        %v1879 = vpop.f32.mrb[0].mxu0
        %v1880 = vadd.f32 %v1623, %v1879
        %1881 = vmatprep.mubr.f32.mxu0 0.0
        %1882 = vmatmul.mubr.f32.gmra.mrb[0].mxu0 %v882
        %v1883 = vpop.f32.mrb[0].mxu0
        %v1884 = vadd.f32 %v1627, %v1883
        %v1885 = vpop.f32.mrb[0].mxu0
        %v1886 = vadd.f32 %v1629, %v1885
        %1887 = vmatprep.mubr.f32.mxu0 0.0
        %1888 = vmatmul.mubr.f32.gmra.mrb[0].mxu0 %v885
        %v1889 = vpop.f32.mrb[0].mxu0
        %v1890 = vadd.f32 %v1633, %v1889
        %v1891 = vpop.f32.mrb[0].mxu0
        %v1892 = vadd.f32 %v1635, %v1891
        %1893 = vmatprep.mubr.f32.mxu0 0.0
        %1894 = vmatmul.mubr.f32.gmra.mrb[0].mxu0 %v888
        %v1895 = vpop.f32.mrb[0].mxu0
        %v1896 = vadd.f32 %v1639, %v1895
        %v1897 = vpop.f32.mrb[0].mxu0
        %v1898 = vadd.f32 %v1641, %v1897
        %1899 = vmatprep.mubr.f32.mxu0 0.0
        %1900 = vmatmul.mubr.f32.gmra.mrb[0].mxu0 %v891
        %v1901 = vpop.f32.mrb[0].mxu0
        %v1902 = vadd.f32 %v1645, %v1901
        %v1903 = vpop.f32.mrb[0].mxu0
        %v1904 = vadd.f32 %v1647, %v1903
        %1905 = vmatprep.mubr.f32.mxu0 0.0
        %1906 = vmatmul.mubr.f32.gmra.mrb[0].mxu0 %v894
        %v1907 = vpop.f32.mrb[0].mxu0
        %v1908 = vadd.f32 %v1651, %v1907
        %v1909 = vpop.f32.mrb[0].mxu0
        %v1910 = vadd.f32 %v1653, %v1909
        %1911 = vmatprep.mubr.f32.mxu0 0.0
        %1912 = vmatmul.mubr.f32.gmra.mrb[0].mxu0 %v897
        %v1913 = vpop.f32.mrb[0].mxu0
        %v1914 = vadd.f32 %v1657, %v1913
        %v1915 = vpop.f32.mrb[0].mxu0
        %v1916 = vadd.f32 %v1659, %v1915
        %1917 = vmatprep.mubr.f32.mxu0 0.0
        %1918 = vmatmul.mubr.f32.gmra.mrb[0].mxu0 %v900
        %v1919 = vpop.f32.mrb[0].mxu0
        %v1920 = vadd.f32 %v1663, %v1919
        %v1921 = vpop.f32.mrb[0].mxu0
        %v1922 = vadd.f32 %v1665, %v1921
        %1923 = vmatprep.mubr.f32.mxu0 0.0
        %1924 = vmatmul.mubr.f32.gmra.mrb[0].mxu0 %v903
        %v1925 = vpop.f32.mrb[0].mxu0
        %v1926 = vadd.f32 %v1669, %v1925
        %v1927 = vpop.f32.mrb[0].mxu0
        %v1928 = vadd.f32 %v1671, %v1927
        %1929 = vmatprep.mubr.f32.mxu0 0.0
        %1930 = vmatmul.mubr.f32.gmra.mrb[0].mxu0 %v906
        %v1931 = vpop.f32.mrb[0].mxu0
        %v1932 = vadd.f32 %v1675, %v1931
        %v1933 = vpop.f32.mrb[0].mxu0
        %v1934 = vadd.f32 %v1677, %v1933
        %1935 = vdwg.mxu0
        %1936 = vmatprep.subr.mxu0 0.0
        %1937 = vmatpush1.msra.mxu0 %v496
        %1938 = vmatprep.subr.mxu0 0.0
        %1939 = vmatpush1.msra.mxu0 %v499
        %1940 = vmatprep.subr.mxu0 0.0
        %1941 = vmatpush1.msra.mxu0 %v502
        %1942 = vmatprep.subr.mxu0 0.0
        %1943 = vmatpush1.msra.mxu0 %v505
        %1944 = vmatprep.subr.mxu0 0.0
        %1945 = vmatpush1.msra.mxu0 %v508
        %1946 = vmatprep.subr.mxu0 0.0
        %1947 = vmatpush1.msra.mxu0 %v511
        %1948 = vmatprep.subr.mxu0 0.0
        %1949 = vmatpush1.msra.mxu0 %v514
        %1950 = vmatprep.subr.mxu0 0.0
        %1951 = vmatpush1.msra.mxu0 %v517
        %1952 = vmatprep.subr.mxu0 0.0
        %1953 = vmatpush1.msra.mxu0 %v520
        %1954 = vmatprep.subr.mxu0 0.0
        %1955 = vmatpush1.msra.mxu0 %v523
        %1956 = vmatprep.subr.mxu0 0.0
        %1957 = vmatpush1.msra.mxu0 %v526
        %1958 = vmatprep.subr.mxu0 0.0
        %1959 = vmatpush1.msra.mxu0 %v529
        %1960 = vmatprep.subr.mxu0 0.0
        %1961 = vmatpush1.msra.mxu0 %v532
        %1962 = vmatprep.subr.mxu0 0.0
        %1963 = vmatpush1.msra.mxu0 %v535
        %1964 = vmatprep.subr.mxu0 0.0
        %1965 = vmatpush1.msra.mxu0 %v538
        %1966 = vmatprep.subr.mxu0 0.0
        %1967 = vmatpush1.msra.mxu0 %v541
        %1968 = vmatprep.subr.mxu0 0.0
        %1969 = vmatpush1.msra.mxu0 %v544
        %1970 = vmatprep.subr.mxu0 0.0
        %1971 = vmatpush1.msra.mxu0 %v547
        %1972 = vmatprep.subr.mxu0 0.0
        %1973 = vmatpush1.msra.mxu0 %v550
        %1974 = vmatprep.subr.mxu0 0.0
        %1975 = vmatpush1.msra.mxu0 %v553
        %1976 = vmatprep.subr.mxu0 0.0
        %1977 = vmatpush1.msra.mxu0 %v556
        %1978 = vmatprep.subr.mxu0 0.0
        %1979 = vmatpush1.msra.mxu0 %v559
        %1980 = vmatprep.subr.mxu0 0.0
        %1981 = vmatpush1.msra.mxu0 %v562
        %1982 = vmatprep.subr.mxu0 0.0
        %1983 = vmatpush1.msra.mxu0 %v565
        %1984 = vmatprep.subr.mxu0 0.0
        %1985 = vmatpush1.msra.mxu0 %v568
        %1986 = vmatprep.subr.mxu0 0.0
        %1987 = vmatpush1.msra.mxu0 %v571
        %1988 = vmatprep.subr.mxu0 0.0
        %1989 = vmatpush1.msra.mxu0 %v574
        %1990 = vmatprep.subr.mxu0 0.0
        %1991 = vmatpush1.msra.mxu0 %v577
        %1992 = vmatprep.subr.mxu0 0.0
        %1993 = vmatpush1.msra.mxu0 %v580
        %1994 = vmatprep.subr.mxu0 0.0
        %1995 = vmatpush1.msra.mxu0 %v583
        %1996 = vmatprep.subr.mxu0 0.0
        %1997 = vmatpush1.msra.mxu0 %v586
        %1998 = vmatprep.subr.mxu0 0.0
        %1999 = vmatpush1.msra.mxu0 %v589
        %2000 = vmatprep.mubr.f32.mxu0 %v271
        %2001 = vmatmul.mubr.f32.gmra.mrb[0].mxu0 %v270
        %v2002 = vpop.f32.mrb[0].mxu0
        %v2003 = vadd.f32 %v807, %v2002
        %v2004 = vpop.f32.mrb[0].mxu0
        %2005 = vmatprep.mubr.f32.mxu0 %v278
        %2006 = vmatmul.mubr.f32.gmra.mrb[0].mxu0 %v277
        %v2007 = vpop.f32.mrb[0].mxu0
        %v2008 = vadd.f32 %v807, %v2007
        %v2009 = vpop.f32.mrb[0].mxu0
        %2010 = vmatprep.mubr.f32.mxu0 %v285
        %2011 = vmatmul.mubr.f32.gmra.mrb[0].mxu0 %v284
        %v2012 = vpop.f32.mrb[0].mxu0
        %v2013 = vadd.f32 %v807, %v2012
        %v2014 = vpop.f32.mrb[0].mxu0
        %2015 = vmatprep.mubr.f32.mxu0 %v292
        %2016 = vmatmul.mubr.f32.gmra.mrb[0].mxu0 %v291
        %v2017 = vpop.f32.mrb[0].mxu0
        %v2018 = vadd.f32 %v807, %v2017
        %v2019 = vpop.f32.mrb[0].mxu0
        %2020 = vmatprep.mubr.f32.mxu0 %v299
        %2021 = vmatmul.mubr.f32.gmra.mrb[0].mxu0 %v298
        %v2022 = vpop.f32.mrb[0].mxu0
        %v2023 = vadd.f32 %v807, %v2022
        %v2024 = vpop.f32.mrb[0].mxu0
        %2025 = vmatprep.mubr.f32.mxu0 %v306
        %2026 = vmatmul.mubr.f32.gmra.mrb[0].mxu0 %v305
        %v2027 = vpop.f32.mrb[0].mxu0
        %v2028 = vadd.f32 %v807, %v2027
        %v2029 = vpop.f32.mrb[0].mxu0
        %2030 = vmatprep.mubr.f32.mxu0 %v313
        %2031 = vmatmul.mubr.f32.gmra.mrb[0].mxu0 %v312
        %v2032 = vpop.f32.mrb[0].mxu0
        %v2033 = vadd.f32 %v807, %v2032
        %v2034 = vpop.f32.mrb[0].mxu0
        %2035 = vmatprep.mubr.f32.mxu0 %v320
        %2036 = vmatmul.mubr.f32.gmra.mrb[0].mxu0 %v319
        %v2037 = vpop.f32.mrb[0].mxu0
        %v2038 = vadd.f32 %v807, %v2037
        %v2039 = vpop.f32.mrb[0].mxu0
        %2040 = vmatprep.mubr.f32.mxu0 %v327
        %2041 = vmatmul.mubr.f32.gmra.mrb[0].mxu0 %v326
        %v2042 = vpop.f32.mrb[0].mxu0
        %v2043 = vadd.f32 %v807, %v2042
        %v2044 = vpop.f32.mrb[0].mxu0
        %2045 = vmatprep.mubr.f32.mxu0 %v334
        %2046 = vmatmul.mubr.f32.gmra.mrb[0].mxu0 %v333
        %v2047 = vpop.f32.mrb[0].mxu0
        %v2048 = vadd.f32 %v807, %v2047
        %v2049 = vpop.f32.mrb[0].mxu0
        %2050 = vmatprep.mubr.f32.mxu0 %v341
        %2051 = vmatmul.mubr.f32.gmra.mrb[0].mxu0 %v340
        %v2052 = vpop.f32.mrb[0].mxu0
        %v2053 = vadd.f32 %v807, %v2052
        %v2054 = vpop.f32.mrb[0].mxu0
        %2055 = vmatprep.mubr.f32.mxu0 %v348
        %2056 = vmatmul.mubr.f32.gmra.mrb[0].mxu0 %v347
        %v2057 = vpop.f32.mrb[0].mxu0
        %v2058 = vadd.f32 %v807, %v2057
        %v2059 = vpop.f32.mrb[0].mxu0
        %2060 = vmatprep.mubr.f32.mxu0 %v355
        %2061 = vmatmul.mubr.f32.gmra.mrb[0].mxu0 %v354
        %v2062 = vpop.f32.mrb[0].mxu0
        %v2063 = vadd.f32 %v807, %v2062
        %v2064 = vpop.f32.mrb[0].mxu0
        %2065 = vmatprep.mubr.f32.mxu0 %v362
        %2066 = vmatmul.mubr.f32.gmra.mrb[0].mxu0 %v361
        %v2067 = vpop.f32.mrb[0].mxu0
        %v2068 = vadd.f32 %v807, %v2067
        %v2069 = vpop.f32.mrb[0].mxu0
        %2070 = vmatprep.mubr.f32.mxu0 %v369
        %2071 = vmatmul.mubr.f32.gmra.mrb[0].mxu0 %v368
        %v2072 = vpop.f32.mrb[0].mxu0
        %v2073 = vadd.f32 %v807, %v2072
        %v2074 = vpop.f32.mrb[0].mxu0
        %2075 = vmatprep.mubr.f32.mxu0 %v376
        %2076 = vmatmul.mubr.f32.gmra.mrb[0].mxu0 %v375
        %v2077 = vpop.f32.mrb[0].mxu0
        %v2078 = vadd.f32 %v807, %v2077
        %v2079 = vpop.f32.mrb[0].mxu0
        %2080 = vmatprep.mubr.f32.mxu0 %v383
        %2081 = vmatmul.mubr.f32.gmra.mrb[0].mxu0 %v382
        %v2082 = vpop.f32.mrb[0].mxu0
        %v2083 = vadd.f32 %v807, %v2082
        %v2084 = vpop.f32.mrb[0].mxu0
        %2085 = vmatprep.mubr.f32.mxu0 %v390
        %2086 = vmatmul.mubr.f32.gmra.mrb[0].mxu0 %v389
        %v2087 = vpop.f32.mrb[0].mxu0
        %v2088 = vadd.f32 %v807, %v2087
        %v2089 = vpop.f32.mrb[0].mxu0
        %2090 = vmatprep.mubr.f32.mxu0 %v397
        %2091 = vmatmul.mubr.f32.gmra.mrb[0].mxu0 %v396
        %v2092 = vpop.f32.mrb[0].mxu0
        %v2093 = vadd.f32 %v807, %v2092
        %v2094 = vpop.f32.mrb[0].mxu0
        %2095 = vmatprep.mubr.f32.mxu0 %v404
        %2096 = vmatmul.mubr.f32.gmra.mrb[0].mxu0 %v403
        %v2097 = vpop.f32.mrb[0].mxu0
        %v2098 = vadd.f32 %v807, %v2097
        %v2099 = vpop.f32.mrb[0].mxu0
        %2100 = vmatprep.mubr.f32.mxu0 %v411
        %2101 = vmatmul.mubr.f32.gmra.mrb[0].mxu0 %v410
        %v2102 = vpop.f32.mrb[0].mxu0
        %v2103 = vadd.f32 %v807, %v2102
        %v2104 = vpop.f32.mrb[0].mxu0
        %2105 = vmatprep.mubr.f32.mxu0 %v418
        %2106 = vmatmul.mubr.f32.gmra.mrb[0].mxu0 %v417
        %v2107 = vpop.f32.mrb[0].mxu0
        %v2108 = vadd.f32 %v807, %v2107
        %v2109 = vpop.f32.mrb[0].mxu0
        %2110 = vmatprep.mubr.f32.mxu0 %v425
        %2111 = vmatmul.mubr.f32.gmra.mrb[0].mxu0 %v424
        %v2112 = vpop.f32.mrb[0].mxu0
        %v2113 = vadd.f32 %v807, %v2112
        %v2114 = vpop.f32.mrb[0].mxu0
        %2115 = vmatprep.mubr.f32.mxu0 %v432
        %2116 = vmatmul.mubr.f32.gmra.mrb[0].mxu0 %v431
        %v2117 = vpop.f32.mrb[0].mxu0
        %v2118 = vadd.f32 %v807, %v2117
        %v2119 = vpop.f32.mrb[0].mxu0
        %2120 = vmatprep.mubr.f32.mxu0 %v439
        %2121 = vmatmul.mubr.f32.gmra.mrb[0].mxu0 %v438
        %v2122 = vpop.f32.mrb[0].mxu0
        %v2123 = vadd.f32 %v807, %v2122
        %v2124 = vpop.f32.mrb[0].mxu0
        %2125 = vmatprep.mubr.f32.mxu0 %v446
        %2126 = vmatmul.mubr.f32.gmra.mrb[0].mxu0 %v445
        %v2127 = vpop.f32.mrb[0].mxu0
        %v2128 = vadd.f32 %v807, %v2127
        %v2129 = vpop.f32.mrb[0].mxu0
        %2130 = vmatprep.mubr.f32.mxu0 %v453
        %2131 = vmatmul.mubr.f32.gmra.mrb[0].mxu0 %v452
        %v2132 = vpop.f32.mrb[0].mxu0
        %v2133 = vadd.f32 %v807, %v2132
        %v2134 = vpop.f32.mrb[0].mxu0
        %2135 = vmatprep.mubr.f32.mxu0 %v460
        %2136 = vmatmul.mubr.f32.gmra.mrb[0].mxu0 %v459
        %v2137 = vpop.f32.mrb[0].mxu0
        %v2138 = vadd.f32 %v807, %v2137
        %v2139 = vpop.f32.mrb[0].mxu0
        %2140 = vmatprep.mubr.f32.mxu0 %v467
        %2141 = vmatmul.mubr.f32.gmra.mrb[0].mxu0 %v466
        %v2142 = vpop.f32.mrb[0].mxu0
        %v2143 = vadd.f32 %v807, %v2142
        %v2144 = vpop.f32.mrb[0].mxu0
        %2145 = vmatprep.mubr.f32.mxu0 %v474
        %2146 = vmatmul.mubr.f32.gmra.mrb[0].mxu0 %v473
        %v2147 = vpop.f32.mrb[0].mxu0
        %v2148 = vadd.f32 %v807, %v2147
        %v2149 = vpop.f32.mrb[0].mxu0
        %2150 = vmatprep.mubr.f32.mxu0 %v481
        %2151 = vmatmul.mubr.f32.gmra.mrb[0].mxu0 %v480
        %v2152 = vpop.f32.mrb[0].mxu0
        %v2153 = vadd.f32 %v807, %v2152
        %v2154 = vpop.f32.mrb[0].mxu0
        %2155 = vmatprep.mubr.f32.mxu0 %v488
        %2156 = vmatmul.mubr.f32.gmra.mrb[0].mxu0 %v487
        %v2157 = vpop.f32.mrb[0].mxu0
        %v2158 = vadd.f32 %v807, %v2157
        %v2159 = vpop.f32.mrb[0].mxu0
        %2160 = vdwg.mxu0
        %2161 = vmatprep.subr.mxu0 0.0
        %2162 = vmatpush1.msra.mxu0 %v592
        %2163 = vmatprep.subr.mxu0 0.0
        %2164 = vmatpush1.msra.mxu0 %v595
        %2165 = vmatprep.subr.mxu0 0.0
        %2166 = vmatpush1.msra.mxu0 %v598
        %2167 = vmatprep.subr.mxu0 0.0
        %2168 = vmatpush1.msra.mxu0 %v601
        %2169 = vmatprep.subr.mxu0 0.0
        %2170 = vmatpush1.msra.mxu0 %v604
        %2171 = vmatprep.subr.mxu0 0.0
        %2172 = vmatpush1.msra.mxu0 %v607
        %2173 = vmatprep.subr.mxu0 0.0
        %2174 = vmatpush1.msra.mxu0 %v610
        %2175 = vmatprep.subr.mxu0 0.0
        %2176 = vmatpush1.msra.mxu0 %v613
        %2177 = vmatprep.subr.mxu0 0.0
        %2178 = vmatpush1.msra.mxu0 %v616
        %2179 = vmatprep.subr.mxu0 0.0
        %2180 = vmatpush1.msra.mxu0 %v619
        %2181 = vmatprep.subr.mxu0 0.0
        %2182 = vmatpush1.msra.mxu0 %v622
        %2183 = vmatprep.subr.mxu0 0.0
        %2184 = vmatpush1.msra.mxu0 %v625
        %2185 = vmatprep.subr.mxu0 0.0
        %2186 = vmatpush1.msra.mxu0 %v628
        %2187 = vmatprep.subr.mxu0 0.0
        %2188 = vmatpush1.msra.mxu0 %v631
        %2189 = vmatprep.subr.mxu0 0.0
        %2190 = vmatpush1.msra.mxu0 %v634
        %2191 = vmatprep.subr.mxu0 0.0
        %2192 = vmatpush1.msra.mxu0 %v637
        %2193 = vmatprep.subr.mxu0 0.0
        %2194 = vmatpush1.msra.mxu0 %v640
        %2195 = vmatprep.subr.mxu0 0.0
        %2196 = vmatpush1.msra.mxu0 %v643
        %2197 = vmatprep.subr.mxu0 0.0
        %2198 = vmatpush1.msra.mxu0 %v646
        %2199 = vmatprep.subr.mxu0 0.0
        %2200 = vmatpush1.msra.mxu0 %v649
        %2201 = vmatprep.subr.mxu0 0.0
        %2202 = vmatpush1.msra.mxu0 %v652
        %2203 = vmatprep.subr.mxu0 0.0
        %2204 = vmatpush1.msra.mxu0 %v655
        %2205 = vmatprep.subr.mxu0 0.0
        %2206 = vmatpush1.msra.mxu0 %v658
        %2207 = vmatprep.subr.mxu0 0.0
        %2208 = vmatpush1.msra.mxu0 %v661
        %2209 = vmatprep.subr.mxu0 0.0
        %2210 = vmatpush1.msra.mxu0 %v664
        %2211 = vmatprep.subr.mxu0 0.0
        %2212 = vmatpush1.msra.mxu0 %v667
        %2213 = vmatprep.subr.mxu0 0.0
        %2214 = vmatpush1.msra.mxu0 %v670
        %2215 = vmatprep.subr.mxu0 0.0
        %2216 = vmatpush1.msra.mxu0 %v673
        %2217 = vmatprep.subr.mxu0 0.0
        %2218 = vmatpush1.msra.mxu0 %v676
        %2219 = vmatprep.subr.mxu0 0.0
        %2220 = vmatpush1.msra.mxu0 %v679
        %2221 = vmatprep.subr.mxu0 0.0
        %2222 = vmatpush1.msra.mxu0 %v682
        %2223 = vmatprep.subr.mxu0 0.0
        %2224 = vmatpush1.msra.mxu0 %v685
        %2225 = vmatprep.mubr.f32.mxu0 %v273
        %2226 = vmatmul.mubr.f32.gmra.mrb[0].mxu0 %v272
        %v2227 = vpop.f32.mrb[0].mxu0
        %v2228 = vadd.f32 %v2003, %v2227
        %v2229 = vpop.f32.mrb[0].mxu0
        %2230 = vmatprep.mubr.f32.mxu0 %v280
        %2231 = vmatmul.mubr.f32.gmra.mrb[0].mxu0 %v279
        %v2232 = vpop.f32.mrb[0].mxu0
        %v2233 = vadd.f32 %v2008, %v2232
        %v2234 = vpop.f32.mrb[0].mxu0
        %2235 = vmatprep.mubr.f32.mxu0 %v287
        %2236 = vmatmul.mubr.f32.gmra.mrb[0].mxu0 %v286
        %v2237 = vpop.f32.mrb[0].mxu0
        %v2238 = vadd.f32 %v2013, %v2237
        %v2239 = vpop.f32.mrb[0].mxu0
        %2240 = vmatprep.mubr.f32.mxu0 %v294
        %2241 = vmatmul.mubr.f32.gmra.mrb[0].mxu0 %v293
        %v2242 = vpop.f32.mrb[0].mxu0
        %v2243 = vadd.f32 %v2018, %v2242
        %v2244 = vpop.f32.mrb[0].mxu0
        %2245 = vmatprep.mubr.f32.mxu0 %v301
        %2246 = vmatmul.mubr.f32.gmra.mrb[0].mxu0 %v300
        %v2247 = vpop.f32.mrb[0].mxu0
        %v2248 = vadd.f32 %v2023, %v2247
        %v2249 = vpop.f32.mrb[0].mxu0
        %2250 = vmatprep.mubr.f32.mxu0 %v308
        %2251 = vmatmul.mubr.f32.gmra.mrb[0].mxu0 %v307
        %v2252 = vpop.f32.mrb[0].mxu0
        %v2253 = vadd.f32 %v2028, %v2252
        %v2254 = vpop.f32.mrb[0].mxu0
        %2255 = vmatprep.mubr.f32.mxu0 %v315
        %2256 = vmatmul.mubr.f32.gmra.mrb[0].mxu0 %v314
        %v2257 = vpop.f32.mrb[0].mxu0
        %v2258 = vadd.f32 %v2033, %v2257
        %v2259 = vpop.f32.mrb[0].mxu0
        %2260 = vmatprep.mubr.f32.mxu0 %v322
        %2261 = vmatmul.mubr.f32.gmra.mrb[0].mxu0 %v321
        %v2262 = vpop.f32.mrb[0].mxu0
        %v2263 = vadd.f32 %v2038, %v2262
        %v2264 = vpop.f32.mrb[0].mxu0
        %2265 = vmatprep.mubr.f32.mxu0 %v329
        %2266 = vmatmul.mubr.f32.gmra.mrb[0].mxu0 %v328
        %v2267 = vpop.f32.mrb[0].mxu0
        %v2268 = vadd.f32 %v2043, %v2267
        %v2269 = vpop.f32.mrb[0].mxu0
        %2270 = vmatprep.mubr.f32.mxu0 %v336
        %2271 = vmatmul.mubr.f32.gmra.mrb[0].mxu0 %v335
        %v2272 = vpop.f32.mrb[0].mxu0
        %v2273 = vadd.f32 %v2048, %v2272
        %v2274 = vpop.f32.mrb[0].mxu0
        %2275 = vmatprep.mubr.f32.mxu0 %v343
        %2276 = vmatmul.mubr.f32.gmra.mrb[0].mxu0 %v342
        %v2277 = vpop.f32.mrb[0].mxu0
        %v2278 = vadd.f32 %v2053, %v2277
        %v2279 = vpop.f32.mrb[0].mxu0
        %2280 = vmatprep.mubr.f32.mxu0 %v350
        %2281 = vmatmul.mubr.f32.gmra.mrb[0].mxu0 %v349
        %v2282 = vpop.f32.mrb[0].mxu0
        %v2283 = vadd.f32 %v2058, %v2282
        %v2284 = vpop.f32.mrb[0].mxu0
        %2285 = vmatprep.mubr.f32.mxu0 %v357
        %2286 = vmatmul.mubr.f32.gmra.mrb[0].mxu0 %v356
        %v2287 = vpop.f32.mrb[0].mxu0
        %v2288 = vadd.f32 %v2063, %v2287
        %v2289 = vpop.f32.mrb[0].mxu0
        %2290 = vmatprep.mubr.f32.mxu0 %v364
        %2291 = vmatmul.mubr.f32.gmra.mrb[0].mxu0 %v363
        %v2292 = vpop.f32.mrb[0].mxu0
        %v2293 = vadd.f32 %v2068, %v2292
        %v2294 = vpop.f32.mrb[0].mxu0
        %2295 = vmatprep.mubr.f32.mxu0 %v371
        %2296 = vmatmul.mubr.f32.gmra.mrb[0].mxu0 %v370
        %v2297 = vpop.f32.mrb[0].mxu0
        %v2298 = vadd.f32 %v2073, %v2297
        %v2299 = vpop.f32.mrb[0].mxu0
        %2300 = vmatprep.mubr.f32.mxu0 %v378
        %2301 = vmatmul.mubr.f32.gmra.mrb[0].mxu0 %v377
        %v2302 = vpop.f32.mrb[0].mxu0
        %v2303 = vadd.f32 %v2078, %v2302
        %v2304 = vpop.f32.mrb[0].mxu0
        %2305 = vmatprep.mubr.f32.mxu0 %v385
        %2306 = vmatmul.mubr.f32.gmra.mrb[0].mxu0 %v384
        %v2307 = vpop.f32.mrb[0].mxu0
        %v2308 = vadd.f32 %v2083, %v2307
        %v2309 = vpop.f32.mrb[0].mxu0
        %2310 = vmatprep.mubr.f32.mxu0 %v392
        %2311 = vmatmul.mubr.f32.gmra.mrb[0].mxu0 %v391
        %v2312 = vpop.f32.mrb[0].mxu0
        %v2313 = vadd.f32 %v2088, %v2312
        %v2314 = vpop.f32.mrb[0].mxu0
        %2315 = vmatprep.mubr.f32.mxu0 %v399
        %2316 = vmatmul.mubr.f32.gmra.mrb[0].mxu0 %v398
        %v2317 = vpop.f32.mrb[0].mxu0
        %v2318 = vadd.f32 %v2093, %v2317
        %v2319 = vpop.f32.mrb[0].mxu0
        %2320 = vmatprep.mubr.f32.mxu0 %v406
        %2321 = vmatmul.mubr.f32.gmra.mrb[0].mxu0 %v405
        %v2322 = vpop.f32.mrb[0].mxu0
        %v2323 = vadd.f32 %v2098, %v2322
        %v2324 = vpop.f32.mrb[0].mxu0
        %2325 = vmatprep.mubr.f32.mxu0 %v413
        %2326 = vmatmul.mubr.f32.gmra.mrb[0].mxu0 %v412
        %v2327 = vpop.f32.mrb[0].mxu0
        %v2328 = vadd.f32 %v2103, %v2327
        %v2329 = vpop.f32.mrb[0].mxu0
        %2330 = vmatprep.mubr.f32.mxu0 %v420
        %2331 = vmatmul.mubr.f32.gmra.mrb[0].mxu0 %v419
        %v2332 = vpop.f32.mrb[0].mxu0
        %v2333 = vadd.f32 %v2108, %v2332
        %v2334 = vpop.f32.mrb[0].mxu0
        %2335 = vmatprep.mubr.f32.mxu0 %v427
        %2336 = vmatmul.mubr.f32.gmra.mrb[0].mxu0 %v426
        %v2337 = vpop.f32.mrb[0].mxu0
        %v2338 = vadd.f32 %v2113, %v2337
        %v2339 = vpop.f32.mrb[0].mxu0
        %2340 = vmatprep.mubr.f32.mxu0 %v434
        %2341 = vmatmul.mubr.f32.gmra.mrb[0].mxu0 %v433
        %v2342 = vpop.f32.mrb[0].mxu0
        %v2343 = vadd.f32 %v2118, %v2342
        %v2344 = vpop.f32.mrb[0].mxu0
        %2345 = vmatprep.mubr.f32.mxu0 %v441
        %2346 = vmatmul.mubr.f32.gmra.mrb[0].mxu0 %v440
        %v2347 = vpop.f32.mrb[0].mxu0
        %v2348 = vadd.f32 %v2123, %v2347
        %v2349 = vpop.f32.mrb[0].mxu0
        %2350 = vmatprep.mubr.f32.mxu0 %v448
        %2351 = vmatmul.mubr.f32.gmra.mrb[0].mxu0 %v447
        %v2352 = vpop.f32.mrb[0].mxu0
        %v2353 = vadd.f32 %v2128, %v2352
        %v2354 = vpop.f32.mrb[0].mxu0
        %2355 = vmatprep.mubr.f32.mxu0 %v455
        %2356 = vmatmul.mubr.f32.gmra.mrb[0].mxu0 %v454
        %v2357 = vpop.f32.mrb[0].mxu0
        %v2358 = vadd.f32 %v2133, %v2357
        %v2359 = vpop.f32.mrb[0].mxu0
        %2360 = vmatprep.mubr.f32.mxu0 %v462
        %2361 = vmatmul.mubr.f32.gmra.mrb[0].mxu0 %v461
        %v2362 = vpop.f32.mrb[0].mxu0
        %v2363 = vadd.f32 %v2138, %v2362
        %v2364 = vpop.f32.mrb[0].mxu0
        %2365 = vmatprep.mubr.f32.mxu0 %v469
        %2366 = vmatmul.mubr.f32.gmra.mrb[0].mxu0 %v468
        %v2367 = vpop.f32.mrb[0].mxu0
        %v2368 = vadd.f32 %v2143, %v2367
        %v2369 = vpop.f32.mrb[0].mxu0
        %2370 = vmatprep.mubr.f32.mxu0 %v476
        %2371 = vmatmul.mubr.f32.gmra.mrb[0].mxu0 %v475
        %v2372 = vpop.f32.mrb[0].mxu0
        %v2373 = vadd.f32 %v2148, %v2372
        %v2374 = vpop.f32.mrb[0].mxu0
        %2375 = vmatprep.mubr.f32.mxu0 %v483
        %2376 = vmatmul.mubr.f32.gmra.mrb[0].mxu0 %v482
        %v2377 = vpop.f32.mrb[0].mxu0
        %v2378 = vadd.f32 %v2153, %v2377
        %v2379 = vpop.f32.mrb[0].mxu0
        %2380 = vmatprep.mubr.f32.mxu0 %v490
        %2381 = vmatmul.mubr.f32.gmra.mrb[0].mxu0 %v489
        %v2382 = vpop.f32.mrb[0].mxu0
        %v2383 = vadd.f32 %v2158, %v2382
        %v2384 = vpop.f32.mrb[0].mxu0
        %2385 = vdwg.mxu0
        %2386 = vmatprep.subr.mxu0 0.0
        %2387 = vmatpush1.msra.mxu0 %v688
        %2388 = vmatprep.subr.mxu0 0.0
        %2389 = vmatpush1.msra.mxu0 %v691
        %2390 = vmatprep.subr.mxu0 0.0
        %2391 = vmatpush1.msra.mxu0 %v694
        %2392 = vmatprep.subr.mxu0 0.0
        %2393 = vmatpush1.msra.mxu0 %v697
        %2394 = vmatprep.subr.mxu0 0.0
        %2395 = vmatpush1.msra.mxu0 %v700
        %2396 = vmatprep.subr.mxu0 0.0
        %2397 = vmatpush1.msra.mxu0 %v703
        %2398 = vmatprep.subr.mxu0 0.0
        %2399 = vmatpush1.msra.mxu0 %v706
        %2400 = vmatprep.subr.mxu0 0.0
        %2401 = vmatpush1.msra.mxu0 %v709
        %2402 = vmatprep.subr.mxu0 0.0
        %2403 = vmatpush1.msra.mxu0 %v712
        %2404 = vmatprep.subr.mxu0 0.0
        %2405 = vmatpush1.msra.mxu0 %v715
        %2406 = vmatprep.subr.mxu0 0.0
        %2407 = vmatpush1.msra.mxu0 %v718
        %2408 = vmatprep.subr.mxu0 0.0
        %2409 = vmatpush1.msra.mxu0 %v721
        %2410 = vmatprep.subr.mxu0 0.0
        %2411 = vmatpush1.msra.mxu0 %v724
        %2412 = vmatprep.subr.mxu0 0.0
        %2413 = vmatpush1.msra.mxu0 %v727
        %2414 = vmatprep.subr.mxu0 0.0
        %2415 = vmatpush1.msra.mxu0 %v730
        %2416 = vmatprep.subr.mxu0 0.0
        %2417 = vmatpush1.msra.mxu0 %v733
        %2418 = vmatprep.subr.mxu0 0.0
        %2419 = vmatpush1.msra.mxu0 %v736
        %2420 = vmatprep.subr.mxu0 0.0
        %2421 = vmatpush1.msra.mxu0 %v739
        %2422 = vmatprep.subr.mxu0 0.0
        %2423 = vmatpush1.msra.mxu0 %v742
        %2424 = vmatprep.subr.mxu0 0.0
        %2425 = vmatpush1.msra.mxu0 %v745
        %2426 = vmatprep.subr.mxu0 0.0
        %2427 = vmatpush1.msra.mxu0 %v748
        %2428 = vmatprep.subr.mxu0 0.0
        %2429 = vmatpush1.msra.mxu0 %v751
        %2430 = vmatprep.subr.mxu0 0.0
        %2431 = vmatpush1.msra.mxu0 %v754
        %2432 = vmatprep.subr.mxu0 0.0
        %2433 = vmatpush1.msra.mxu0 %v757
        %2434 = vmatprep.subr.mxu0 0.0
        %2435 = vmatpush1.msra.mxu0 %v760
        %2436 = vmatprep.subr.mxu0 0.0
        %2437 = vmatpush1.msra.mxu0 %v763
        %2438 = vmatprep.subr.mxu0 0.0
        %2439 = vmatpush1.msra.mxu0 %v766
        %2440 = vmatprep.subr.mxu0 0.0
        %2441 = vmatpush1.msra.mxu0 %v769
        %2442 = vmatprep.subr.mxu0 0.0
        %2443 = vmatpush1.msra.mxu0 %v772
        %2444 = vmatprep.subr.mxu0 0.0
        %2445 = vmatpush1.msra.mxu0 %v775
        %2446 = vmatprep.subr.mxu0 0.0
        %2447 = vmatpush1.msra.mxu0 %v778
        %2448 = vmatprep.subr.mxu0 0.0
        %2449 = vmatpush1.msra.mxu0 %v781
        %2450 = vmatprep.mubr.f32.mxu0 %v275
        %2451 = vmatmul.mubr.f32.gmra.mrb[0].mxu0 %v274
        %v2452 = vpop.f32.mrb[0].mxu0
        %v2453 = vadd.f32 %v2228, %v2452
        %v2454 = vpop.f32.mrb[0].mxu0
        %2455 = vmatprep.mubr.f32.mxu0 %v282
        %2456 = vmatmul.mubr.f32.gmra.mrb[0].mxu0 %v281
        %v2457 = vpop.f32.mrb[0].mxu0
        %v2458 = vadd.f32 %v2233, %v2457
        %v2459 = vpop.f32.mrb[0].mxu0
        %2460 = vmatprep.mubr.f32.mxu0 %v289
        %2461 = vmatmul.mubr.f32.gmra.mrb[0].mxu0 %v288
        %v2462 = vpop.f32.mrb[0].mxu0
        %v2463 = vadd.f32 %v2238, %v2462
        %v2464 = vpop.f32.mrb[0].mxu0
        %2465 = vmatprep.mubr.f32.mxu0 %v296
        %2466 = vmatmul.mubr.f32.gmra.mrb[0].mxu0 %v295
        %v2467 = vpop.f32.mrb[0].mxu0
        %v2468 = vadd.f32 %v2243, %v2467
        %v2469 = vpop.f32.mrb[0].mxu0
        %2470 = vmatprep.mubr.f32.mxu0 %v303
        %2471 = vmatmul.mubr.f32.gmra.mrb[0].mxu0 %v302
        %v2472 = vpop.f32.mrb[0].mxu0
        %v2473 = vadd.f32 %v2248, %v2472
        %v2474 = vpop.f32.mrb[0].mxu0
        %2475 = vmatprep.mubr.f32.mxu0 %v310
        %2476 = vmatmul.mubr.f32.gmra.mrb[0].mxu0 %v309
        %v2477 = vpop.f32.mrb[0].mxu0
        %v2478 = vadd.f32 %v2253, %v2477
        %v2479 = vpop.f32.mrb[0].mxu0
        %2480 = vmatprep.mubr.f32.mxu0 %v317
        %2481 = vmatmul.mubr.f32.gmra.mrb[0].mxu0 %v316
        %v2482 = vpop.f32.mrb[0].mxu0
        %v2483 = vadd.f32 %v2258, %v2482
        %v2484 = vpop.f32.mrb[0].mxu0
        %2485 = vmatprep.mubr.f32.mxu0 %v324
        %2486 = vmatmul.mubr.f32.gmra.mrb[0].mxu0 %v323
        %v2487 = vpop.f32.mrb[0].mxu0
        %v2488 = vadd.f32 %v2263, %v2487
        %v2489 = vpop.f32.mrb[0].mxu0
        %2490 = vmatprep.mubr.f32.mxu0 %v331
        %2491 = vmatmul.mubr.f32.gmra.mrb[0].mxu0 %v330
        %v2492 = vpop.f32.mrb[0].mxu0
        %v2493 = vadd.f32 %v2268, %v2492
        %v2494 = vpop.f32.mrb[0].mxu0
        %2495 = vmatprep.mubr.f32.mxu0 %v338
        %2496 = vmatmul.mubr.f32.gmra.mrb[0].mxu0 %v337
        %v2497 = vpop.f32.mrb[0].mxu0
        %v2498 = vadd.f32 %v2273, %v2497
        %v2499 = vpop.f32.mrb[0].mxu0
        %2500 = vmatprep.mubr.f32.mxu0 %v345
        %2501 = vmatmul.mubr.f32.gmra.mrb[0].mxu0 %v344
        %v2502 = vpop.f32.mrb[0].mxu0
        %v2503 = vadd.f32 %v2278, %v2502
        %v2504 = vpop.f32.mrb[0].mxu0
        %2505 = vmatprep.mubr.f32.mxu0 %v352
        %2506 = vmatmul.mubr.f32.gmra.mrb[0].mxu0 %v351
        %v2507 = vpop.f32.mrb[0].mxu0
        %v2508 = vadd.f32 %v2283, %v2507
        %v2509 = vpop.f32.mrb[0].mxu0
        %2510 = vmatprep.mubr.f32.mxu0 %v359
        %2511 = vmatmul.mubr.f32.gmra.mrb[0].mxu0 %v358
        %v2512 = vpop.f32.mrb[0].mxu0
        %v2513 = vadd.f32 %v2288, %v2512
        %v2514 = vpop.f32.mrb[0].mxu0
        %2515 = vmatprep.mubr.f32.mxu0 %v366
        %2516 = vmatmul.mubr.f32.gmra.mrb[0].mxu0 %v365
        %v2517 = vpop.f32.mrb[0].mxu0
        %v2518 = vadd.f32 %v2293, %v2517
        %v2519 = vpop.f32.mrb[0].mxu0
        %2520 = vmatprep.mubr.f32.mxu0 %v373
        %2521 = vmatmul.mubr.f32.gmra.mrb[0].mxu0 %v372
        %v2522 = vpop.f32.mrb[0].mxu0
        %v2523 = vadd.f32 %v2298, %v2522
        %v2524 = vpop.f32.mrb[0].mxu0
        %2525 = vmatprep.mubr.f32.mxu0 %v380
        %2526 = vmatmul.mubr.f32.gmra.mrb[0].mxu0 %v379
        %v2527 = vpop.f32.mrb[0].mxu0
        %v2528 = vadd.f32 %v2303, %v2527
        %v2529 = vpop.f32.mrb[0].mxu0
        %2530 = vmatprep.mubr.f32.mxu0 %v387
        %2531 = vmatmul.mubr.f32.gmra.mrb[0].mxu0 %v386
        %v2532 = vpop.f32.mrb[0].mxu0
        %v2533 = vadd.f32 %v2308, %v2532
        %v2534 = vpop.f32.mrb[0].mxu0
        %2535 = vmatprep.mubr.f32.mxu0 %v394
        %2536 = vmatmul.mubr.f32.gmra.mrb[0].mxu0 %v393
        %v2537 = vpop.f32.mrb[0].mxu0
        %v2538 = vadd.f32 %v2313, %v2537
        %v2539 = vpop.f32.mrb[0].mxu0
        %2540 = vmatprep.mubr.f32.mxu0 %v401
        %2541 = vmatmul.mubr.f32.gmra.mrb[0].mxu0 %v400
        %v2542 = vpop.f32.mrb[0].mxu0
        %v2543 = vadd.f32 %v2318, %v2542
        %v2544 = vpop.f32.mrb[0].mxu0
        %2545 = vmatprep.mubr.f32.mxu0 %v408
        %2546 = vmatmul.mubr.f32.gmra.mrb[0].mxu0 %v407
        %v2547 = vpop.f32.mrb[0].mxu0
        %v2548 = vadd.f32 %v2323, %v2547
        %v2549 = vpop.f32.mrb[0].mxu0
        %2550 = vmatprep.mubr.f32.mxu0 %v415
        %2551 = vmatmul.mubr.f32.gmra.mrb[0].mxu0 %v414
        %v2552 = vpop.f32.mrb[0].mxu0
        %v2553 = vadd.f32 %v2328, %v2552
        %v2554 = vpop.f32.mrb[0].mxu0
        %2555 = vmatprep.mubr.f32.mxu0 %v422
        %2556 = vmatmul.mubr.f32.gmra.mrb[0].mxu0 %v421
        %v2557 = vpop.f32.mrb[0].mxu0
        %v2558 = vadd.f32 %v2333, %v2557
        %v2559 = vpop.f32.mrb[0].mxu0
        %2560 = vmatprep.mubr.f32.mxu0 %v429
        %2561 = vmatmul.mubr.f32.gmra.mrb[0].mxu0 %v428
        %v2562 = vpop.f32.mrb[0].mxu0
        %v2563 = vadd.f32 %v2338, %v2562
        %v2564 = vpop.f32.mrb[0].mxu0
        %2565 = vmatprep.mubr.f32.mxu0 %v436
        %2566 = vmatmul.mubr.f32.gmra.mrb[0].mxu0 %v435
        %v2567 = vpop.f32.mrb[0].mxu0
        %v2568 = vadd.f32 %v2343, %v2567
        %v2569 = vpop.f32.mrb[0].mxu0
        %2570 = vmatprep.mubr.f32.mxu0 %v443
        %2571 = vmatmul.mubr.f32.gmra.mrb[0].mxu0 %v442
        %v2572 = vpop.f32.mrb[0].mxu0
        %v2573 = vadd.f32 %v2348, %v2572
        %v2574 = vpop.f32.mrb[0].mxu0
        %2575 = vmatprep.mubr.f32.mxu0 %v450
        %2576 = vmatmul.mubr.f32.gmra.mrb[0].mxu0 %v449
        %v2577 = vpop.f32.mrb[0].mxu0
        %v2578 = vadd.f32 %v2353, %v2577
        %v2579 = vpop.f32.mrb[0].mxu0
        %2580 = vmatprep.mubr.f32.mxu0 %v457
        %2581 = vmatmul.mubr.f32.gmra.mrb[0].mxu0 %v456
        %v2582 = vpop.f32.mrb[0].mxu0
        %v2583 = vadd.f32 %v2358, %v2582
        %v2584 = vpop.f32.mrb[0].mxu0
        %2585 = vmatprep.mubr.f32.mxu0 %v464
        %2586 = vmatmul.mubr.f32.gmra.mrb[0].mxu0 %v463
        %v2587 = vpop.f32.mrb[0].mxu0
        %v2588 = vadd.f32 %v2363, %v2587
        %v2589 = vpop.f32.mrb[0].mxu0
        %2590 = vmatprep.mubr.f32.mxu0 %v471
        %2591 = vmatmul.mubr.f32.gmra.mrb[0].mxu0 %v470
        %v2592 = vpop.f32.mrb[0].mxu0
        %v2593 = vadd.f32 %v2368, %v2592
        %v2594 = vpop.f32.mrb[0].mxu0
        %2595 = vmatprep.mubr.f32.mxu0 %v478
        %2596 = vmatmul.mubr.f32.gmra.mrb[0].mxu0 %v477
        %v2597 = vpop.f32.mrb[0].mxu0
        %v2598 = vadd.f32 %v2373, %v2597
        %v2599 = vpop.f32.mrb[0].mxu0
        %2600 = vmatprep.mubr.f32.mxu0 %v485
        %2601 = vmatmul.mubr.f32.gmra.mrb[0].mxu0 %v484
        %v2602 = vpop.f32.mrb[0].mxu0
        %v2603 = vadd.f32 %v2378, %v2602
        %v2604 = vpop.f32.mrb[0].mxu0
        %2605 = vmatprep.mubr.f32.mxu0 %v492
        %2606 = vmatmul.mubr.f32.gmra.mrb[0].mxu0 %v491
        %v2607 = vpop.f32.mrb[0].mxu0
        %v2608 = vadd.f32 %v2383, %v2607
        %v2609 = vpop.f32.mrb[0].mxu0
        %2610 = vdwg.mxu0
        %2611 = vmatprep.subr.mxu0 0.0
        %2612 = vmatpush1.msra.mxu0 %v784
        %2613 = vmatprep.subr.mxu0 0.0
        %2614 = vmatpush1.msra.mxu0 %v787
        %2615 = vmatprep.subr.mxu0 0.0
        %2616 = vmatpush1.msra.mxu0 %v790
        %2617 = vmatprep.subr.mxu0 0.0
        %2618 = vmatpush1.msra.mxu0 %v793
        %2619 = vmatprep.subr.mxu0 0.0
        %2620 = vmatpush1.msra.mxu0 0.0
        %2621 = vmatprep.subr.mxu0 0.0
        %2622 = vmatpush1.msra.mxu0 0.0
        %2623 = vmatprep.subr.mxu0 0.0
        %2624 = vmatpush1.msra.mxu0 0.0
        %2625 = vmatprep.subr.mxu0 0.0
        %2626 = vmatpush1.msra.mxu0 0.0
        %2627 = vmatprep.subr.mxu0 0.0
        %2628 = vmatpush1.msra.mxu0 0.0
        %2629 = vmatprep.subr.mxu0 0.0
        %2630 = vmatpush1.msra.mxu0 0.0
        %2631 = vmatprep.subr.mxu0 0.0
        %2632 = vmatpush1.msra.mxu0 0.0
        %2633 = vmatprep.subr.mxu0 0.0
        %2634 = vmatpush1.msra.mxu0 0.0
        %2635 = vmatprep.subr.mxu0 0.0
        %2636 = vmatpush1.msra.mxu0 0.0
        %2637 = vmatprep.subr.mxu0 0.0
        %2638 = vmatpush1.msra.mxu0 0.0
        %2639 = vmatprep.subr.mxu0 0.0
        %2640 = vmatpush1.msra.mxu0 0.0
        %2641 = vmatprep.subr.mxu0 0.0
        %2642 = vmatpush1.msra.mxu0 0.0
        %2643 = vmatprep.subr.mxu0 0.0
        %2644 = vmatpush1.msra.mxu0 0.0
        %2645 = vmatprep.subr.mxu0 0.0
        %2646 = vmatpush1.msra.mxu0 0.0
        %2647 = vmatprep.subr.mxu0 0.0
        %2648 = vmatpush1.msra.mxu0 0.0
        %2649 = vmatprep.subr.mxu0 0.0
        %2650 = vmatpush1.msra.mxu0 0.0
        %2651 = vmatprep.subr.mxu0 0.0
        %2652 = vmatpush1.msra.mxu0 0.0
        %2653 = vmatprep.subr.mxu0 0.0
        %2654 = vmatpush1.msra.mxu0 0.0
        %2655 = vmatprep.subr.mxu0 0.0
        %2656 = vmatpush1.msra.mxu0 0.0
        %2657 = vmatprep.subr.mxu0 0.0
        %2658 = vmatpush1.msra.mxu0 0.0
        %2659 = vmatprep.subr.mxu0 0.0
        %2660 = vmatpush1.msra.mxu0 0.0
        %2661 = vmatprep.subr.mxu0 0.0
        %2662 = vmatpush1.msra.mxu0 0.0
        %2663 = vmatprep.subr.mxu0 0.0
        %2664 = vmatpush1.msra.mxu0 0.0
        %2665 = vmatprep.subr.mxu0 0.0
        %2666 = vmatpush1.msra.mxu0 0.0
        %2667 = vmatprep.subr.mxu0 0.0
        %2668 = vmatpush1.msra.mxu0 0.0
        %2669 = vmatprep.subr.mxu0 0.0
        %2670 = vmatpush1.msra.mxu0 0.0
        %2671 = vmatprep.subr.mxu0 0.0
        %2672 = vmatpush1.msra.mxu0 0.0
        %2673 = vmatprep.subr.mxu0 0.0
        %2674 = vmatpush1.msra.mxu0 0.0
        %2675 = vmatprep.mubr.f32.mxu0 0.0
        %2676 = vmatmul.mubr.f32.gmra.mrb[0].mxu0 %v813
        %v2677 = vpop.f32.mrb[0].mxu0
        %v2678 = vadd.f32 %v2453, %v2677
        %v2679 = vpop.f32.mrb[0].mxu0
        %2680 = vmatprep.mubr.f32.mxu0 0.0
        %2681 = vmatmul.mubr.f32.gmra.mrb[0].mxu0 %v816
        %v2682 = vpop.f32.mrb[0].mxu0
        %v2683 = vadd.f32 %v2458, %v2682
        %v2684 = vpop.f32.mrb[0].mxu0
        %2685 = vmatprep.mubr.f32.mxu0 0.0
        %2686 = vmatmul.mubr.f32.gmra.mrb[0].mxu0 %v819
        %v2687 = vpop.f32.mrb[0].mxu0
        %v2688 = vadd.f32 %v2463, %v2687
        %v2689 = vpop.f32.mrb[0].mxu0
        %2690 = vmatprep.mubr.f32.mxu0 0.0
        %2691 = vmatmul.mubr.f32.gmra.mrb[0].mxu0 %v822
        %v2692 = vpop.f32.mrb[0].mxu0
        %v2693 = vadd.f32 %v2468, %v2692
        %v2694 = vpop.f32.mrb[0].mxu0
        %2695 = vmatprep.mubr.f32.mxu0 0.0
        %2696 = vmatmul.mubr.f32.gmra.mrb[0].mxu0 %v825
        %v2697 = vpop.f32.mrb[0].mxu0
        %v2698 = vadd.f32 %v2473, %v2697
        %v2699 = vpop.f32.mrb[0].mxu0
        %2700 = vmatprep.mubr.f32.mxu0 0.0
        %2701 = vmatmul.mubr.f32.gmra.mrb[0].mxu0 %v828
        %v2702 = vpop.f32.mrb[0].mxu0
        %v2703 = vadd.f32 %v2478, %v2702
        %v2704 = vpop.f32.mrb[0].mxu0
        %2705 = vmatprep.mubr.f32.mxu0 0.0
        %2706 = vmatmul.mubr.f32.gmra.mrb[0].mxu0 %v831
        %v2707 = vpop.f32.mrb[0].mxu0
        %v2708 = vadd.f32 %v2483, %v2707
        %v2709 = vpop.f32.mrb[0].mxu0
        %2710 = vmatprep.mubr.f32.mxu0 0.0
        %2711 = vmatmul.mubr.f32.gmra.mrb[0].mxu0 %v834
        %v2712 = vpop.f32.mrb[0].mxu0
        %v2713 = vadd.f32 %v2488, %v2712
        %v2714 = vpop.f32.mrb[0].mxu0
        %2715 = vmatprep.mubr.f32.mxu0 0.0
        %2716 = vmatmul.mubr.f32.gmra.mrb[0].mxu0 %v837
        %v2717 = vpop.f32.mrb[0].mxu0
        %v2718 = vadd.f32 %v2493, %v2717
        %v2719 = vpop.f32.mrb[0].mxu0
        %2720 = vmatprep.mubr.f32.mxu0 0.0
        %2721 = vmatmul.mubr.f32.gmra.mrb[0].mxu0 %v840
        %v2722 = vpop.f32.mrb[0].mxu0
        %v2723 = vadd.f32 %v2498, %v2722
        %v2724 = vpop.f32.mrb[0].mxu0
        %2725 = vmatprep.mubr.f32.mxu0 0.0
        %2726 = vmatmul.mubr.f32.gmra.mrb[0].mxu0 %v843
        %v2727 = vpop.f32.mrb[0].mxu0
        %v2728 = vadd.f32 %v2503, %v2727
        %v2729 = vpop.f32.mrb[0].mxu0
        %2730 = vmatprep.mubr.f32.mxu0 0.0
        %2731 = vmatmul.mubr.f32.gmra.mrb[0].mxu0 %v846
        %v2732 = vpop.f32.mrb[0].mxu0
        %v2733 = vadd.f32 %v2508, %v2732
        %v2734 = vpop.f32.mrb[0].mxu0
        %2735 = vmatprep.mubr.f32.mxu0 0.0
        %2736 = vmatmul.mubr.f32.gmra.mrb[0].mxu0 %v849
        %v2737 = vpop.f32.mrb[0].mxu0
        %v2738 = vadd.f32 %v2513, %v2737
        %v2739 = vpop.f32.mrb[0].mxu0
        %2740 = vmatprep.mubr.f32.mxu0 0.0
        %2741 = vmatmul.mubr.f32.gmra.mrb[0].mxu0 %v852
        %v2742 = vpop.f32.mrb[0].mxu0
        %v2743 = vadd.f32 %v2518, %v2742
        %v2744 = vpop.f32.mrb[0].mxu0
        %2745 = vmatprep.mubr.f32.mxu0 0.0
        %2746 = vmatmul.mubr.f32.gmra.mrb[0].mxu0 %v855
        %v2747 = vpop.f32.mrb[0].mxu0
        %v2748 = vadd.f32 %v2523, %v2747
        %v2749 = vpop.f32.mrb[0].mxu0
        %2750 = vmatprep.mubr.f32.mxu0 0.0
        %2751 = vmatmul.mubr.f32.gmra.mrb[0].mxu0 %v858
        %v2752 = vpop.f32.mrb[0].mxu0
        %v2753 = vadd.f32 %v2528, %v2752
        %v2754 = vpop.f32.mrb[0].mxu0
        %2755 = vmatprep.mubr.f32.mxu0 0.0
        %2756 = vmatmul.mubr.f32.gmra.mrb[0].mxu0 %v861
        %v2757 = vpop.f32.mrb[0].mxu0
        %v2758 = vadd.f32 %v2533, %v2757
        %v2759 = vpop.f32.mrb[0].mxu0
        %2760 = vmatprep.mubr.f32.mxu0 0.0
        %2761 = vmatmul.mubr.f32.gmra.mrb[0].mxu0 %v864
        %v2762 = vpop.f32.mrb[0].mxu0
        %v2763 = vadd.f32 %v2538, %v2762
        %v2764 = vpop.f32.mrb[0].mxu0
        %2765 = vmatprep.mubr.f32.mxu0 0.0
        %2766 = vmatmul.mubr.f32.gmra.mrb[0].mxu0 %v867
        %v2767 = vpop.f32.mrb[0].mxu0
        %v2768 = vadd.f32 %v2543, %v2767
        %v2769 = vpop.f32.mrb[0].mxu0
        %2770 = vmatprep.mubr.f32.mxu0 0.0
        %2771 = vmatmul.mubr.f32.gmra.mrb[0].mxu0 %v870
        %v2772 = vpop.f32.mrb[0].mxu0
        %v2773 = vadd.f32 %v2548, %v2772
        %v2774 = vpop.f32.mrb[0].mxu0
        %2775 = vmatprep.mubr.f32.mxu0 0.0
        %2776 = vmatmul.mubr.f32.gmra.mrb[0].mxu0 %v873
        %v2777 = vpop.f32.mrb[0].mxu0
        %v2778 = vadd.f32 %v2553, %v2777
        %v2779 = vpop.f32.mrb[0].mxu0
        %2780 = vmatprep.mubr.f32.mxu0 0.0
        %2781 = vmatmul.mubr.f32.gmra.mrb[0].mxu0 %v876
        %v2782 = vpop.f32.mrb[0].mxu0
        %v2783 = vadd.f32 %v2558, %v2782
        %v2784 = vpop.f32.mrb[0].mxu0
        %2785 = vmatprep.mubr.f32.mxu0 0.0
        %2786 = vmatmul.mubr.f32.gmra.mrb[0].mxu0 %v879
        %v2787 = vpop.f32.mrb[0].mxu0
        %v2788 = vadd.f32 %v2563, %v2787
        %v2789 = vpop.f32.mrb[0].mxu0
        %2790 = vmatprep.mubr.f32.mxu0 0.0
        %2791 = vmatmul.mubr.f32.gmra.mrb[0].mxu0 %v882
        %v2792 = vpop.f32.mrb[0].mxu0
        %v2793 = vadd.f32 %v2568, %v2792
        %v2794 = vpop.f32.mrb[0].mxu0
        %2795 = vmatprep.mubr.f32.mxu0 0.0
        %2796 = vmatmul.mubr.f32.gmra.mrb[0].mxu0 %v885
        %v2797 = vpop.f32.mrb[0].mxu0
        %v2798 = vadd.f32 %v2573, %v2797
        %v2799 = vpop.f32.mrb[0].mxu0
        %2800 = vmatprep.mubr.f32.mxu0 0.0
        %2801 = vmatmul.mubr.f32.gmra.mrb[0].mxu0 %v888
        %v2802 = vpop.f32.mrb[0].mxu0
        %v2803 = vadd.f32 %v2578, %v2802
        %v2804 = vpop.f32.mrb[0].mxu0
        %2805 = vmatprep.mubr.f32.mxu0 0.0
        %2806 = vmatmul.mubr.f32.gmra.mrb[0].mxu0 %v891
        %v2807 = vpop.f32.mrb[0].mxu0
        %v2808 = vadd.f32 %v2583, %v2807
        %v2809 = vpop.f32.mrb[0].mxu0
        %2810 = vmatprep.mubr.f32.mxu0 0.0
        %2811 = vmatmul.mubr.f32.gmra.mrb[0].mxu0 %v894
        %v2812 = vpop.f32.mrb[0].mxu0
        %v2813 = vadd.f32 %v2588, %v2812
        %v2814 = vpop.f32.mrb[0].mxu0
        %2815 = vmatprep.mubr.f32.mxu0 0.0
        %2816 = vmatmul.mubr.f32.gmra.mrb[0].mxu0 %v897
        %v2817 = vpop.f32.mrb[0].mxu0
        %v2818 = vadd.f32 %v2593, %v2817
        %v2819 = vpop.f32.mrb[0].mxu0
        %2820 = vmatprep.mubr.f32.mxu0 0.0
        %2821 = vmatmul.mubr.f32.gmra.mrb[0].mxu0 %v900
        %v2822 = vpop.f32.mrb[0].mxu0
        %v2823 = vadd.f32 %v2598, %v2822
        %v2824 = vpop.f32.mrb[0].mxu0
        %2825 = vmatprep.mubr.f32.mxu0 0.0
        %2826 = vmatmul.mubr.f32.gmra.mrb[0].mxu0 %v903
        %v2827 = vpop.f32.mrb[0].mxu0
        %v2828 = vadd.f32 %v2603, %v2827
        %v2829 = vpop.f32.mrb[0].mxu0
        %2830 = vmatprep.mubr.f32.mxu0 0.0
        %2831 = vmatmul.mubr.f32.gmra.mrb[0].mxu0 %v906
        %v2832 = vpop.f32.mrb[0].mxu0
        %v2833 = vadd.f32 %v2608, %v2832
        %v2834 = vpop.f32.mrb[0].mxu0
        %2835 = vdwg.mxu0
        %2836 = vst [vmem:[%s258] sm:$0xff] %v1746
        %2837 = vst [vmem:[%s258 + $0x8] sm:$0xff] %v1748
        %2838 = vst [vmem:[%s258 + $0x10] sm:$0xff] %v2678
        %2839 = vst [vmem:[%s258 + $0x18] sm:$0xff] %v1752
        %2840 = vst [vmem:[%s258 + $0x20] sm:$0xff] %v1754
        %2841 = vst [vmem:[%s258 + $0x28] sm:$0xff] %v2683
        %2842 = vst [vmem:[%s258 + $0x30] sm:$0xff] %v1758
        %2843 = vst [vmem:[%s258 + $0x38] sm:$0xff] %v1760
        %2844 = vst [vmem:[%s258 + $0x40] sm:$0xff] %v2688
        %2845 = vst [vmem:[%s258 + $0x48] sm:$0xff] %v1764
        %2846 = vst [vmem:[%s258 + $0x50] sm:$0xff] %v1766
        %2847 = vst [vmem:[%s258 + $0x58] sm:$0xff] %v2693
        %2848 = vst [vmem:[%s258 + $0x60] sm:$0xff] %v1770
        %2849 = vst [vmem:[%s258 + $0x68] sm:$0xff] %v1772
        %2850 = vst [vmem:[%s258 + $0x70] sm:$0xff] %v2698
        %2851 = vst [vmem:[%s258 + $0x78] sm:$0xff] %v1776
        %2852 = vst [vmem:[%s258 + $0x80] sm:$0xff] %v1778
        %2853 = vst [vmem:[%s258 + $0x88] sm:$0xff] %v2703
        %2854 = vst [vmem:[%s258 + $0x90] sm:$0xff] %v1782
        %2855 = vst [vmem:[%s258 + $0x98] sm:$0xff] %v1784
        %2856 = vst [vmem:[%s258 + $0xa0] sm:$0xff] %v2708
        %2857 = vst [vmem:[%s258 + $0xa8] sm:$0xff] %v1788
        %2858 = vst [vmem:[%s258 + $0xb0] sm:$0xff] %v1790
        %2859 = vst [vmem:[%s258 + $0xb8] sm:$0xff] %v2713
        %2860 = vst [vmem:[%s258 + $0xc0] sm:$0xff] %v1794
        %2861 = vst [vmem:[%s258 + $0xc8] sm:$0xff] %v1796
        %2862 = vst [vmem:[%s258 + $0xd0] sm:$0xff] %v2718
        %2863 = vst [vmem:[%s258 + $0xd8] sm:$0xff] %v1800
        %2864 = vst [vmem:[%s258 + $0xe0] sm:$0xff] %v1802
        %2865 = vst [vmem:[%s258 + $0xe8] sm:$0xff] %v2723
        %2866 = vst [vmem:[%s258 + $0xf0] sm:$0xff] %v1806
        %2867 = vst [vmem:[%s258 + $0xf8] sm:$0xff] %v1808
        %2868 = vst [vmem:[%s258 + $0x100] sm:$0xff] %v2728
        %2869 = vst [vmem:[%s258 + $0x108] sm:$0xff] %v1812
        %2870 = vst [vmem:[%s258 + $0x110] sm:$0xff] %v1814
        %2871 = vst [vmem:[%s258 + $0x118] sm:$0xff] %v2733
        %2872 = vst [vmem:[%s258 + $0x120] sm:$0xff] %v1818
        %2873 = vst [vmem:[%s258 + $0x128] sm:$0xff] %v1820
        %2874 = vst [vmem:[%s258 + $0x130] sm:$0xff] %v2738
        %2875 = vst [vmem:[%s258 + $0x138] sm:$0xff] %v1824
        %2876 = vst [vmem:[%s258 + $0x140] sm:$0xff] %v1826
        %2877 = vst [vmem:[%s258 + $0x148] sm:$0xff] %v2743
        %2878 = vst [vmem:[%s258 + $0x150] sm:$0xff] %v1830
        %2879 = vst [vmem:[%s258 + $0x158] sm:$0xff] %v1832
        %2880 = vst [vmem:[%s258 + $0x160] sm:$0xff] %v2748
        %2881 = vst [vmem:[%s258 + $0x168] sm:$0xff] %v1836
        %2882 = vst [vmem:[%s258 + $0x170] sm:$0xff] %v1838
        %2883 = vst [vmem:[%s258 + $0x178] sm:$0xff] %v2753
        %2884 = vst [vmem:[%s258 + $0x180] sm:$0xff] %v1842
        %2885 = vst [vmem:[%s258 + $0x188] sm:$0xff] %v1844
        %2886 = vst [vmem:[%s258 + $0x190] sm:$0xff] %v2758
        %2887 = vst [vmem:[%s258 + $0x198] sm:$0xff] %v1848
        %2888 = vst [vmem:[%s258 + $0x1a0] sm:$0xff] %v1850
        %2889 = vst [vmem:[%s258 + $0x1a8] sm:$0xff] %v2763
        %2890 = vst [vmem:[%s258 + $0x1b0] sm:$0xff] %v1854
        %2891 = vst [vmem:[%s258 + $0x1b8] sm:$0xff] %v1856
        %2892 = vst [vmem:[%s258 + $0x1c0] sm:$0xff] %v2768
        %2893 = vst [vmem:[%s258 + $0x1c8] sm:$0xff] %v1860
        %2894 = vst [vmem:[%s258 + $0x1d0] sm:$0xff] %v1862
        %2895 = vst [vmem:[%s258 + $0x1d8] sm:$0xff] %v2773
        %2896 = vst [vmem:[%s258 + $0x1e0] sm:$0xff] %v1866
        %2897 = vst [vmem:[%s258 + $0x1e8] sm:$0xff] %v1868
        %2898 = vst [vmem:[%s258 + $0x1f0] sm:$0xff] %v2778
        %2899 = vst [vmem:[%s258 + $0x1f8] sm:$0xff] %v1872
        %2900 = vst [vmem:[%s258 + $0x200] sm:$0xff] %v1874
        %2901 = vst [vmem:[%s258 + $0x208] sm:$0xff] %v2783
        %2902 = vst [vmem:[%s258 + $0x210] sm:$0xff] %v1878
        %2903 = vst [vmem:[%s258 + $0x218] sm:$0xff] %v1880
        %2904 = vst [vmem:[%s258 + $0x220] sm:$0xff] %v2788
        %2905 = vst [vmem:[%s258 + $0x228] sm:$0xff] %v1884
        %2906 = vst [vmem:[%s258 + $0x230] sm:$0xff] %v1886
        %2907 = vst [vmem:[%s258 + $0x238] sm:$0xff] %v2793
        %2908 = vst [vmem:[%s258 + $0x240] sm:$0xff] %v1890
        %2909 = vst [vmem:[%s258 + $0x248] sm:$0xff] %v1892
        %2910 = vst [vmem:[%s258 + $0x250] sm:$0xff] %v2798
        %2911 = vst [vmem:[%s258 + $0x258] sm:$0xff] %v1896
        %2912 = vst [vmem:[%s258 + $0x260] sm:$0xff] %v1898
        %2913 = vst [vmem:[%s258 + $0x268] sm:$0xff] %v2803
        %2914 = vst [vmem:[%s258 + $0x270] sm:$0xff] %v1902
        %2915 = vst [vmem:[%s258 + $0x278] sm:$0xff] %v1904
        %2916 = vst [vmem:[%s258 + $0x280] sm:$0xff] %v2808
        %2917 = vst [vmem:[%s258 + $0x288] sm:$0xff] %v1908
        %2918 = vst [vmem:[%s258 + $0x290] sm:$0xff] %v1910
        %2919 = vst [vmem:[%s258 + $0x298] sm:$0xff] %v2813
        %2920 = vst [vmem:[%s258 + $0x2a0] sm:$0xff] %v1914
        %2921 = vst [vmem:[%s258 + $0x2a8] sm:$0xff] %v1916
        %2922 = vst [vmem:[%s258 + $0x2b0] sm:$0xff] %v2818
        %2923 = vst [vmem:[%s258 + $0x2b8] sm:$0xff] %v1920
        %2924 = vst [vmem:[%s258 + $0x2c0] sm:$0xff] %v1922
        %2925 = vst [vmem:[%s258 + $0x2c8] sm:$0xff] %v2823
        %2926 = vst [vmem:[%s258 + $0x2d0] sm:$0xff] %v1926
        %2927 = vst [vmem:[%s258 + $0x2d8] sm:$0xff] %v1928
        %2928 = vst [vmem:[%s258 + $0x2e0] sm:$0xff] %v2828
        %2929 = vst [vmem:[%s258 + $0x2e8] sm:$0xff] %v1932
        %2930 = vst [vmem:[%s258 + $0x2f0] sm:$0xff] %v1934
        %2931 = vst [vmem:[%s258 + $0x2f8] sm:$0xff] %v2833
        %s2932 = sand.u32 %s123, 1
        %s2933 = scalar_lea.sflag [#allocation4], %s2932
        %s2934 = sand.u32 %s123, 1
        %s2935 = smul.addr %s2934, 768
        %s2936 = scalar_lea.vmem [#allocation7], %s2935
        // Predicated region
        $region41: #{tpu_custom_call.1} parent=31 // pred_check
          %p2937 = pneg %p133
        $region42: #{tpu_custom_call.1} parent=31 // pred_check_branch
          %2939 = sbr.rel (%p2937) target = $region44
        $region43: #{tpu_custom_call.1} parent=31 // pred_region
          %s2940 = smul.u32 32, %s27
          %s2941 = smul.u32 3, %s28
          %s2943 = ssub.s32 12288, 12288
          %2944 = vsyncadd %s2933, %s2943
          %s2945 = smul.addr %s2940, 6
          %s2946 = sadd.s32 %s2941, %s2945
          %s2947 = smul.addr %s2946, 128
          %s2948 = scalar_lea.hbm %s3, %s2947
          %s2949 = sshll.u32 %s2936, 4
          %s2950 = int_to_ptr.vmem [resolvable:$true] %s2949
          %2955 = dma.vmem_to_hbm [thread:$0]  %s2950, 12288, %s2948, %s2933, 384, 768, 24
        $region44: #{tpu_custom_call.1} parent=31 // pred_fallthru
          _
      $region32: #{tpu_custom_call.1} parent=5 // pred_fallthru
        _
      %p2956 = scmp.le.s32.totalorder 2, %s18
      // Predicated region
      $region45: #{tpu_custom_call.1} parent=5 // pred_check
        %p2957 = pneg %p2956
      $region46: #{tpu_custom_call.1} parent=5 // pred_check_branch
        %2959 = sbr.rel (%p2957) target = $region48
      $region47: #{tpu_custom_call.1} parent=5 // pred_region
        %s2960 = ssub.s32 %s18, 2
        // Predicated region
        $region49: #{tpu_custom_call.1} parent=47 // pred_check
          %p2961 = pneg %p139
        $region50: #{tpu_custom_call.1} parent=47 // pred_check_branch
          %2963 = sbr.rel (%p2961) target = $region52
        $region51: #{tpu_custom_call.1} parent=47 // pred_region
          %s2964 = sand.u32 %s124, 1
          %s2965 = scalar_lea.sflag [#allocation4], %s2964
          %s2966 = sand.u32 %s124, 1
          %s2967 = smul.addr %s2966, 768
          %s2968 = scalar_lea.vmem [#allocation7], %s2967
          %2969 = dma.done %s2965, 12288
        $region52: #{tpu_custom_call.1} parent=47 // pred_fallthru
          _
      $region48: #{tpu_custom_call.1} parent=5 // pred_fallthru
        _
    $region6: #{tpu_custom_call.1} parent=1 // loop_footer
      %s22 = sadd.s32 1, %s18
    $region7: #{tpu_custom_call.1} parent=1 // loop_footer_branch
      %17 = sbr.rel target = $region3
    $region8: #{tpu_custom_call.1} parent=1 // loop_exit
      _
    %2970 = vsyncpa [#allocation3], 1
    %s2971 = scalar_lea.sflag [#allocation3], 1
    %2972 = vsyncpa %s2971, 1
    %2973 = vsyncpa [#allocation6], 1
    %s2974 = scalar_lea.sflag [#allocation6], 1
    %2975 = vsyncpa %s2974, 1
    %2976 = vsyncpa [#allocation4], 1
    %s2977 = scalar_lea.sflag [#allocation4], 1
    %2978 = vsyncpa %s2977, 1

</llo_original>
